<compile_context>
chip_gen: v7x
topology: tpu7x:2x2x1
jax: 0.10.0
libtpu: 0.0.40
codegen_flags: <defaults>
</compile_context>

<pallas_src>
import functools

import jax
import jax.numpy as jnp
from jax import lax
from jax.experimental import pallas as pl
from jax.experimental.pallas import tpu as pltpu


# ----------------------------------------------------------------------------- kernel
def _ae_kernel(x_ref, wenc_ref, benc_ref, wdec_ref, bdec_ref,
               f_ref, l1_ref, l2_ref, acc_ref,
               *, total_rows, block_b, masked):
    """Grid = (batch tiles [parallel], m tiles [arbitrary])."""
    j = pl.program_id(1)

    x = x_ref[...]                           # (TB, n)   compute dtype (bf16/f32)
    b_dec = bdec_ref[...]                    # (1, n)
    b_dec_f32 = b_dec.astype(jnp.float32)    # hoisted: single widen per tile

    # ---- Encoder (this m tile): relu((x - b_dec) @ W_enc^T[:, j] + b_enc[j]).
    x_c = x - b_dec
    pre = jnp.dot(x_c, wenc_ref[...], preferred_element_type=jnp.float32)
    pre = pre + benc_ref[...].astype(jnp.float32)
    f_q = jnp.maximum(pre, 0.0).astype(f_ref.dtype)   # quantize to module dtype
    f_ref[...] = f_q                                   # lane-dense (TB, TM) store

    # ---- Row-validity mask (only materialized when the batch was padded).
    if masked:
        row = (pl.program_id(0) * block_b
               + lax.broadcasted_iota(jnp.int32, (block_b, 1), 0))
        valid = row < total_rows
    else:
        valid = None

    # ---- L1 partial: VALU-only reduction of sublane groups -> (8, TM) row block.
    abs_f = jnp.abs(f_q.astype(jnp.float32))
    if masked:
        abs_f = jnp.where(valid, abs_f, 0.0)
    l1_ref[...] = abs_f.reshape(block_b // 8, 8, -1).sum(axis=0)

    # ---- Decoder: accumulate f @ W_dec^T over the m tiles (f32 accumulator).
    @pl.when(j == 0)
    def _():
        acc_ref[...] = jnp.zeros_like(acc_ref)

    acc_ref[...] += jnp.dot(f_q, wdec_ref[...], preferred_element_type=jnp.float32)

    # ---- Last m tile: finish reconstruction + L2 partial (lane-dense (8, n)).
    @pl.when(j == pl.num_programs(1) - 1)
    def _():
        diff = acc_ref[...] + b_dec_f32 - x.astype(jnp.float32)
        d2 = diff * diff
        if masked:
            d2 = jnp.where(valid, d2, 0.0)
        l2_ref[...] = d2.reshape(block_b // 8, 8, -1).sum(axis=0)


# ----------------------------------------------------------------------------- helpers
def _round_up(x, mult):
    return ((x + mult - 1) // mult) * mult


def _default_block_b():
    """256-row tiles for 256-wide MXUs (v6e/v7x); 128 on older 128-wide parts."""
    try:
        kind = jax.devices()[0].device_kind.lower()
    except Exception:
        kind = ""
    if any(v in kind for v in ("v2", "v3", "v4", "v5")):
        return 128
    return 256


def _spec(shape, index_map, mode=None):
    """BlockSpec with optional pipeline_mode (graceful fallback if unsupported)."""
    if mode is not None:
        try:
            return pl.BlockSpec(shape, index_map, pipeline_mode=mode)
        except TypeError:
            pass
    return pl.BlockSpec(shape, index_map)


def prepare_params(w_enc, b_enc, w_dec, b_dec, dtype):
    """One-time prep (outside the hot path): pre-transpose weights, row-shape
    biases, cast to the compute dtype (bf16 recommended for MXU rate)."""
    m, n = w_enc.shape
    return (jnp.asarray(w_enc.T, dtype=dtype),                 # W_enc^T: (n, m)
            jnp.asarray(b_enc, dtype=dtype).reshape(1, m),     # (1, m)
            jnp.asarray(w_dec.T, dtype=dtype),                 # W_dec^T: (m, n)
            jnp.asarray(b_dec, dtype=dtype).reshape(1, n))     # (1, n)


# ----------------------------------------------------------------------------- wrapper
def autoencoder_forward(x, w_enc_t, b_enc_row, w_dec_t, b_dec_row,
                        *, lambda_reg, block_b=None, block_m=None):
    """x: (B, n); w_enc_t: (n, m); b_enc_row: (1, m); w_dec_t: (m, n);
    b_dec_row: (1, n). Returns (f, loss)."""
    B, n = x.shape
    n2, m = w_enc_t.shape
    assert n2 == n and w_dec_t.shape == (m, n)

    # ---- batch tile selection -------------------------------------------------
    if block_b is None:
        block_b = _default_block_b()
    block_b = _round_up(max(8, min(block_b, _round_up(B, 8))), 8)
    # Keep >= 2 batch tiles when possible so the "parallel" axis spans both
    # v7x TensorCores (and megacore on v6e-class parts).
    if _round_up(B, 8) > 8 and pl.cdiv(B, block_b) < 2:
        block_b = _round_up(pl.cdiv(B, 2), 8)
    B_pad = _round_up(B, block_b)
    num_b = B_pad // block_b
    masked = B_pad != B

    # ---- m tile selection: keep weights resident when they fit, else tile m ---
    if block_m is None:
        block_m = m if m <= 4096 else 4096
    block_m = min(block_m, m)
    if block_m != m and (m % block_m != 0 or block_m % 128 != 0):
        block_m = m                           # fallback: no m tiling for awkward m
    num_m = m // block_m

    if masked:
        x = jnp.pad(x, ((0, B_pad - B), (0, 0)))

    kernel = functools.partial(_ae_kernel, total_rows=B, block_b=block_b,
                               masked=masked)

    # Constant-index parameters: single resident buffer (no double-buffering).
    resident = pl.Buffered(1)
    w_mode = resident if num_m == 1 else None   # m-tiled weights stay pipelined

    # ---- rough resident-VMEM estimate -> raise scoped limit only when needed --
    w_item = jnp.dtype(w_enc_t.dtype).itemsize
    x_item = jnp.dtype(x.dtype).itemsize
    w_bufs = 1 if num_m == 1 else 2
    est = (w_bufs * 2 * block_m * n * w_item               # W_enc^T + W_dec^T tiles
           + w_bufs * (block_m + n) * w_item               # biases
           + 2 * block_b * (n + block_m) * x_item          # x / f double buffers
           + 2 * 8 * (block_m + n) * 4                     # loss partial blocks
           + block_b * n * 4)                              # f32 accumulator
    vmem_limit = None
    if est > (24 << 20):
        vmem_limit = min(int(est * 1.5), 100 << 20)

    cost = pl.CostEstimate(
        flops=4 * B_pad * n * m, transcendentals=0,
        bytes_accessed=(2 * n * m + m + n) * w_item
                       + (B_pad * n + B_pad * m) * x_item
                       + num_b * 8 * (m + n) * 4)

    f_pad, l1_parts, l2_parts = pl.pallas_call(
        kernel,
        out_shape=(
            jax.ShapeDtypeStruct((B_pad, m), x.dtype),            # f
            jax.ShapeDtypeStruct((num_b * 8, m), jnp.float32),     # L1 partial rows
            jax.ShapeDtypeStruct((num_b * 8, n), jnp.float32),     # L2 partial rows
        ),
        grid=(num_b, num_m),
        in_specs=[
            _spec((block_b, n), lambda i, j: (i, 0)),                    # x tile
            _spec((n, block_m), lambda i, j: (0, j), w_mode),            # W_enc^T
            _spec((1, block_m), lambda i, j: (0, j), w_mode),            # b_enc
            _spec((block_m, n), lambda i, j: (j, 0), w_mode),            # W_dec^T
            _spec((1, n),       lambda i, j: (0, 0), resident),          # b_dec
        ],
        out_specs=(
            _spec((block_b, block_m), lambda i, j: (i, j)),              # f tile
            _spec((8, block_m),       lambda i, j: (i, j)),              # L1 rows
            _spec((8, n),             lambda i, j: (i, 0)),              # L2 rows
        ),
        scratch_shapes=[pltpu.VMEM((block_b, n), jnp.float32)],          # x_rec acc
        compiler_params=pltpu.CompilerParams(
            dimension_semantics=("parallel", "arbitrary"),
            vmem_limit_bytes=vmem_limit),
        cost_estimate=cost,
    )(x, w_enc_t, b_enc_row, w_dec_t, b_dec_row)

    f = f_pad[:B] if masked else f_pad
    # Epilogue: fold lambda_reg and the 1/(B*n) mean into two tiny scalar ops.
    l1 = jnp.sum(l1_parts)
    l2 = jnp.sum(l2_parts)
    loss = jnp.float32(lambda_reg) * l1 + l2 * jnp.float32(1.0 / (B * n))
    return f, loss


# ----------------------------------------------------------------------------- demo / checks
def _init_linear(key, out_features, in_features, dtype=jnp.float32):
    """Deterministic init mimicking nn.Linear: U(-1/sqrt(fan_in), 1/sqrt(fan_in))."""
    k_w, k_b = jax.random.split(key)
    bound = 1.0 / (in_features ** 0.5)
    w = jax.random.uniform(k_w, (out_features, in_features), dtype,
                           minval=-bound, maxval=bound)
    b = jax.random.uniform(k_b, (out_features,), dtype,
                           minval=-bound, maxval=bound)
    return w, b


def _reference(x, w_enc, b_enc, w_dec, b_dec, lambda_reg):
    xc = x - b_dec
    f = jnp.maximum(xc @ w_enc.T + b_enc, 0.0)
    x_rec = f @ w_dec.T + b_dec
    loss = lambda_reg * jnp.sum(jnp.abs(f)) + jnp.mean((x_rec - x) ** 2)
    return f, loss


if __name__ == "__main__":
    # cfg-equivalent: overcomplete SAE with 128-lane-multiple dims (m >= n).
    B, n, m = 512, 256, 512
    lambda_reg = 1e-3

    key = jax.random.PRNGKey(0)
    k_x, k_enc, k_dec = jax.random.split(key, 3)

    x32 = jax.random.normal(k_x, (B, n), jnp.float32)
    w_enc, b_enc = _init_linear(k_enc, m, n)   # encoder: Linear(n -> m)
    w_dec, b_dec = _init_linear(k_dec, n, m)   # decoder: Linear(m -> n)

    fwd = jax.jit(functools.partial(autoencoder_forward, lambda_reg=lambda_reg))

    # ---------------- f32 path: tight correctness check (single m tile) --------
    params32 = prepare_params(w_enc, b_enc, w_dec, b_dec, jnp.float32)
    f32_out, loss32 = fwd(x32, *params32)
    jax.block_until_ready((f32_out, loss32))

    f_ref, loss_ref = _reference(x32, w_enc, b_enc, w_dec, b_dec, lambda_reg)
    assert f32_out.shape == (B, m)
    assert jnp.allclose(f32_out, f_ref, atol=1e-3, rtol=1e-3)
    assert jnp.allclose(loss32, loss_ref, atol=1e-2, rtol=1e-2)

    # ---------------- f32 path, awkward batch: pad-and-mask check --------------
    Bp = 200
    xp = x32[:Bp]
    fp_out, loss_p = fwd(xp, *params32)
    jax.block_until_ready((fp_out, loss_p))
    fp_ref, loss_p_ref = _reference(xp, w_enc, b_enc, w_dec, b_dec, lambda_reg)
    assert fp_out.shape == (Bp, m)
    assert jnp.allclose(fp_out, fp_ref, atol=1e-3, rtol=1e-3)
    assert jnp.allclose(loss_p, loss_p_ref, atol=1e-2, rtol=1e-2)

    # ---------------- bf16 path: MXU-rate operands + m-tiled "arbitrary" axis --
    x16 = x32.astype(jnp.bfloat16)
    params16 = prepare_params(w_enc, b_enc, w_dec, b_dec, jnp.bfloat16)
    fwd16 = jax.jit(functools.partial(autoencoder_forward,
                                      lambda_reg=lambda_reg, block_m=256))
    f16_out, loss16 = fwd16(x16, *params16)
    jax.block_until_ready((f16_out, loss16))

    # NOTE: accepted contract — bf16 operands with f32 MXU accumulation and f
    # re-quantized to bf16 before the decoder matmul (mirrors the module dtype).
    we16, be16, wd16, bd16 = params16
    xc16 = x16 - bd16
    f16_ref = jnp.maximum(
        jnp.dot(xc16, we16, preferred_element_type=jnp.float32)
        + be16.astype(jnp.float32), 0.0).astype(jnp.bfloat16)
    xr16 = (jnp.dot(f16_ref, wd16, preferred_element_type=jnp.float32)
            + bd16.astype(jnp.float32))
    d16 = xr16 - x16.astype(jnp.float32)
    loss16_ref = (lambda_reg * jnp.sum(jnp.abs(f16_ref.astype(jnp.float32)))
                  + jnp.mean(d16 * d16))

    assert jnp.allclose(f16_out.astype(jnp.float32),
                        f16_ref.astype(jnp.float32), atol=5e-2, rtol=5e-2)
    assert jnp.allclose(loss16, loss16_ref, atol=5e-2, rtol=5e-2)

    print("KERNEL_OK")
</pallas_src>

<mosaic_0001>
module attributes {stable_mosaic.version = 11 : i64} {
  func.func @_ae_kernel(%arg0: i32, %arg1: i32, %arg2: memref<256x256xf32, #tpu.memory_space<vmem>>, %arg3: memref<256x512xf32, #tpu.memory_space<vmem>>, %arg4: memref<1x512xf32, #tpu.memory_space<vmem>>, %arg5: memref<512x256xf32, #tpu.memory_space<vmem>>, %arg6: memref<1x256xf32, #tpu.memory_space<vmem>>, %arg7: memref<256x512xf32, #tpu.memory_space<vmem>>, %arg8: memref<8x512xf32, #tpu.memory_space<vmem>>, %arg9: memref<8x256xf32, #tpu.memory_space<vmem>>, %arg10: memref<256x256xf32, #tpu.memory_space<vmem>>) attributes {dimension_semantics = [#tpu.dimension_semantics<parallel>, #tpu.dimension_semantics<arbitrary>], iteration_bounds = array<i64: 2, 1>, scalar_prefetch = 0 : i64, scratch_operands = 1 : i64, tpu.core_type = #tpu.core_type<tc>, window_params = [{transform_indices = @transform_0, window_bounds = array<i64: 256, 256>}, {pipeline_mode = #tpu.pipeline_mode<synchronous>, transform_indices = @transform_1, window_bounds = array<i64: 256, 512>}, {pipeline_mode = #tpu.pipeline_mode<synchronous>, transform_indices = @transform_2, window_bounds = array<i64: 1, 512>}, {pipeline_mode = #tpu.pipeline_mode<synchronous>, transform_indices = @transform_3, window_bounds = array<i64: 512, 256>}, {pipeline_mode = #tpu.pipeline_mode<synchronous>, transform_indices = @transform_4, window_bounds = array<i64: 1, 256>}, {transform_indices = @transform_5, window_bounds = array<i64: 256, 512>}, {transform_indices = @transform_6, window_bounds = array<i64: 8, 512>}, {transform_indices = @transform_7, window_bounds = array<i64: 8, 256>}]} {
    %c0 = arith.constant 0 : index
    %c0_0 = arith.constant 0 : index
    %0 = vector.load %arg2[%c0, %c0_0] : memref<256x256xf32, #tpu.memory_space<vmem>>, vector<256x256xf32>
    %c0_1 = arith.constant 0 : index
    %c0_2 = arith.constant 0 : index
    %1 = vector.load %arg6[%c0_1, %c0_2] : memref<1x256xf32, #tpu.memory_space<vmem>>, vector<1x256xf32>
    %2 = vector.broadcast %1 : vector<1x256xf32> to vector<256x256xf32>
    %3 = arith.subf %0, %2 : vector<256x256xf32>
    %c0_3 = arith.constant 0 : index
    %c0_4 = arith.constant 0 : index
    %4 = vector.load %arg3[%c0_3, %c0_4] : memref<256x512xf32, #tpu.memory_space<vmem>>, vector<256x512xf32>
    %cst = arith.constant dense<0.000000e+00> : vector<256x512xf32>
    %5 = tpu.matmul %3, %4, %cst {dimension_numbers = #tpu.dot_dimension_numbers<[1], [0], [0], [1], [0, 0, 1, 1], [], []>} : vector<256x256xf32>, vector<256x512xf32>, vector<256x512xf32> -> vector<256x512xf32>
    %c0_5 = arith.constant 0 : index
    %c0_6 = arith.constant 0 : index
    %6 = vector.load %arg4[%c0_5, %c0_6] : memref<1x512xf32, #tpu.memory_space<vmem>>, vector<1x512xf32>
    %7 = vector.broadcast %6 : vector<1x512xf32> to vector<256x512xf32>
    %8 = arith.addf %5, %7 : vector<256x512xf32>
    %cst_7 = arith.constant 0.000000e+00 : f32
    %9 = vector.broadcast %cst_7 : f32 to vector<256x512xf32>
    %10 = arith.maximumf %8, %9 : vector<256x512xf32>
    %c0_8 = arith.constant 0 : index
    %c0_9 = arith.constant 0 : index
    %11 = vector.load %arg7[%c0_8, %c0_9] : memref<256x512xf32, #tpu.memory_space<vmem>>, vector<256x512xf32>
    tpu.vector_store %arg7[%c0_8, %c0_9], %10 {strides = array<i32>} : memref<256x512xf32, #tpu.memory_space<vmem>>, vector<256x512xf32>,
    %12 = math.absf %10 : vector<256x512xf32>
    %13 = vector.shape_cast %12 : vector<256x512xf32> to vector<32x8x512xf32>
    %cst_10 = arith.constant dense<0.000000e+00> : vector<8x512xf32>
    %14 = vector.multi_reduction <add>, %13, %cst_10 [0] : vector<32x8x512xf32> to vector<8x512xf32>
    %c0_11 = arith.constant 0 : index
    %c0_12 = arith.constant 0 : index
    %15 = vector.load %arg8[%c0_11, %c0_12] : memref<8x512xf32, #tpu.memory_space<vmem>>, vector<8x512xf32>
    tpu.vector_store %arg8[%c0_11, %c0_12], %14 {strides = array<i32>} : memref<8x512xf32, #tpu.memory_space<vmem>>, vector<8x512xf32>,
    %c0_i32 = arith.constant 0 : i32
    %16 = arith.cmpi eq, %arg1, %c0_i32 : i32
    %17 = arith.extui %16 : i1 to i32
    %c0_i32_13 = arith.constant 0 : i32
    %18 = arith.cmpi ne, %17, %c0_i32_13 : i32
    scf.if %18 {
      %cst_23 = arith.constant 0.000000e+00 : f32
      %27 = vector.broadcast %cst_23 : f32 to vector<256x256xf32>
      %c0_24 = arith.constant 0 : index
      %c0_25 = arith.constant 0 : index
      %28 = vector.load %arg10[%c0_24, %c0_25] : memref<256x256xf32, #tpu.memory_space<vmem>>, vector<256x256xf32>
      tpu.vector_store %arg10[%c0_24, %c0_25], %27 {strides = array<i32>} : memref<256x256xf32, #tpu.memory_space<vmem>>, vector<256x256xf32>,
    } else {
    }
    %c0_14 = arith.constant 0 : index
    %c0_15 = arith.constant 0 : index
    %19 = vector.load %arg10[%c0_14, %c0_15] : memref<256x256xf32, #tpu.memory_space<vmem>>, vector<256x256xf32>
    %c0_16 = arith.constant 0 : index
    %c0_17 = arith.constant 0 : index
    %20 = vector.load %arg5[%c0_16, %c0_17] : memref<512x256xf32, #tpu.memory_space<vmem>>, vector<512x256xf32>
    %cst_18 = arith.constant dense<0.000000e+00> : vector<256x256xf32>
    %21 = tpu.matmul %10, %20, %cst_18 {dimension_numbers = #tpu.dot_dimension_numbers<[1], [0], [0], [1], [0, 0, 1, 1], [], []>} : vector<256x512xf32>, vector<512x256xf32>, vector<256x256xf32> -> vector<256x256xf32>
    %22 = arith.addf %19, %21 : vector<256x256xf32>
    %c0_19 = arith.constant 0 : index
    %c0_20 = arith.constant 0 : index
    %23 = vector.load %arg10[%c0_19, %c0_20] : memref<256x256xf32, #tpu.memory_space<vmem>>, vector<256x256xf32>
    tpu.vector_store %arg10[%c0_19, %c0_20], %22 {strides = array<i32>} : memref<256x256xf32, #tpu.memory_space<vmem>>, vector<256x256xf32>,
    %c0_i32_21 = arith.constant 0 : i32
    %24 = arith.cmpi eq, %arg1, %c0_i32_21 : i32
    %25 = arith.extui %24 : i1 to i32
    %c0_i32_22 = arith.constant 0 : i32
    %26 = arith.cmpi ne, %25, %c0_i32_22 : i32
    scf.if %26 {
      %c0_23 = arith.constant 0 : index
      %c0_24 = arith.constant 0 : index
      %27 = vector.load %arg10[%c0_23, %c0_24] : memref<256x256xf32, #tpu.memory_space<vmem>>, vector<256x256xf32>
      %28 = vector.broadcast %1 : vector<1x256xf32> to vector<256x256xf32>
      %29 = arith.addf %27, %28 : vector<256x256xf32>
      %30 = arith.subf %29, %0 : vector<256x256xf32>
      %31 = arith.mulf %30, %30 : vector<256x256xf32>
      %32 = vector.shape_cast %31 : vector<256x256xf32> to vector<32x8x256xf32>
      %cst_25 = arith.constant dense<0.000000e+00> : vector<8x256xf32>
      %33 = vector.multi_reduction <add>, %32, %cst_25 [0] : vector<32x8x256xf32> to vector<8x256xf32>
      %c0_26 = arith.constant 0 : index
      %c0_27 = arith.constant 0 : index
      %34 = vector.load %arg9[%c0_26, %c0_27] : memref<8x256xf32, #tpu.memory_space<vmem>>, vector<8x256xf32>
      tpu.vector_store %arg9[%c0_26, %c0_27], %33 {strides = array<i32>} : memref<8x256xf32, #tpu.memory_space<vmem>>, vector<8x256xf32>,
    } else {
    }
    return
  }
  func.func @transform_0(%arg0: i32, %arg1: i32) -> (i32, i32) {
    %c0_i32 = arith.constant 0 : i32
    %c0_i32_0 = arith.constant 0 : i32
    return %arg0, %c0_i32 : i32, i32
  }
  func.func @transform_1(%arg0: i32, %arg1: i32) -> (i32, i32) {
    %c0_i32 = arith.constant 0 : i32
    %c0_i32_0 = arith.constant 0 : i32
    return %c0_i32, %arg1 : i32, i32
  }
  func.func @transform_2(%arg0: i32, %arg1: i32) -> (i32, i32) {
    %c0_i32 = arith.constant 0 : i32
    %c0_i32_0 = arith.constant 0 : i32
    return %c0_i32, %arg1 : i32, i32
  }
  func.func @transform_3(%arg0: i32, %arg1: i32) -> (i32, i32) {
    %c0_i32 = arith.constant 0 : i32
    %c0_i32_0 = arith.constant 0 : i32
    return %arg1, %c0_i32 : i32, i32
  }
  func.func @transform_4(%arg0: i32, %arg1: i32) -> (i32, i32) {
    %c0_i32 = arith.constant 0 : i32
    %c0_i32_0 = arith.constant 0 : i32
    %c0_i32_1 = arith.constant 0 : i32
    return %c0_i32, %c0_i32_0 : i32, i32
  }
  func.func @transform_5(%arg0: i32, %arg1: i32) -> (i32, i32) {
    %c0_i32 = arith.constant 0 : i32
    return %arg0, %arg1 : i32, i32
  }
  func.func @transform_6(%arg0: i32, %arg1: i32) -> (i32, i32) {
    %c0_i32 = arith.constant 0 : i32
    return %arg0, %arg1 : i32, i32
  }
  func.func @transform_7(%arg0: i32, %arg1: i32) -> (i32, i32) {
    %c0_i32 = arith.constant 0 : i32
    %c0_i32_0 = arith.constant 0 : i32
    return %arg0, %c0_i32 : i32, i32
  }
}

</mosaic_0001>

<llo_original>
// kernel: autoencoder_forward.1
$region0: #{autoencoder_forward.1}
  #allocation0 [shape = 'u32[]', space=smem, size = 0x4, offset = 0x4, fixed_abs, tag = 'smem constant byte address 0x4 - core index']
  #allocation1 [shape = 'u32[144,128]{1,0:T(1,128)}', space=vmem, size = 0x12000, scoped, tag = 'internal scratch']
  #allocation2 [shape = 'f32[256,256]{1,0:T(8,128)}', space=vmem, size = 0x40000, scoped, tag = 'scratch operand']
  %s0 = inlined_call_operand.hbm [shape: f32[512,256], index: 0, kind: input, shape index: {}]
  %s1 = inlined_call_operand.hbm [shape: f32[256,512], index: 1, kind: input, shape index: {}]
  %s2 = inlined_call_operand.vmem [shape: f32[1,512], index: 2, kind: input, shape index: {}]
  %s3 = inlined_call_operand.hbm [shape: f32[512,256], index: 3, kind: input, shape index: {}]
  %s4 = inlined_call_operand.vmem [shape: f32[1,256], index: 4, kind: input, shape index: {}]
  %s5 = inlined_call_operand.hbm [shape: f32[512,512], index: 5, kind: output, shape index: {0}]
  %s6 = inlined_call_operand.vmem [shape: f32[16,512], index: 6, kind: output, shape index: {1}]
  %s7 = inlined_call_operand.vmem [shape: f32[16,256], index: 7, kind: output, shape index: {2}]
  %8 = xla_tuple %s5, %s6, %s7
  %s9 = sld [smem:[#allocation0]]
  $region89: #{autoencoder_forward.1} parent=0
    _
  %s11 = ssub.s32 1, %s9
  %s12 = scalar_select 0, %s11, %s9
  $region1: #{autoencoder_forward.1} parent=0
    #allocation3 [shape = 'u8[524288]{0}', space=vmem, size = 0x80000, scoped, tag = 'input window, operand 0']
    #allocation4 [shape = 's32[2]{0}', space=sflag, size = 0x8, scoped, tag = 'scoped memory for autoencoder_forward.1']
    #allocation5 [shape = 's32[2]{0}', space=sflag, size = 0x8, scoped, tag = 'scoped memory for autoencoder_forward.1']
    #allocation6 [shape = 'u8[524288]{0}', space=vmem, size = 0x80000, scoped, tag = 'input window, operand 1, single buffered']
    #allocation7 [shape = 's32[1]{0}', space=sflag, size = 0x4, scoped, tag = 'scoped memory for autoencoder_forward.1']
    #allocation8 [shape = 'u8[524288]{0}', space=vmem, size = 0x80000, scoped, tag = 'input window, operand 3, single buffered']
    #allocation9 [shape = 'u8[1048576]{0}', space=vmem, size = 0x100000, scoped, tag = 'output window, operand 0']
    %13 = vsyncpa [#allocation4], 0
    %s14 = scalar_lea.sflag [#allocation4], 1
    %15 = vsyncpa %s14, 0
    %16 = vsyncpa [#allocation7], 0
    %17 = vsyncpa [#allocation5], 0
    %s18 = scalar_lea.sflag [#allocation5], 1
    %19 = vsyncpa %s18, 0
    loop: start=0, step=1, limit=4
    $region2: #{autoencoder_forward.1} parent=1 // loop_pre_header
      _
    $region3: #{autoencoder_forward.1} parent=1 // loop_header
      %s21 = sphi 0, %s25
      %p22 = scmp.ge.s32.totalorder %s21, 4
      %s28 = sphi 0, %s40
      %s29 = sphi 0, %s36
      %s30 = sphi 0, %s28
      %s31 = sphi 0, %s29
      %s32 = sphi 0, %s30
      %s33 = sphi 0, %s31
      %s43 = sphi 0, %s45
      %s46 = sphi 0, %s43
      %s47 = sphi 0, %s46
      %s63 = sphi 0, %s47
      %s69 = sphi 0, %s71
      %s72 = sphi 0, %s69
      %s73 = sphi 0, %s72
      %s89 = sphi 0, %s73
      %s95 = sphi 0, %s97
      %s98 = sphi 0, %s95
      %s99 = sphi 0, %s98
      %s115 = sphi 0, %s99
      %s121 = sphi 0, %s123
      %s124 = sphi 0, %s121
      %s125 = sphi 0, %s124
      %s141 = sphi 0, %s125
      %s145 = sphi 0, %s145
      %s147 = sphi 0, %s145
      %s148 = sphi 0, %s147
      %s162 = sphi 0, %s148
      %s170 = sphi 0, %s172
      %s173 = sphi 0, %s170
      %s174 = sphi 0, %s173
      %s190 = sphi 0, %s174
      %s198 = sphi 0, %s200
      %s201 = sphi 0, %s198
      %s202 = sphi 0, %s201
      %s218 = sphi 0, %s202
      %s224 = sphi 0, %s226
      %s227 = sphi 0, %s224
      %s228 = sphi 0, %s227
      %s244 = sphi 0, %s228
    $region4: #{autoencoder_forward.1} parent=1 // loop_header_branch
      %24 = sbr.rel (%p22) target = $region8
    $region5: #{autoencoder_forward.1} parent=1 // loop_body
      %s26 = ssub.s32 %s21, 1
      %s27 = ssub.s32 %s21, 2
      %s34 = sadd.s32 1, %s29
      %p35 = scmp.ge.s32.totalorder %s34, 1
      %s36 = scalar_select %p35, 0, %s34
      %s37 = sadd.s32 1, %s28
      %s38 = scalar_select %p35, %s37, %s28
      %p39 = scmp.ge.s32.totalorder %s38, 2
      %s40 = scalar_select %p39, 0, %s38
      %s41 = ssub.s32 %s28, %s40
      %p42 = scmp.eq.s32.totalorder %s41, 0
      %s44 = sadd.s32 %s43, 1
      %s45 = scalar_select %p42, %s43, %s44
      %p48 = pneg %p42
      %p49 = scmp.eq.s32.totalorder %s21, 1
      %p50 = por %p48, %p49
      %p51 = scmp.ne.s32.totalorder %s43, %s46
      %p52 = scmp.eq.s32.totalorder %s21, 0
      %p53 = por %p51, %p52
      %p54 = scmp.ne.s32.totalorder %s43, %s46
      %p55 = scmp.eq.s32.totalorder %s26, 1
      %p56 = por %p54, %p55
      %p57 = scmp.ne.s32.totalorder %s46, %s47
      %p58 = scmp.eq.s32.totalorder %s26, 0
      %p59 = por %p57, %p58
      %p60 = scmp.ne.s32.totalorder %s46, %s47
      %p61 = scmp.eq.s32.totalorder %s27, 1
      %p62 = por %p60, %p61
      %p64 = scmp.ne.s32.totalorder %s47, %s63
      %p65 = scmp.eq.s32.totalorder %s27, 0
      %p66 = por %p64, %p65
      %s67 = ssub.s32 %s29, %s36
      %p68 = scmp.eq.s32.totalorder %s67, 0
      %s70 = sadd.s32 %s69, 1
      %s71 = scalar_select %p68, %s69, %s70
      %p74 = pneg %p68
      %p75 = scmp.eq.s32.totalorder %s21, 1
      %p76 = por %p74, %p75
      %p77 = scmp.ne.s32.totalorder %s69, %s72
      %p78 = scmp.eq.s32.totalorder %s21, 0
      %p79 = por %p77, %p78
      %p80 = scmp.ne.s32.totalorder %s69, %s72
      %p81 = scmp.eq.s32.totalorder %s26, 1
      %p82 = por %p80, %p81
      %p83 = scmp.ne.s32.totalorder %s72, %s73
      %p84 = scmp.eq.s32.totalorder %s26, 0
      %p85 = por %p83, %p84
      %p86 = scmp.ne.s32.totalorder %s72, %s73
      %p87 = scmp.eq.s32.totalorder %s27, 1
      %p88 = por %p86, %p87
      %p90 = scmp.ne.s32.totalorder %s73, %s89
      %p91 = scmp.eq.s32.totalorder %s27, 0
      %p92 = por %p90, %p91
      %s93 = ssub.s32 %s29, %s36
      %p94 = scmp.eq.s32.totalorder %s93, 0
      %s96 = sadd.s32 %s95, 1
      %s97 = scalar_select %p94, %s95, %s96
      %p100 = pneg %p94
      %p101 = scmp.eq.s32.totalorder %s21, 1
      %p102 = por %p100, %p101
      %p103 = scmp.ne.s32.totalorder %s95, %s98
      %p104 = scmp.eq.s32.totalorder %s21, 0
      %p105 = por %p103, %p104
      %p106 = scmp.ne.s32.totalorder %s95, %s98
      %p107 = scmp.eq.s32.totalorder %s26, 1
      %p108 = por %p106, %p107
      %p109 = scmp.ne.s32.totalorder %s98, %s99
      %p110 = scmp.eq.s32.totalorder %s26, 0
      %p111 = por %p109, %p110
      %p112 = scmp.ne.s32.totalorder %s98, %s99
      %p113 = scmp.eq.s32.totalorder %s27, 1
      %p114 = por %p112, %p113
      %p116 = scmp.ne.s32.totalorder %s99, %s115
      %p117 = scmp.eq.s32.totalorder %s27, 0
      %p118 = por %p116, %p117
      %s119 = ssub.s32 %s29, %s36
      %p120 = scmp.eq.s32.totalorder %s119, 0
      %s122 = sadd.s32 %s121, 1
      %s123 = scalar_select %p120, %s121, %s122
      %p126 = pneg %p120
      %p127 = scmp.eq.s32.totalorder %s21, 1
      %p128 = por %p126, %p127
      %p129 = scmp.ne.s32.totalorder %s121, %s124
      %p130 = scmp.eq.s32.totalorder %s21, 0
      %p131 = por %p129, %p130
      %p132 = scmp.ne.s32.totalorder %s121, %s124
      %p133 = scmp.eq.s32.totalorder %s26, 1
      %p134 = por %p132, %p133
      %p135 = scmp.ne.s32.totalorder %s124, %s125
      %p136 = scmp.eq.s32.totalorder %s26, 0
      %p137 = por %p135, %p136
      %p138 = scmp.ne.s32.totalorder %s124, %s125
      %p139 = scmp.eq.s32.totalorder %s27, 1
      %p140 = por %p138, %p139
      %p142 = scmp.ne.s32.totalorder %s125, %s141
      %p143 = scmp.eq.s32.totalorder %s27, 0
      %p144 = por %p142, %p143
      %s146 = sadd.s32 %s145, 1
      %p149 = scmp.eq.s32.totalorder %s21, 1
      %p150 = scmp.ne.s32.totalorder %s145, %s147
      %p151 = scmp.eq.s32.totalorder %s21, 0
      %p152 = por %p150, %p151
      %p153 = scmp.ne.s32.totalorder %s145, %s147
      %p154 = scmp.eq.s32.totalorder %s26, 1
      %p155 = por %p153, %p154
      %p156 = scmp.ne.s32.totalorder %s147, %s148
      %p157 = scmp.eq.s32.totalorder %s26, 0
      %p158 = por %p156, %p157
      %p159 = scmp.ne.s32.totalorder %s147, %s148
      %p160 = scmp.eq.s32.totalorder %s27, 1
      %p161 = por %p159, %p160
      %p163 = scmp.ne.s32.totalorder %s148, %s162
      %p164 = scmp.eq.s32.totalorder %s27, 0
      %p165 = por %p163, %p164
      %s166 = ssub.s32 %s28, %s40
      %s167 = ssub.s32 %s29, %s36
      %s168 = sor.u32 %s166, %s167
      %p169 = scmp.eq.s32.totalorder %s168, 0
      %s171 = sadd.s32 %s170, 1
      %s172 = scalar_select %p169, %s170, %s171
      %p175 = pneg %p169
      %p176 = scmp.eq.s32.totalorder %s21, 1
      %p177 = por %p175, %p176
      %p178 = scmp.ne.s32.totalorder %s170, %s173
      %p179 = scmp.eq.s32.totalorder %s21, 0
      %p180 = por %p178, %p179
      %p181 = scmp.ne.s32.totalorder %s170, %s173
      %p182 = scmp.eq.s32.totalorder %s26, 1
      %p183 = por %p181, %p182
      %p184 = scmp.ne.s32.totalorder %s173, %s174
      %p185 = scmp.eq.s32.totalorder %s26, 0
      %p186 = por %p184, %p185
      %p187 = scmp.ne.s32.totalorder %s173, %s174
      %p188 = scmp.eq.s32.totalorder %s27, 1
      %p189 = por %p187, %p188
      %p191 = scmp.ne.s32.totalorder %s174, %s190
      %p192 = scmp.eq.s32.totalorder %s27, 0
      %p193 = por %p191, %p192
      %s194 = ssub.s32 %s28, %s40
      %s195 = ssub.s32 %s29, %s36
      %s196 = sor.u32 %s194, %s195
      %p197 = scmp.eq.s32.totalorder %s196, 0
      %s199 = sadd.s32 %s198, 1
      %s200 = scalar_select %p197, %s198, %s199
      %p203 = pneg %p197
      %p204 = scmp.eq.s32.totalorder %s21, 1
      %p205 = por %p203, %p204
      %p206 = scmp.ne.s32.totalorder %s198, %s201
      %p207 = scmp.eq.s32.totalorder %s21, 0
      %p208 = por %p206, %p207
      %p209 = scmp.ne.s32.totalorder %s198, %s201
      %p210 = scmp.eq.s32.totalorder %s26, 1
      %p211 = por %p209, %p210
      %p212 = scmp.ne.s32.totalorder %s201, %s202
      %p213 = scmp.eq.s32.totalorder %s26, 0
      %p214 = por %p212, %p213
      %p215 = scmp.ne.s32.totalorder %s201, %s202
      %p216 = scmp.eq.s32.totalorder %s27, 1
      %p217 = por %p215, %p216
      %p219 = scmp.ne.s32.totalorder %s202, %s218
      %p220 = scmp.eq.s32.totalorder %s27, 0
      %p221 = por %p219, %p220
      %s222 = ssub.s32 %s28, %s40
      %p223 = scmp.eq.s32.totalorder %s222, 0
      %s225 = sadd.s32 %s224, 1
      %s226 = scalar_select %p223, %s224, %s225
      %p229 = pneg %p223
      %p230 = scmp.eq.s32.totalorder %s21, 1
      %p231 = por %p229, %p230
      %p232 = scmp.ne.s32.totalorder %s224, %s227
      %p233 = scmp.eq.s32.totalorder %s21, 0
      %p234 = por %p232, %p233
      %p235 = scmp.ne.s32.totalorder %s224, %s227
      %p236 = scmp.eq.s32.totalorder %s26, 1
      %p237 = por %p235, %p236
      %p238 = scmp.ne.s32.totalorder %s227, %s228
      %p239 = scmp.eq.s32.totalorder %s26, 0
      %p240 = por %p238, %p239
      %p241 = scmp.ne.s32.totalorder %s227, %s228
      %p242 = scmp.eq.s32.totalorder %s27, 1
      %p243 = por %p241, %p242
      %p245 = scmp.ne.s32.totalorder %s228, %s244
      %p246 = scmp.eq.s32.totalorder %s27, 0
      %p247 = por %p245, %p246
      %p248 = scmp.le.s32.totalorder 1, %s21
      %p249 = scmp.lt.s32.totalorder %s21, 3
      %p250 = pnand %p248, %p249
      %p251 = pneg %p250
      // Predicated region
      $region9: #{autoencoder_forward.1} parent=5 // pred_check
        _
      $region10: #{autoencoder_forward.1} parent=5 // pred_check_branch
        %253 = sbr.rel (%p250) target = $region12
      $region11: #{autoencoder_forward.1} parent=5 // pred_region
        %s254 = ssub.s32 %s21, 1
        // Predicated region
        $region13: #{autoencoder_forward.1} parent=11 // pred_check
          %p255 = pneg %p85
        $region14: #{autoencoder_forward.1} parent=11 // pred_check_branch
          %257 = sbr.rel (%p255) target = $region16
        $region15: #{autoencoder_forward.1} parent=11 // pred_region
          %s258 = smul.u32 4, %s31
          %s260 = ssub.s32 16384, 16384
          %261 = vsyncadd [#allocation7], %s260
          %s262 = smul.addr %s258, 128
          %s263 = scalar_lea.hbm %s1, %s262
          %s264 = sshll.u32 [#allocation6], 4
          %s265 = int_to_ptr.vmem [resolvable:$true] %s264
          %270 = dma.hbm_to_vmem [thread:$0]  %s263, 16384, %s265, [#allocation7], 512, 512, 32
        $region16: #{autoencoder_forward.1} parent=11 // pred_fallthru
          _
        // Predicated region
        $region17: #{autoencoder_forward.1} parent=11 // pred_check
          %p271 = pneg %p111
        $region18: #{autoencoder_forward.1} parent=11 // pred_check_branch
          %273 = sbr.rel (%p271) target = $region20
        $region19: #{autoencoder_forward.1} parent=11 // pred_region
          %s274 = smul.u32 4, %s31
          %p275 = scmp.lt.s32.totalorder %s274, 3
          %s276 = scalar_select %p275, %s274, 3
          %s277 = scalar_lea.vmem %s2, %s276
          %s278 = smul.u32 4, %s31
        $region20: #{autoencoder_forward.1} parent=11 // pred_fallthru
          _
        // Predicated region
        $region21: #{autoencoder_forward.1} parent=11 // pred_check
          %p279 = pneg %p137
        $region22: #{autoencoder_forward.1} parent=11 // pred_check_branch
          %281 = sbr.rel (%p279) target = $region24
        $region23: #{autoencoder_forward.1} parent=11 // pred_region
          %s282 = smul.u32 64, %s31
          %s284 = ssub.s32 16384, 16384
          %285 = vsyncadd [#allocation7], %s284
          %s286 = smul.addr %s282, 2
          %s287 = smul.addr %s286, 128
          %s288 = scalar_lea.hbm %s3, %s287
          %s289 = sshll.u32 [#allocation8], 4
          %s290 = int_to_ptr.vmem [resolvable:$true] %s289
          %295 = dma.hbm_to_vmem [thread:$0]  %s288, 16384, %s290, [#allocation7], 256, 256, 16
        $region24: #{autoencoder_forward.1} parent=11 // pred_fallthru
          _
        // Predicated region
        $region25: #{autoencoder_forward.1} parent=11 // pred_check
          %p296 = pneg %p158
        $region26: #{autoencoder_forward.1} parent=11 // pred_check_branch
          %298 = sbr.rel (%p296) target = $region28
        $region27: #{autoencoder_forward.1} parent=11 // pred_region
          _
        $region28: #{autoencoder_forward.1} parent=11 // pred_fallthru
          _
      $region12: #{autoencoder_forward.1} parent=5 // pred_fallthru
        _
      %p299 = scmp.lt.s32.totalorder %s21, 2
      // Predicated region
      $region29: #{autoencoder_forward.1} parent=5 // pred_check
        %p300 = pneg %p299
      $region30: #{autoencoder_forward.1} parent=5 // pred_check_branch
        %302 = sbr.rel (%p300) target = $region32
      $region31: #{autoencoder_forward.1} parent=5 // pred_region
        // Predicated region
        $region33: #{autoencoder_forward.1} parent=31 // pred_check
          %p303 = pneg %p53
        $region34: #{autoencoder_forward.1} parent=31 // pred_check_branch
          %305 = sbr.rel (%p303) target = $region36
        $region35: #{autoencoder_forward.1} parent=31 // pred_region
          %s306 = sand.u32 %s43, 1
          %s307 = scalar_lea.sflag [#allocation4], %s306
          %s308 = sand.u32 %s43, 1
          %s309 = smul.addr %s308, 512
          %s310 = scalar_lea.vmem [#allocation3], %s309
          %s311 = smul.u32 32, %s28
          %s313 = ssub.s32 8192, 8192
          %314 = vsyncadd %s307, %s313
          %s315 = smul.addr %s311, 2
          %s316 = smul.addr %s315, 128
          %s317 = scalar_lea.hbm %s0, %s316
          %s318 = sshll.u32 %s310, 4
          %s319 = int_to_ptr.vmem [resolvable:$true] %s318
          %324 = dma.hbm_to_vmem [thread:$0]  %s317, 8192, %s319, %s307, 256, 256, 16
        $region36: #{autoencoder_forward.1} parent=31 // pred_fallthru
          _
      $region32: #{autoencoder_forward.1} parent=5 // pred_fallthru
        _
      %p325 = scmp.le.s32.totalorder 1, %s21
      %p326 = scmp.lt.s32.totalorder %s21, 3
      %p327 = pnand %p325, %p326
      %p328 = pneg %p327
      // Predicated region
      $region37: #{autoencoder_forward.1} parent=5 // pred_check
        _
      $region38: #{autoencoder_forward.1} parent=5 // pred_check_branch
        %330 = sbr.rel (%p327) target = $region40
      $region39: #{autoencoder_forward.1} parent=5 // pred_region
        %s331 = ssub.s32 %s21, 1
        %s332 = sand.u32 %s46, 1
        %s333 = scalar_lea.sflag [#allocation4], %s332
        %s334 = sand.u32 %s46, 1
        %s335 = smul.addr %s334, 512
        %s336 = scalar_lea.vmem [#allocation3], %s335
        // Predicated region
        $region41: #{autoencoder_forward.1} parent=39 // pred_check
          %p337 = pneg %p59
        $region42: #{autoencoder_forward.1} parent=39 // pred_check_branch
          %339 = sbr.rel (%p337) target = $region44
        $region43: #{autoencoder_forward.1} parent=39 // pred_region
          %340 = dma.done %s333, 8192
        $region44: #{autoencoder_forward.1} parent=39 // pred_fallthru
          _
        // Predicated region
        $region45: #{autoencoder_forward.1} parent=39 // pred_check
          %p341 = pneg %p85
        $region46: #{autoencoder_forward.1} parent=39 // pred_check_branch
          %343 = sbr.rel (%p341) target = $region48
        $region47: #{autoencoder_forward.1} parent=39 // pred_region
          %344 = dma.done [#allocation7], 16384
        $region48: #{autoencoder_forward.1} parent=39 // pred_fallthru
          _
        // Predicated region
        $region49: #{autoencoder_forward.1} parent=39 // pred_check
          %p345 = pneg %p137
        $region50: #{autoencoder_forward.1} parent=39 // pred_check_branch
          %347 = sbr.rel (%p345) target = $region52
        $region51: #{autoencoder_forward.1} parent=39 // pred_region
          %348 = dma.done [#allocation7], 16384
        $region52: #{autoencoder_forward.1} parent=39 // pred_fallthru
          _
        %s349 = sand.u32 %s46, 1
        %s350 = scalar_lea.sflag [#allocation4], %s349
        %s351 = sand.u32 %s46, 1
        %s352 = smul.addr %s351, 512
        %s353 = scalar_lea.vmem [#allocation3], %s352
        %p354 = pneg %p59
        %p355 = pneg %p56
        %p356 = pneg %p85
        %p357 = pneg %p82
        %s358 = smul.u32 4, %s31
        %p359 = scmp.lt.s32.totalorder %s358, 3
        %s360 = scalar_select %p359, %s358, 3
        %s361 = scalar_lea.vmem %s2, %s360
        %p362 = pneg %p111
        %p363 = pneg %p108
        %p364 = pneg %p137
        %p365 = pneg %p134
        %p366 = pneg %p158
        %p367 = pneg %p155
        %p368 = pneg %p186
        %p369 = pneg %p183
        %s370 = sand.u32 %s173, 1
        %s371 = scalar_lea.sflag [#allocation5], %s370
        %s372 = sand.u32 %s173, 1
        %s373 = smul.addr %s372, 1024
        %s374 = scalar_lea.vmem [#allocation9], %s373
        %p375 = pneg %p214
        %p376 = pneg %p211
        %s377 = smul.u32 4, %s31
        %p378 = scmp.lt.s32.totalorder %s30, 1
        %s379 = scalar_select %p378, %s30, 1
        %p380 = scmp.lt.s32.totalorder %s377, 3
        %s381 = scalar_select %p380, %s377, 3
        %s382 = smul.addr %s379, 4
        %s383 = sadd.s32 %s381, %s382
        %s384 = smul.addr %s383, 8
        %s385 = scalar_lea.vmem %s6, %s384
        %p386 = pneg %p240
        %p387 = pneg %p237
        %p388 = scmp.lt.s32.totalorder %s30, 1
        %s389 = scalar_select %p388, %s30, 1
        %s390 = smul.addr %s389, 2
        %s391 = smul.addr %s390, 8
        %s392 = scalar_lea.vmem %s7, %s391
        %s393 = smul.u32 32, %s30
        %s394 = smul.u32 4, %s31
        %s395 = smul.u32 4, %s31
        %p396 = scmp.lt.s32.totalorder %s395, 3
        %s397 = scalar_select %p396, %s395, 3
        %s398 = scalar_lea.vmem %s2, %s397
        %s399 = smul.u32 4, %s31
        %s400 = smul.u32 64, %s31
        %s401 = smul.u32 32, %s30
        %s402 = smul.u32 4, %s31
        %s403 = smul.u32 4, %s31
        %p404 = scmp.lt.s32.totalorder %s30, 1
        %s405 = scalar_select %p404, %s30, 1
        %p406 = scmp.lt.s32.totalorder %s403, 3
        %s407 = scalar_select %p406, %s403, 3
        %s408 = smul.addr %s405, 4
        %s409 = sadd.s32 %s407, %s408
        %s410 = smul.addr %s409, 8
        %s411 = scalar_lea.vmem %s6, %s410
        %s412 = smul.u32 4, %s31
        %p413 = scmp.lt.s32.totalorder %s30, 1
        %s414 = scalar_select %p413, %s30, 1
        %s415 = smul.addr %s414, 2
        %s416 = smul.addr %s415, 8
        %s417 = scalar_lea.vmem %s7, %s416
        %v418 = vld [vmem:[%s336] sm:$0xff]
        %v419 = vld [vmem:[%s336 + $0x8] sm:$0xff]
        %v420 = vld [vmem:[%s336 + $0x10] sm:$0xff]
        %v421 = vld [vmem:[%s336 + $0x18] sm:$0xff]
        %v422 = vld [vmem:[%s336 + $0x20] sm:$0xff]
        %v423 = vld [vmem:[%s336 + $0x28] sm:$0xff]
        %v424 = vld [vmem:[%s336 + $0x30] sm:$0xff]
        %v425 = vld [vmem:[%s336 + $0x38] sm:$0xff]
        %v426 = vld [vmem:[%s336 + $0x40] sm:$0xff]
        %v427 = vld [vmem:[%s336 + $0x48] sm:$0xff]
        %v428 = vld [vmem:[%s336 + $0x50] sm:$0xff]
        %v429 = vld [vmem:[%s336 + $0x58] sm:$0xff]
        %v430 = vld [vmem:[%s336 + $0x60] sm:$0xff]
        %v431 = vld [vmem:[%s336 + $0x68] sm:$0xff]
        %v432 = vld [vmem:[%s336 + $0x70] sm:$0xff]
        %v433 = vld [vmem:[%s336 + $0x78] sm:$0xff]
        %v434 = vld [vmem:[%s336 + $0x80] sm:$0xff]
        %v435 = vld [vmem:[%s336 + $0x88] sm:$0xff]
        %v436 = vld [vmem:[%s336 + $0x90] sm:$0xff]
        %v437 = vld [vmem:[%s336 + $0x98] sm:$0xff]
        %v438 = vld [vmem:[%s336 + $0xa0] sm:$0xff]
        %v439 = vld [vmem:[%s336 + $0xa8] sm:$0xff]
        %v440 = vld [vmem:[%s336 + $0xb0] sm:$0xff]
        %v441 = vld [vmem:[%s336 + $0xb8] sm:$0xff]
        %v442 = vld [vmem:[%s336 + $0xc0] sm:$0xff]
        %v443 = vld [vmem:[%s336 + $0xc8] sm:$0xff]
        %v444 = vld [vmem:[%s336 + $0xd0] sm:$0xff]
        %v445 = vld [vmem:[%s336 + $0xd8] sm:$0xff]
        %v446 = vld [vmem:[%s336 + $0xe0] sm:$0xff]
        %v447 = vld [vmem:[%s336 + $0xe8] sm:$0xff]
        %v448 = vld [vmem:[%s336 + $0xf0] sm:$0xff]
        %v449 = vld [vmem:[%s336 + $0xf8] sm:$0xff]
        %v450 = vld [vmem:[%s336 + $0x100] sm:$0xff]
        %v451 = vld [vmem:[%s336 + $0x108] sm:$0xff]
        %v452 = vld [vmem:[%s336 + $0x110] sm:$0xff]
        %v453 = vld [vmem:[%s336 + $0x118] sm:$0xff]
        %v454 = vld [vmem:[%s336 + $0x120] sm:$0xff]
        %v455 = vld [vmem:[%s336 + $0x128] sm:$0xff]
        %v456 = vld [vmem:[%s336 + $0x130] sm:$0xff]
        %v457 = vld [vmem:[%s336 + $0x138] sm:$0xff]
        %v458 = vld [vmem:[%s336 + $0x140] sm:$0xff]
        %v459 = vld [vmem:[%s336 + $0x148] sm:$0xff]
        %v460 = vld [vmem:[%s336 + $0x150] sm:$0xff]
        %v461 = vld [vmem:[%s336 + $0x158] sm:$0xff]
        %v462 = vld [vmem:[%s336 + $0x160] sm:$0xff]
        %v463 = vld [vmem:[%s336 + $0x168] sm:$0xff]
        %v464 = vld [vmem:[%s336 + $0x170] sm:$0xff]
        %v465 = vld [vmem:[%s336 + $0x178] sm:$0xff]
        %v466 = vld [vmem:[%s336 + $0x180] sm:$0xff]
        %v467 = vld [vmem:[%s336 + $0x188] sm:$0xff]
        %v468 = vld [vmem:[%s336 + $0x190] sm:$0xff]
        %v469 = vld [vmem:[%s336 + $0x198] sm:$0xff]
        %v470 = vld [vmem:[%s336 + $0x1a0] sm:$0xff]
        %v471 = vld [vmem:[%s336 + $0x1a8] sm:$0xff]
        %v472 = vld [vmem:[%s336 + $0x1b0] sm:$0xff]
        %v473 = vld [vmem:[%s336 + $0x1b8] sm:$0xff]
        %v474 = vld [vmem:[%s336 + $0x1c0] sm:$0xff]
        %v475 = vld [vmem:[%s336 + $0x1c8] sm:$0xff]
        %v476 = vld [vmem:[%s336 + $0x1d0] sm:$0xff]
        %v477 = vld [vmem:[%s336 + $0x1d8] sm:$0xff]
        %v478 = vld [vmem:[%s336 + $0x1e0] sm:$0xff]
        %v479 = vld [vmem:[%s336 + $0x1e8] sm:$0xff]
        %v480 = vld [vmem:[%s336 + $0x1f0] sm:$0xff]
        %v481 = vld [vmem:[%s336 + $0x1f8] sm:$0xff]
        %v482 = vld [vmem:[%s4] sm:$0x3]
        %v484 = vlaneseq
        %v485 = vshrl.u32 %v484, 7
        %v486 = vsub.s32 0, %v485
        %v487 = vrot.slane %v482, %v486
        %v488 = vlaneseq
        %v489 = vshrl.u32 %v488, 7
        %v490 = vsub.s32 1, %v489
        %v491 = vrot.slane %v482, %v490
        %v494 = vsub.f32 %v418, %v487
        %v495 = vsub.f32 %v419, %v491
        %v496 = vsub.f32 %v420, %v487
        %v497 = vsub.f32 %v421, %v491
        %v498 = vsub.f32 %v422, %v487
        %v499 = vsub.f32 %v423, %v491
        %v500 = vsub.f32 %v424, %v487
        %v501 = vsub.f32 %v425, %v491
        %v502 = vsub.f32 %v426, %v487
        %v503 = vsub.f32 %v427, %v491
        %v504 = vsub.f32 %v428, %v487
        %v505 = vsub.f32 %v429, %v491
        %v506 = vsub.f32 %v430, %v487
        %v507 = vsub.f32 %v431, %v491
        %v508 = vsub.f32 %v432, %v487
        %v509 = vsub.f32 %v433, %v491
        %v510 = vsub.f32 %v434, %v487
        %v511 = vsub.f32 %v435, %v491
        %v512 = vsub.f32 %v436, %v487
        %v513 = vsub.f32 %v437, %v491
        %v514 = vsub.f32 %v438, %v487
        %v515 = vsub.f32 %v439, %v491
        %v516 = vsub.f32 %v440, %v487
        %v517 = vsub.f32 %v441, %v491
        %v518 = vsub.f32 %v442, %v487
        %v519 = vsub.f32 %v443, %v491
        %v520 = vsub.f32 %v444, %v487
        %v521 = vsub.f32 %v445, %v491
        %v522 = vsub.f32 %v446, %v487
        %v523 = vsub.f32 %v447, %v491
        %v524 = vsub.f32 %v448, %v487
        %v525 = vsub.f32 %v449, %v491
        %v526 = vsub.f32 %v450, %v487
        %v527 = vsub.f32 %v451, %v491
        %v528 = vsub.f32 %v452, %v487
        %v529 = vsub.f32 %v453, %v491
        %v530 = vsub.f32 %v454, %v487
        %v531 = vsub.f32 %v455, %v491
        %v532 = vsub.f32 %v456, %v487
        %v533 = vsub.f32 %v457, %v491
        %v534 = vsub.f32 %v458, %v487
        %v535 = vsub.f32 %v459, %v491
        %v536 = vsub.f32 %v460, %v487
        %v537 = vsub.f32 %v461, %v491
        %v538 = vsub.f32 %v462, %v487
        %v539 = vsub.f32 %v463, %v491
        %v540 = vsub.f32 %v464, %v487
        %v541 = vsub.f32 %v465, %v491
        %v542 = vsub.f32 %v466, %v487
        %v543 = vsub.f32 %v467, %v491
        %v544 = vsub.f32 %v468, %v487
        %v545 = vsub.f32 %v469, %v491
        %v546 = vsub.f32 %v470, %v487
        %v547 = vsub.f32 %v471, %v491
        %v548 = vsub.f32 %v472, %v487
        %v549 = vsub.f32 %v473, %v491
        %v550 = vsub.f32 %v474, %v487
        %v551 = vsub.f32 %v475, %v491
        %v552 = vsub.f32 %v476, %v487
        %v553 = vsub.f32 %v477, %v491
        %v554 = vsub.f32 %v478, %v487
        %v555 = vsub.f32 %v479, %v491
        %v556 = vsub.f32 %v480, %v487
        %v557 = vsub.f32 %v481, %v491
        %v558 = vld [vmem:[#allocation6] sm:$0xff]
        %v559 = vld [vmem:[#allocation6 + $0x8] sm:$0xff]
        %v560 = vld [vmem:[#allocation6 + $0x10] sm:$0xff]
        %v561 = vld [vmem:[#allocation6 + $0x18] sm:$0xff]
        %v562 = vld [vmem:[#allocation6 + $0x20] sm:$0xff]
        %v563 = vld [vmem:[#allocation6 + $0x28] sm:$0xff]
        %v564 = vld [vmem:[#allocation6 + $0x30] sm:$0xff]
        %v565 = vld [vmem:[#allocation6 + $0x38] sm:$0xff]
        %v566 = vld [vmem:[#allocation6 + $0x40] sm:$0xff]
        %v567 = vld [vmem:[#allocation6 + $0x48] sm:$0xff]
        %v568 = vld [vmem:[#allocation6 + $0x50] sm:$0xff]
        %v569 = vld [vmem:[#allocation6 + $0x58] sm:$0xff]
        %v570 = vld [vmem:[#allocation6 + $0x60] sm:$0xff]
        %v571 = vld [vmem:[#allocation6 + $0x68] sm:$0xff]
        %v572 = vld [vmem:[#allocation6 + $0x70] sm:$0xff]
        %v573 = vld [vmem:[#allocation6 + $0x78] sm:$0xff]
        %v574 = vld [vmem:[#allocation6 + $0x80] sm:$0xff]
        %v575 = vld [vmem:[#allocation6 + $0x88] sm:$0xff]
        %v576 = vld [vmem:[#allocation6 + $0x90] sm:$0xff]
        %v577 = vld [vmem:[#allocation6 + $0x98] sm:$0xff]
        %v578 = vld [vmem:[#allocation6 + $0xa0] sm:$0xff]
        %v579 = vld [vmem:[#allocation6 + $0xa8] sm:$0xff]
        %v580 = vld [vmem:[#allocation6 + $0xb0] sm:$0xff]
        %v581 = vld [vmem:[#allocation6 + $0xb8] sm:$0xff]
        %v582 = vld [vmem:[#allocation6 + $0xc0] sm:$0xff]
        %v583 = vld [vmem:[#allocation6 + $0xc8] sm:$0xff]
        %v584 = vld [vmem:[#allocation6 + $0xd0] sm:$0xff]
        %v585 = vld [vmem:[#allocation6 + $0xd8] sm:$0xff]
        %v586 = vld [vmem:[#allocation6 + $0xe0] sm:$0xff]
        %v587 = vld [vmem:[#allocation6 + $0xe8] sm:$0xff]
        %v588 = vld [vmem:[#allocation6 + $0xf0] sm:$0xff]
        %v589 = vld [vmem:[#allocation6 + $0xf8] sm:$0xff]
        %v590 = vld [vmem:[#allocation6 + $0x100] sm:$0xff]
        %v591 = vld [vmem:[#allocation6 + $0x108] sm:$0xff]
        %v592 = vld [vmem:[#allocation6 + $0x110] sm:$0xff]
        %v593 = vld [vmem:[#allocation6 + $0x118] sm:$0xff]
        %v594 = vld [vmem:[#allocation6 + $0x120] sm:$0xff]
        %v595 = vld [vmem:[#allocation6 + $0x128] sm:$0xff]
        %v596 = vld [vmem:[#allocation6 + $0x130] sm:$0xff]
        %v597 = vld [vmem:[#allocation6 + $0x138] sm:$0xff]
        %v598 = vld [vmem:[#allocation6 + $0x140] sm:$0xff]
        %v599 = vld [vmem:[#allocation6 + $0x148] sm:$0xff]
        %v600 = vld [vmem:[#allocation6 + $0x150] sm:$0xff]
        %v601 = vld [vmem:[#allocation6 + $0x158] sm:$0xff]
        %v602 = vld [vmem:[#allocation6 + $0x160] sm:$0xff]
        %v603 = vld [vmem:[#allocation6 + $0x168] sm:$0xff]
        %v604 = vld [vmem:[#allocation6 + $0x170] sm:$0xff]
        %v605 = vld [vmem:[#allocation6 + $0x178] sm:$0xff]
        %v606 = vld [vmem:[#allocation6 + $0x180] sm:$0xff]
        %v607 = vld [vmem:[#allocation6 + $0x188] sm:$0xff]
        %v608 = vld [vmem:[#allocation6 + $0x190] sm:$0xff]
        %v609 = vld [vmem:[#allocation6 + $0x198] sm:$0xff]
        %v610 = vld [vmem:[#allocation6 + $0x1a0] sm:$0xff]
        %v611 = vld [vmem:[#allocation6 + $0x1a8] sm:$0xff]
        %v612 = vld [vmem:[#allocation6 + $0x1b0] sm:$0xff]
        %v613 = vld [vmem:[#allocation6 + $0x1b8] sm:$0xff]
        %v614 = vld [vmem:[#allocation6 + $0x1c0] sm:$0xff]
        %v615 = vld [vmem:[#allocation6 + $0x1c8] sm:$0xff]
        %v616 = vld [vmem:[#allocation6 + $0x1d0] sm:$0xff]
        %v617 = vld [vmem:[#allocation6 + $0x1d8] sm:$0xff]
        %v618 = vld [vmem:[#allocation6 + $0x1e0] sm:$0xff]
        %v619 = vld [vmem:[#allocation6 + $0x1e8] sm:$0xff]
        %v620 = vld [vmem:[#allocation6 + $0x1f0] sm:$0xff]
        %v621 = vld [vmem:[#allocation6 + $0x1f8] sm:$0xff]
        %v622 = vld [vmem:[#allocation6 + $0x200] sm:$0xff]
        %v623 = vld [vmem:[#allocation6 + $0x208] sm:$0xff]
        %v624 = vld [vmem:[#allocation6 + $0x210] sm:$0xff]
        %v625 = vld [vmem:[#allocation6 + $0x218] sm:$0xff]
        %v626 = vld [vmem:[#allocation6 + $0x220] sm:$0xff]
        %v627 = vld [vmem:[#allocation6 + $0x228] sm:$0xff]
        %v628 = vld [vmem:[#allocation6 + $0x230] sm:$0xff]
        %v629 = vld [vmem:[#allocation6 + $0x238] sm:$0xff]
        %v630 = vld [vmem:[#allocation6 + $0x240] sm:$0xff]
        %v631 = vld [vmem:[#allocation6 + $0x248] sm:$0xff]
        %v632 = vld [vmem:[#allocation6 + $0x250] sm:$0xff]
        %v633 = vld [vmem:[#allocation6 + $0x258] sm:$0xff]
        %v634 = vld [vmem:[#allocation6 + $0x260] sm:$0xff]
        %v635 = vld [vmem:[#allocation6 + $0x268] sm:$0xff]
        %v636 = vld [vmem:[#allocation6 + $0x270] sm:$0xff]
        %v637 = vld [vmem:[#allocation6 + $0x278] sm:$0xff]
        %v638 = vld [vmem:[#allocation6 + $0x280] sm:$0xff]
        %v639 = vld [vmem:[#allocation6 + $0x288] sm:$0xff]
        %v640 = vld [vmem:[#allocation6 + $0x290] sm:$0xff]
        %v641 = vld [vmem:[#allocation6 + $0x298] sm:$0xff]
        %v642 = vld [vmem:[#allocation6 + $0x2a0] sm:$0xff]
        %v643 = vld [vmem:[#allocation6 + $0x2a8] sm:$0xff]
        %v644 = vld [vmem:[#allocation6 + $0x2b0] sm:$0xff]
        %v645 = vld [vmem:[#allocation6 + $0x2b8] sm:$0xff]
        %v646 = vld [vmem:[#allocation6 + $0x2c0] sm:$0xff]
        %v647 = vld [vmem:[#allocation6 + $0x2c8] sm:$0xff]
        %v648 = vld [vmem:[#allocation6 + $0x2d0] sm:$0xff]
        %v649 = vld [vmem:[#allocation6 + $0x2d8] sm:$0xff]
        %v650 = vld [vmem:[#allocation6 + $0x2e0] sm:$0xff]
        %v651 = vld [vmem:[#allocation6 + $0x2e8] sm:$0xff]
        %v652 = vld [vmem:[#allocation6 + $0x2f0] sm:$0xff]
        %v653 = vld [vmem:[#allocation6 + $0x2f8] sm:$0xff]
        %v654 = vld [vmem:[#allocation6 + $0x300] sm:$0xff]
        %v655 = vld [vmem:[#allocation6 + $0x308] sm:$0xff]
        %v656 = vld [vmem:[#allocation6 + $0x310] sm:$0xff]
        %v657 = vld [vmem:[#allocation6 + $0x318] sm:$0xff]
        %v658 = vld [vmem:[#allocation6 + $0x320] sm:$0xff]
        %v659 = vld [vmem:[#allocation6 + $0x328] sm:$0xff]
        %v660 = vld [vmem:[#allocation6 + $0x330] sm:$0xff]
        %v661 = vld [vmem:[#allocation6 + $0x338] sm:$0xff]
        %v662 = vld [vmem:[#allocation6 + $0x340] sm:$0xff]
        %v663 = vld [vmem:[#allocation6 + $0x348] sm:$0xff]
        %v664 = vld [vmem:[#allocation6 + $0x350] sm:$0xff]
        %v665 = vld [vmem:[#allocation6 + $0x358] sm:$0xff]
        %v666 = vld [vmem:[#allocation6 + $0x360] sm:$0xff]
        %v667 = vld [vmem:[#allocation6 + $0x368] sm:$0xff]
        %v668 = vld [vmem:[#allocation6 + $0x370] sm:$0xff]
        %v669 = vld [vmem:[#allocation6 + $0x378] sm:$0xff]
        %v670 = vld [vmem:[#allocation6 + $0x380] sm:$0xff]
        %v671 = vld [vmem:[#allocation6 + $0x388] sm:$0xff]
        %v672 = vld [vmem:[#allocation6 + $0x390] sm:$0xff]
        %v673 = vld [vmem:[#allocation6 + $0x398] sm:$0xff]
        %v674 = vld [vmem:[#allocation6 + $0x3a0] sm:$0xff]
        %v675 = vld [vmem:[#allocation6 + $0x3a8] sm:$0xff]
        %v676 = vld [vmem:[#allocation6 + $0x3b0] sm:$0xff]
        %v677 = vld [vmem:[#allocation6 + $0x3b8] sm:$0xff]
        %v678 = vld [vmem:[#allocation6 + $0x3c0] sm:$0xff]
        %v679 = vld [vmem:[#allocation6 + $0x3c8] sm:$0xff]
        %v680 = vld [vmem:[#allocation6 + $0x3d0] sm:$0xff]
        %v681 = vld [vmem:[#allocation6 + $0x3d8] sm:$0xff]
        %v682 = vld [vmem:[#allocation6 + $0x3e0] sm:$0xff]
        %v683 = vld [vmem:[#allocation6 + $0x3e8] sm:$0xff]
        %v684 = vld [vmem:[#allocation6 + $0x3f0] sm:$0xff]
        %v685 = vld [vmem:[#allocation6 + $0x3f8] sm:$0xff]
        %v686 = vld [vmem:[%s398] sm:$0xf]
        %v688 = vlaneseq
        %v689 = vshrl.u32 %v688, 7
        %v690 = vsub.s32 0, %v689
        %v691 = vrot.slane %v686, %v690
        %v692 = vlaneseq
        %v693 = vshrl.u32 %v692, 7
        %v694 = vsub.s32 1, %v693
        %v695 = vrot.slane %v686, %v694
        %v696 = vlaneseq
        %v697 = vshrl.u32 %v696, 7
        %v698 = vsub.s32 2, %v697
        %v699 = vrot.slane %v686, %v698
        %v700 = vlaneseq
        %v701 = vshrl.u32 %v700, 7
        %v702 = vsub.s32 3, %v701
        %v703 = vrot.slane %v686, %v702
        %708 = vmatprep.subr.mxu0 %v559
        %709 = vmatpush1.msra.mxu0 %v558
        %710 = vmatprep.subr.mxu0 %v563
        %711 = vmatpush1.msra.mxu0 %v562
        %712 = vmatprep.subr.mxu0 %v567
        %713 = vmatpush1.msra.mxu0 %v566
        %714 = vmatprep.subr.mxu0 %v571
        %715 = vmatpush1.msra.mxu0 %v570
        %716 = vmatprep.subr.mxu0 %v575
        %717 = vmatpush1.msra.mxu0 %v574
        %718 = vmatprep.subr.mxu0 %v579
        %719 = vmatpush1.msra.mxu0 %v578
        %720 = vmatprep.subr.mxu0 %v583
        %721 = vmatpush1.msra.mxu0 %v582
        %722 = vmatprep.subr.mxu0 %v587
        %723 = vmatpush1.msra.mxu0 %v586
        %724 = vmatprep.subr.mxu0 %v591
        %725 = vmatpush1.msra.mxu0 %v590
        %726 = vmatprep.subr.mxu0 %v595
        %727 = vmatpush1.msra.mxu0 %v594
        %728 = vmatprep.subr.mxu0 %v599
        %729 = vmatpush1.msra.mxu0 %v598
        %730 = vmatprep.subr.mxu0 %v603
        %731 = vmatpush1.msra.mxu0 %v602
        %732 = vmatprep.subr.mxu0 %v607
        %733 = vmatpush1.msra.mxu0 %v606
        %734 = vmatprep.subr.mxu0 %v611
        %735 = vmatpush1.msra.mxu0 %v610
        %736 = vmatprep.subr.mxu0 %v615
        %737 = vmatpush1.msra.mxu0 %v614
        %738 = vmatprep.subr.mxu0 %v619
        %739 = vmatpush1.msra.mxu0 %v618
        %740 = vmatprep.subr.mxu0 %v623
        %741 = vmatpush1.msra.mxu0 %v622
        %742 = vmatprep.subr.mxu0 %v627
        %743 = vmatpush1.msra.mxu0 %v626
        %744 = vmatprep.subr.mxu0 %v631
        %745 = vmatpush1.msra.mxu0 %v630
        %746 = vmatprep.subr.mxu0 %v635
        %747 = vmatpush1.msra.mxu0 %v634
        %748 = vmatprep.subr.mxu0 %v639
        %749 = vmatpush1.msra.mxu0 %v638
        %750 = vmatprep.subr.mxu0 %v643
        %751 = vmatpush1.msra.mxu0 %v642
        %752 = vmatprep.subr.mxu0 %v647
        %753 = vmatpush1.msra.mxu0 %v646
        %754 = vmatprep.subr.mxu0 %v651
        %755 = vmatpush1.msra.mxu0 %v650
        %756 = vmatprep.subr.mxu0 %v655
        %757 = vmatpush1.msra.mxu0 %v654
        %758 = vmatprep.subr.mxu0 %v659
        %759 = vmatpush1.msra.mxu0 %v658
        %760 = vmatprep.subr.mxu0 %v663
        %761 = vmatpush1.msra.mxu0 %v662
        %762 = vmatprep.subr.mxu0 %v667
        %763 = vmatpush1.msra.mxu0 %v666
        %764 = vmatprep.subr.mxu0 %v671
        %765 = vmatpush1.msra.mxu0 %v670
        %766 = vmatprep.subr.mxu0 %v675
        %767 = vmatpush1.msra.mxu0 %v674
        %768 = vmatprep.subr.mxu0 %v679
        %769 = vmatpush1.msra.mxu0 %v678
        %770 = vmatprep.subr.mxu0 %v683
        %771 = vmatpush1.msra.mxu0 %v682
        %772 = vmatprep.mubr.f32.mxu0 %v495
        %773 = vmatmul.mubr.f32.gmra.mrb[0].mxu0 %v494
        %v774 = vpop.f32.mrb[0].mxu0
        %v775 = vadd.f32 %v691, %v774
        %v776 = vpop.f32.mrb[0].mxu0
        %v777 = vadd.f32 %v695, %v776
        %778 = vmatprep.mubr.f32.mxu0 %v497
        %779 = vmatmul.mubr.f32.gmra.mrb[0].mxu0 %v496
        %v780 = vpop.f32.mrb[0].mxu0
        %v781 = vadd.f32 %v691, %v780
        %v782 = vpop.f32.mrb[0].mxu0
        %v783 = vadd.f32 %v695, %v782
        %784 = vmatprep.mubr.f32.mxu0 %v499
        %785 = vmatmul.mubr.f32.gmra.mrb[0].mxu0 %v498
        %v786 = vpop.f32.mrb[0].mxu0
        %v787 = vadd.f32 %v691, %v786
        %v788 = vpop.f32.mrb[0].mxu0
        %v789 = vadd.f32 %v695, %v788
        %790 = vmatprep.mubr.f32.mxu0 %v501
        %791 = vmatmul.mubr.f32.gmra.mrb[0].mxu0 %v500
        %v792 = vpop.f32.mrb[0].mxu0
        %v793 = vadd.f32 %v691, %v792
        %v794 = vpop.f32.mrb[0].mxu0
        %v795 = vadd.f32 %v695, %v794
        %796 = vmatprep.mubr.f32.mxu0 %v503
        %797 = vmatmul.mubr.f32.gmra.mrb[0].mxu0 %v502
        %v798 = vpop.f32.mrb[0].mxu0
        %v799 = vadd.f32 %v691, %v798
        %v800 = vpop.f32.mrb[0].mxu0
        %v801 = vadd.f32 %v695, %v800
        %802 = vmatprep.mubr.f32.mxu0 %v505
        %803 = vmatmul.mubr.f32.gmra.mrb[0].mxu0 %v504
        %v804 = vpop.f32.mrb[0].mxu0
        %v805 = vadd.f32 %v691, %v804
        %v806 = vpop.f32.mrb[0].mxu0
        %v807 = vadd.f32 %v695, %v806
        %808 = vmatprep.mubr.f32.mxu0 %v507
        %809 = vmatmul.mubr.f32.gmra.mrb[0].mxu0 %v506
        %v810 = vpop.f32.mrb[0].mxu0
        %v811 = vadd.f32 %v691, %v810
        %v812 = vpop.f32.mrb[0].mxu0
        %v813 = vadd.f32 %v695, %v812
        %814 = vmatprep.mubr.f32.mxu0 %v509
        %815 = vmatmul.mubr.f32.gmra.mrb[0].mxu0 %v508
        %v816 = vpop.f32.mrb[0].mxu0
        %v817 = vadd.f32 %v691, %v816
        %v818 = vpop.f32.mrb[0].mxu0
        %v819 = vadd.f32 %v695, %v818
        %820 = vmatprep.mubr.f32.mxu0 %v511
        %821 = vmatmul.mubr.f32.gmra.mrb[0].mxu0 %v510
        %v822 = vpop.f32.mrb[0].mxu0
        %v823 = vadd.f32 %v691, %v822
        %v824 = vpop.f32.mrb[0].mxu0
        %v825 = vadd.f32 %v695, %v824
        %826 = vmatprep.mubr.f32.mxu0 %v513
        %827 = vmatmul.mubr.f32.gmra.mrb[0].mxu0 %v512
        %v828 = vpop.f32.mrb[0].mxu0
        %v829 = vadd.f32 %v691, %v828
        %v830 = vpop.f32.mrb[0].mxu0
        %v831 = vadd.f32 %v695, %v830
        %832 = vmatprep.mubr.f32.mxu0 %v515
        %833 = vmatmul.mubr.f32.gmra.mrb[0].mxu0 %v514
        %v834 = vpop.f32.mrb[0].mxu0
        %v835 = vadd.f32 %v691, %v834
        %v836 = vpop.f32.mrb[0].mxu0
        %v837 = vadd.f32 %v695, %v836
        %838 = vmatprep.mubr.f32.mxu0 %v517
        %839 = vmatmul.mubr.f32.gmra.mrb[0].mxu0 %v516
        %v840 = vpop.f32.mrb[0].mxu0
        %v841 = vadd.f32 %v691, %v840
        %v842 = vpop.f32.mrb[0].mxu0
        %v843 = vadd.f32 %v695, %v842
        %844 = vmatprep.mubr.f32.mxu0 %v519
        %845 = vmatmul.mubr.f32.gmra.mrb[0].mxu0 %v518
        %v846 = vpop.f32.mrb[0].mxu0
        %v847 = vadd.f32 %v691, %v846
        %v848 = vpop.f32.mrb[0].mxu0
        %v849 = vadd.f32 %v695, %v848
        %850 = vmatprep.mubr.f32.mxu0 %v521
        %851 = vmatmul.mubr.f32.gmra.mrb[0].mxu0 %v520
        %v852 = vpop.f32.mrb[0].mxu0
        %v853 = vadd.f32 %v691, %v852
        %v854 = vpop.f32.mrb[0].mxu0
        %v855 = vadd.f32 %v695, %v854
        %856 = vmatprep.mubr.f32.mxu0 %v523
        %857 = vmatmul.mubr.f32.gmra.mrb[0].mxu0 %v522
        %v858 = vpop.f32.mrb[0].mxu0
        %v859 = vadd.f32 %v691, %v858
        %v860 = vpop.f32.mrb[0].mxu0
        %v861 = vadd.f32 %v695, %v860
        %862 = vmatprep.mubr.f32.mxu0 %v525
        %863 = vmatmul.mubr.f32.gmra.mrb[0].mxu0 %v524
        %v864 = vpop.f32.mrb[0].mxu0
        %v865 = vadd.f32 %v691, %v864
        %v866 = vpop.f32.mrb[0].mxu0
        %v867 = vadd.f32 %v695, %v866
        %868 = vmatprep.mubr.f32.mxu0 %v527
        %869 = vmatmul.mubr.f32.gmra.mrb[0].mxu0 %v526
        %v870 = vpop.f32.mrb[0].mxu0
        %v871 = vadd.f32 %v691, %v870
        %v872 = vpop.f32.mrb[0].mxu0
        %v873 = vadd.f32 %v695, %v872
        %874 = vmatprep.mubr.f32.mxu0 %v529
        %875 = vmatmul.mubr.f32.gmra.mrb[0].mxu0 %v528
        %v876 = vpop.f32.mrb[0].mxu0
        %v877 = vadd.f32 %v691, %v876
        %v878 = vpop.f32.mrb[0].mxu0
        %v879 = vadd.f32 %v695, %v878
        %880 = vmatprep.mubr.f32.mxu0 %v531
        %881 = vmatmul.mubr.f32.gmra.mrb[0].mxu0 %v530
        %v882 = vpop.f32.mrb[0].mxu0
        %v883 = vadd.f32 %v691, %v882
        %v884 = vpop.f32.mrb[0].mxu0
        %v885 = vadd.f32 %v695, %v884
        %886 = vmatprep.mubr.f32.mxu0 %v533
        %887 = vmatmul.mubr.f32.gmra.mrb[0].mxu0 %v532
        %v888 = vpop.f32.mrb[0].mxu0
        %v889 = vadd.f32 %v691, %v888
        %v890 = vpop.f32.mrb[0].mxu0
        %v891 = vadd.f32 %v695, %v890
        %892 = vmatprep.mubr.f32.mxu0 %v535
        %893 = vmatmul.mubr.f32.gmra.mrb[0].mxu0 %v534
        %v894 = vpop.f32.mrb[0].mxu0
        %v895 = vadd.f32 %v691, %v894
        %v896 = vpop.f32.mrb[0].mxu0
        %v897 = vadd.f32 %v695, %v896
        %898 = vmatprep.mubr.f32.mxu0 %v537
        %899 = vmatmul.mubr.f32.gmra.mrb[0].mxu0 %v536
        %v900 = vpop.f32.mrb[0].mxu0
        %v901 = vadd.f32 %v691, %v900
        %v902 = vpop.f32.mrb[0].mxu0
        %v903 = vadd.f32 %v695, %v902
        %904 = vmatprep.mubr.f32.mxu0 %v539
        %905 = vmatmul.mubr.f32.gmra.mrb[0].mxu0 %v538
        %v906 = vpop.f32.mrb[0].mxu0
        %v907 = vadd.f32 %v691, %v906
        %v908 = vpop.f32.mrb[0].mxu0
        %v909 = vadd.f32 %v695, %v908
        %910 = vmatprep.mubr.f32.mxu0 %v541
        %911 = vmatmul.mubr.f32.gmra.mrb[0].mxu0 %v540
        %v912 = vpop.f32.mrb[0].mxu0
        %v913 = vadd.f32 %v691, %v912
        %v914 = vpop.f32.mrb[0].mxu0
        %v915 = vadd.f32 %v695, %v914
        %916 = vmatprep.mubr.f32.mxu0 %v543
        %917 = vmatmul.mubr.f32.gmra.mrb[0].mxu0 %v542
        %v918 = vpop.f32.mrb[0].mxu0
        %v919 = vadd.f32 %v691, %v918
        %v920 = vpop.f32.mrb[0].mxu0
        %v921 = vadd.f32 %v695, %v920
        %922 = vmatprep.mubr.f32.mxu0 %v545
        %923 = vmatmul.mubr.f32.gmra.mrb[0].mxu0 %v544
        %v924 = vpop.f32.mrb[0].mxu0
        %v925 = vadd.f32 %v691, %v924
        %v926 = vpop.f32.mrb[0].mxu0
        %v927 = vadd.f32 %v695, %v926
        %928 = vmatprep.mubr.f32.mxu0 %v547
        %929 = vmatmul.mubr.f32.gmra.mrb[0].mxu0 %v546
        %v930 = vpop.f32.mrb[0].mxu0
        %v931 = vadd.f32 %v691, %v930
        %v932 = vpop.f32.mrb[0].mxu0
        %v933 = vadd.f32 %v695, %v932
        %934 = vmatprep.mubr.f32.mxu0 %v549
        %935 = vmatmul.mubr.f32.gmra.mrb[0].mxu0 %v548
        %v936 = vpop.f32.mrb[0].mxu0
        %v937 = vadd.f32 %v691, %v936
        %v938 = vpop.f32.mrb[0].mxu0
        %v939 = vadd.f32 %v695, %v938
        %940 = vmatprep.mubr.f32.mxu0 %v551
        %941 = vmatmul.mubr.f32.gmra.mrb[0].mxu0 %v550
        %v942 = vpop.f32.mrb[0].mxu0
        %v943 = vadd.f32 %v691, %v942
        %v944 = vpop.f32.mrb[0].mxu0
        %v945 = vadd.f32 %v695, %v944
        %946 = vmatprep.mubr.f32.mxu0 %v553
        %947 = vmatmul.mubr.f32.gmra.mrb[0].mxu0 %v552
        %v948 = vpop.f32.mrb[0].mxu0
        %v949 = vadd.f32 %v691, %v948
        %v950 = vpop.f32.mrb[0].mxu0
        %v951 = vadd.f32 %v695, %v950
        %952 = vmatprep.mubr.f32.mxu0 %v555
        %953 = vmatmul.mubr.f32.gmra.mrb[0].mxu0 %v554
        %v954 = vpop.f32.mrb[0].mxu0
        %v955 = vadd.f32 %v691, %v954
        %v956 = vpop.f32.mrb[0].mxu0
        %v957 = vadd.f32 %v695, %v956
        %958 = vmatprep.mubr.f32.mxu0 %v557
        %959 = vmatmul.mubr.f32.gmra.mrb[0].mxu0 %v556
        %v960 = vpop.f32.mrb[0].mxu0
        %v961 = vadd.f32 %v691, %v960
        %v962 = vpop.f32.mrb[0].mxu0
        %v963 = vadd.f32 %v695, %v962
        %964 = vdwg.mxu0
        %965 = vmatprep.subr.mxu0 %v561
        %966 = vmatpush1.msra.mxu0 %v560
        %967 = vmatprep.subr.mxu0 %v565
        %968 = vmatpush1.msra.mxu0 %v564
        %969 = vmatprep.subr.mxu0 %v569
        %970 = vmatpush1.msra.mxu0 %v568
        %971 = vmatprep.subr.mxu0 %v573
        %972 = vmatpush1.msra.mxu0 %v572
        %973 = vmatprep.subr.mxu0 %v577
        %974 = vmatpush1.msra.mxu0 %v576
        %975 = vmatprep.subr.mxu0 %v581
        %976 = vmatpush1.msra.mxu0 %v580
        %977 = vmatprep.subr.mxu0 %v585
        %978 = vmatpush1.msra.mxu0 %v584
        %979 = vmatprep.subr.mxu0 %v589
        %980 = vmatpush1.msra.mxu0 %v588
        %981 = vmatprep.subr.mxu0 %v593
        %982 = vmatpush1.msra.mxu0 %v592
        %983 = vmatprep.subr.mxu0 %v597
        %984 = vmatpush1.msra.mxu0 %v596
        %985 = vmatprep.subr.mxu0 %v601
        %986 = vmatpush1.msra.mxu0 %v600
        %987 = vmatprep.subr.mxu0 %v605
        %988 = vmatpush1.msra.mxu0 %v604
        %989 = vmatprep.subr.mxu0 %v609
        %990 = vmatpush1.msra.mxu0 %v608
        %991 = vmatprep.subr.mxu0 %v613
        %992 = vmatpush1.msra.mxu0 %v612
        %993 = vmatprep.subr.mxu0 %v617
        %994 = vmatpush1.msra.mxu0 %v616
        %995 = vmatprep.subr.mxu0 %v621
        %996 = vmatpush1.msra.mxu0 %v620
        %997 = vmatprep.subr.mxu0 %v625
        %998 = vmatpush1.msra.mxu0 %v624
        %999 = vmatprep.subr.mxu0 %v629
        %1000 = vmatpush1.msra.mxu0 %v628
        %1001 = vmatprep.subr.mxu0 %v633
        %1002 = vmatpush1.msra.mxu0 %v632
        %1003 = vmatprep.subr.mxu0 %v637
        %1004 = vmatpush1.msra.mxu0 %v636
        %1005 = vmatprep.subr.mxu0 %v641
        %1006 = vmatpush1.msra.mxu0 %v640
        %1007 = vmatprep.subr.mxu0 %v645
        %1008 = vmatpush1.msra.mxu0 %v644
        %1009 = vmatprep.subr.mxu0 %v649
        %1010 = vmatpush1.msra.mxu0 %v648
        %1011 = vmatprep.subr.mxu0 %v653
        %1012 = vmatpush1.msra.mxu0 %v652
        %1013 = vmatprep.subr.mxu0 %v657
        %1014 = vmatpush1.msra.mxu0 %v656
        %1015 = vmatprep.subr.mxu0 %v661
        %1016 = vmatpush1.msra.mxu0 %v660
        %1017 = vmatprep.subr.mxu0 %v665
        %1018 = vmatpush1.msra.mxu0 %v664
        %1019 = vmatprep.subr.mxu0 %v669
        %1020 = vmatpush1.msra.mxu0 %v668
        %1021 = vmatprep.subr.mxu0 %v673
        %1022 = vmatpush1.msra.mxu0 %v672
        %1023 = vmatprep.subr.mxu0 %v677
        %1024 = vmatpush1.msra.mxu0 %v676
        %1025 = vmatprep.subr.mxu0 %v681
        %1026 = vmatpush1.msra.mxu0 %v680
        %1027 = vmatprep.subr.mxu0 %v685
        %1028 = vmatpush1.msra.mxu0 %v684
        %1029 = vmatprep.mubr.f32.mxu0 %v495
        %1030 = vmatmul.mubr.f32.gmra.mrb[0].mxu0 %v494
        %v1031 = vpop.f32.mrb[0].mxu0
        %v1032 = vadd.f32 %v699, %v1031
        %v1033 = vpop.f32.mrb[0].mxu0
        %v1034 = vadd.f32 %v703, %v1033
        %1035 = vmatprep.mubr.f32.mxu0 %v497
        %1036 = vmatmul.mubr.f32.gmra.mrb[0].mxu0 %v496
        %v1037 = vpop.f32.mrb[0].mxu0
        %v1038 = vadd.f32 %v699, %v1037
        %v1039 = vpop.f32.mrb[0].mxu0
        %v1040 = vadd.f32 %v703, %v1039
        %1041 = vmatprep.mubr.f32.mxu0 %v499
        %1042 = vmatmul.mubr.f32.gmra.mrb[0].mxu0 %v498
        %v1043 = vpop.f32.mrb[0].mxu0
        %v1044 = vadd.f32 %v699, %v1043
        %v1045 = vpop.f32.mrb[0].mxu0
        %v1046 = vadd.f32 %v703, %v1045
        %1047 = vmatprep.mubr.f32.mxu0 %v501
        %1048 = vmatmul.mubr.f32.gmra.mrb[0].mxu0 %v500
        %v1049 = vpop.f32.mrb[0].mxu0
        %v1050 = vadd.f32 %v699, %v1049
        %v1051 = vpop.f32.mrb[0].mxu0
        %v1052 = vadd.f32 %v703, %v1051
        %1053 = vmatprep.mubr.f32.mxu0 %v503
        %1054 = vmatmul.mubr.f32.gmra.mrb[0].mxu0 %v502
        %v1055 = vpop.f32.mrb[0].mxu0
        %v1056 = vadd.f32 %v699, %v1055
        %v1057 = vpop.f32.mrb[0].mxu0
        %v1058 = vadd.f32 %v703, %v1057
        %1059 = vmatprep.mubr.f32.mxu0 %v505
        %1060 = vmatmul.mubr.f32.gmra.mrb[0].mxu0 %v504
        %v1061 = vpop.f32.mrb[0].mxu0
        %v1062 = vadd.f32 %v699, %v1061
        %v1063 = vpop.f32.mrb[0].mxu0
        %v1064 = vadd.f32 %v703, %v1063
        %1065 = vmatprep.mubr.f32.mxu0 %v507
        %1066 = vmatmul.mubr.f32.gmra.mrb[0].mxu0 %v506
        %v1067 = vpop.f32.mrb[0].mxu0
        %v1068 = vadd.f32 %v699, %v1067
        %v1069 = vpop.f32.mrb[0].mxu0
        %v1070 = vadd.f32 %v703, %v1069
        %1071 = vmatprep.mubr.f32.mxu0 %v509
        %1072 = vmatmul.mubr.f32.gmra.mrb[0].mxu0 %v508
        %v1073 = vpop.f32.mrb[0].mxu0
        %v1074 = vadd.f32 %v699, %v1073
        %v1075 = vpop.f32.mrb[0].mxu0
        %v1076 = vadd.f32 %v703, %v1075
        %1077 = vmatprep.mubr.f32.mxu0 %v511
        %1078 = vmatmul.mubr.f32.gmra.mrb[0].mxu0 %v510
        %v1079 = vpop.f32.mrb[0].mxu0
        %v1080 = vadd.f32 %v699, %v1079
        %v1081 = vpop.f32.mrb[0].mxu0
        %v1082 = vadd.f32 %v703, %v1081
        %1083 = vmatprep.mubr.f32.mxu0 %v513
        %1084 = vmatmul.mubr.f32.gmra.mrb[0].mxu0 %v512
        %v1085 = vpop.f32.mrb[0].mxu0
        %v1086 = vadd.f32 %v699, %v1085
        %v1087 = vpop.f32.mrb[0].mxu0
        %v1088 = vadd.f32 %v703, %v1087
        %1089 = vmatprep.mubr.f32.mxu0 %v515
        %1090 = vmatmul.mubr.f32.gmra.mrb[0].mxu0 %v514
        %v1091 = vpop.f32.mrb[0].mxu0
        %v1092 = vadd.f32 %v699, %v1091
        %v1093 = vpop.f32.mrb[0].mxu0
        %v1094 = vadd.f32 %v703, %v1093
        %1095 = vmatprep.mubr.f32.mxu0 %v517
        %1096 = vmatmul.mubr.f32.gmra.mrb[0].mxu0 %v516
        %v1097 = vpop.f32.mrb[0].mxu0
        %v1098 = vadd.f32 %v699, %v1097
        %v1099 = vpop.f32.mrb[0].mxu0
        %v1100 = vadd.f32 %v703, %v1099
        %1101 = vmatprep.mubr.f32.mxu0 %v519
        %1102 = vmatmul.mubr.f32.gmra.mrb[0].mxu0 %v518
        %v1103 = vpop.f32.mrb[0].mxu0
        %v1104 = vadd.f32 %v699, %v1103
        %v1105 = vpop.f32.mrb[0].mxu0
        %v1106 = vadd.f32 %v703, %v1105
        %1107 = vmatprep.mubr.f32.mxu0 %v521
        %1108 = vmatmul.mubr.f32.gmra.mrb[0].mxu0 %v520
        %v1109 = vpop.f32.mrb[0].mxu0
        %v1110 = vadd.f32 %v699, %v1109
        %v1111 = vpop.f32.mrb[0].mxu0
        %v1112 = vadd.f32 %v703, %v1111
        %1113 = vmatprep.mubr.f32.mxu0 %v523
        %1114 = vmatmul.mubr.f32.gmra.mrb[0].mxu0 %v522
        %v1115 = vpop.f32.mrb[0].mxu0
        %v1116 = vadd.f32 %v699, %v1115
        %v1117 = vpop.f32.mrb[0].mxu0
        %v1118 = vadd.f32 %v703, %v1117
        %1119 = vmatprep.mubr.f32.mxu0 %v525
        %1120 = vmatmul.mubr.f32.gmra.mrb[0].mxu0 %v524
        %v1121 = vpop.f32.mrb[0].mxu0
        %v1122 = vadd.f32 %v699, %v1121
        %v1123 = vpop.f32.mrb[0].mxu0
        %v1124 = vadd.f32 %v703, %v1123
        %1125 = vmatprep.mubr.f32.mxu0 %v527
        %1126 = vmatmul.mubr.f32.gmra.mrb[0].mxu0 %v526
        %v1127 = vpop.f32.mrb[0].mxu0
        %v1128 = vadd.f32 %v699, %v1127
        %v1129 = vpop.f32.mrb[0].mxu0
        %v1130 = vadd.f32 %v703, %v1129
        %1131 = vmatprep.mubr.f32.mxu0 %v529
        %1132 = vmatmul.mubr.f32.gmra.mrb[0].mxu0 %v528
        %v1133 = vpop.f32.mrb[0].mxu0
        %v1134 = vadd.f32 %v699, %v1133
        %v1135 = vpop.f32.mrb[0].mxu0
        %v1136 = vadd.f32 %v703, %v1135
        %1137 = vmatprep.mubr.f32.mxu0 %v531
        %1138 = vmatmul.mubr.f32.gmra.mrb[0].mxu0 %v530
        %v1139 = vpop.f32.mrb[0].mxu0
        %v1140 = vadd.f32 %v699, %v1139
        %v1141 = vpop.f32.mrb[0].mxu0
        %v1142 = vadd.f32 %v703, %v1141
        %1143 = vmatprep.mubr.f32.mxu0 %v533
        %1144 = vmatmul.mubr.f32.gmra.mrb[0].mxu0 %v532
        %v1145 = vpop.f32.mrb[0].mxu0
        %v1146 = vadd.f32 %v699, %v1145
        %v1147 = vpop.f32.mrb[0].mxu0
        %v1148 = vadd.f32 %v703, %v1147
        %1149 = vmatprep.mubr.f32.mxu0 %v535
        %1150 = vmatmul.mubr.f32.gmra.mrb[0].mxu0 %v534
        %v1151 = vpop.f32.mrb[0].mxu0
        %v1152 = vadd.f32 %v699, %v1151
        %v1153 = vpop.f32.mrb[0].mxu0
        %v1154 = vadd.f32 %v703, %v1153
        %1155 = vmatprep.mubr.f32.mxu0 %v537
        %1156 = vmatmul.mubr.f32.gmra.mrb[0].mxu0 %v536
        %v1157 = vpop.f32.mrb[0].mxu0
        %v1158 = vadd.f32 %v699, %v1157
        %v1159 = vpop.f32.mrb[0].mxu0
        %v1160 = vadd.f32 %v703, %v1159
        %1161 = vmatprep.mubr.f32.mxu0 %v539
        %1162 = vmatmul.mubr.f32.gmra.mrb[0].mxu0 %v538
        %v1163 = vpop.f32.mrb[0].mxu0
        %v1164 = vadd.f32 %v699, %v1163
        %v1165 = vpop.f32.mrb[0].mxu0
        %v1166 = vadd.f32 %v703, %v1165
        %1167 = vmatprep.mubr.f32.mxu0 %v541
        %1168 = vmatmul.mubr.f32.gmra.mrb[0].mxu0 %v540
        %v1169 = vpop.f32.mrb[0].mxu0
        %v1170 = vadd.f32 %v699, %v1169
        %v1171 = vpop.f32.mrb[0].mxu0
        %v1172 = vadd.f32 %v703, %v1171
        %1173 = vmatprep.mubr.f32.mxu0 %v543
        %1174 = vmatmul.mubr.f32.gmra.mrb[0].mxu0 %v542
        %v1175 = vpop.f32.mrb[0].mxu0
        %v1176 = vadd.f32 %v699, %v1175
        %v1177 = vpop.f32.mrb[0].mxu0
        %v1178 = vadd.f32 %v703, %v1177
        %1179 = vmatprep.mubr.f32.mxu0 %v545
        %1180 = vmatmul.mubr.f32.gmra.mrb[0].mxu0 %v544
        %v1181 = vpop.f32.mrb[0].mxu0
        %v1182 = vadd.f32 %v699, %v1181
        %v1183 = vpop.f32.mrb[0].mxu0
        %v1184 = vadd.f32 %v703, %v1183
        %1185 = vmatprep.mubr.f32.mxu0 %v547
        %1186 = vmatmul.mubr.f32.gmra.mrb[0].mxu0 %v546
        %v1187 = vpop.f32.mrb[0].mxu0
        %v1188 = vadd.f32 %v699, %v1187
        %v1189 = vpop.f32.mrb[0].mxu0
        %v1190 = vadd.f32 %v703, %v1189
        %1191 = vmatprep.mubr.f32.mxu0 %v549
        %1192 = vmatmul.mubr.f32.gmra.mrb[0].mxu0 %v548
        %v1193 = vpop.f32.mrb[0].mxu0
        %v1194 = vadd.f32 %v699, %v1193
        %v1195 = vpop.f32.mrb[0].mxu0
        %v1196 = vadd.f32 %v703, %v1195
        %1197 = vmatprep.mubr.f32.mxu0 %v551
        %1198 = vmatmul.mubr.f32.gmra.mrb[0].mxu0 %v550
        %v1199 = vpop.f32.mrb[0].mxu0
        %v1200 = vadd.f32 %v699, %v1199
        %v1201 = vpop.f32.mrb[0].mxu0
        %v1202 = vadd.f32 %v703, %v1201
        %1203 = vmatprep.mubr.f32.mxu0 %v553
        %1204 = vmatmul.mubr.f32.gmra.mrb[0].mxu0 %v552
        %v1205 = vpop.f32.mrb[0].mxu0
        %v1206 = vadd.f32 %v699, %v1205
        %v1207 = vpop.f32.mrb[0].mxu0
        %v1208 = vadd.f32 %v703, %v1207
        %1209 = vmatprep.mubr.f32.mxu0 %v555
        %1210 = vmatmul.mubr.f32.gmra.mrb[0].mxu0 %v554
        %v1211 = vpop.f32.mrb[0].mxu0
        %v1212 = vadd.f32 %v699, %v1211
        %v1213 = vpop.f32.mrb[0].mxu0
        %v1214 = vadd.f32 %v703, %v1213
        %1215 = vmatprep.mubr.f32.mxu0 %v557
        %1216 = vmatmul.mubr.f32.gmra.mrb[0].mxu0 %v556
        %v1217 = vpop.f32.mrb[0].mxu0
        %v1218 = vadd.f32 %v699, %v1217
        %v1219 = vpop.f32.mrb[0].mxu0
        %v1220 = vadd.f32 %v703, %v1219
        %1221 = vdwg.mxu0
        %v1222 = vmax.f32 %v775, 0.0
        %v1223 = vmax.f32 %v777, 0.0
        %v1224 = vmax.f32 %v1032, 0.0
        %v1225 = vmax.f32 %v1034, 0.0
        %v1226 = vmax.f32 %v781, 0.0
        %v1227 = vmax.f32 %v783, 0.0
        %v1228 = vmax.f32 %v1038, 0.0
        %v1229 = vmax.f32 %v1040, 0.0
        %v1230 = vmax.f32 %v787, 0.0
        %v1231 = vmax.f32 %v789, 0.0
        %v1232 = vmax.f32 %v1044, 0.0
        %v1233 = vmax.f32 %v1046, 0.0
        %v1234 = vmax.f32 %v793, 0.0
        %v1235 = vmax.f32 %v795, 0.0
        %v1236 = vmax.f32 %v1050, 0.0
        %v1237 = vmax.f32 %v1052, 0.0
        %v1238 = vmax.f32 %v799, 0.0
        %v1239 = vmax.f32 %v801, 0.0
        %v1240 = vmax.f32 %v1056, 0.0
        %v1241 = vmax.f32 %v1058, 0.0
        %v1242 = vmax.f32 %v805, 0.0
        %v1243 = vmax.f32 %v807, 0.0
        %v1244 = vmax.f32 %v1062, 0.0
        %v1245 = vmax.f32 %v1064, 0.0
        %v1246 = vmax.f32 %v811, 0.0
        %v1247 = vmax.f32 %v813, 0.0
        %v1248 = vmax.f32 %v1068, 0.0
        %v1249 = vmax.f32 %v1070, 0.0
        %v1250 = vmax.f32 %v817, 0.0
        %v1251 = vmax.f32 %v819, 0.0
        %v1252 = vmax.f32 %v1074, 0.0
        %v1253 = vmax.f32 %v1076, 0.0
        %v1254 = vmax.f32 %v823, 0.0
        %v1255 = vmax.f32 %v825, 0.0
        %v1256 = vmax.f32 %v1080, 0.0
        %v1257 = vmax.f32 %v1082, 0.0
        %v1258 = vmax.f32 %v829, 0.0
        %v1259 = vmax.f32 %v831, 0.0
        %v1260 = vmax.f32 %v1086, 0.0
        %v1261 = vmax.f32 %v1088, 0.0
        %v1262 = vmax.f32 %v835, 0.0
        %v1263 = vmax.f32 %v837, 0.0
        %v1264 = vmax.f32 %v1092, 0.0
        %v1265 = vmax.f32 %v1094, 0.0
        %v1266 = vmax.f32 %v841, 0.0
        %v1267 = vmax.f32 %v843, 0.0
        %v1268 = vmax.f32 %v1098, 0.0
        %v1269 = vmax.f32 %v1100, 0.0
        %v1270 = vmax.f32 %v847, 0.0
        %v1271 = vmax.f32 %v849, 0.0
        %v1272 = vmax.f32 %v1104, 0.0
        %v1273 = vmax.f32 %v1106, 0.0
        %v1274 = vmax.f32 %v853, 0.0
        %v1275 = vmax.f32 %v855, 0.0
        %v1276 = vmax.f32 %v1110, 0.0
        %v1277 = vmax.f32 %v1112, 0.0
        %v1278 = vmax.f32 %v859, 0.0
        %v1279 = vmax.f32 %v861, 0.0
        %v1280 = vmax.f32 %v1116, 0.0
        %v1281 = vmax.f32 %v1118, 0.0
        %v1282 = vmax.f32 %v865, 0.0
        %v1283 = vmax.f32 %v867, 0.0
        %v1284 = vmax.f32 %v1122, 0.0
        %v1285 = vmax.f32 %v1124, 0.0
        %v1286 = vmax.f32 %v871, 0.0
        %v1287 = vmax.f32 %v873, 0.0
        %v1288 = vmax.f32 %v1128, 0.0
        %v1289 = vmax.f32 %v1130, 0.0
        %v1290 = vmax.f32 %v877, 0.0
        %v1291 = vmax.f32 %v879, 0.0
        %v1292 = vmax.f32 %v1134, 0.0
        %v1293 = vmax.f32 %v1136, 0.0
        %v1294 = vmax.f32 %v883, 0.0
        %v1295 = vmax.f32 %v885, 0.0
        %v1296 = vmax.f32 %v1140, 0.0
        %v1297 = vmax.f32 %v1142, 0.0
        %v1298 = vmax.f32 %v889, 0.0
        %v1299 = vmax.f32 %v891, 0.0
        %v1300 = vmax.f32 %v1146, 0.0
        %v1301 = vmax.f32 %v1148, 0.0
        %v1302 = vmax.f32 %v895, 0.0
        %v1303 = vmax.f32 %v897, 0.0
        %v1304 = vmax.f32 %v1152, 0.0
        %v1305 = vmax.f32 %v1154, 0.0
        %v1306 = vmax.f32 %v901, 0.0
        %v1307 = vmax.f32 %v903, 0.0
        %v1308 = vmax.f32 %v1158, 0.0
        %v1309 = vmax.f32 %v1160, 0.0
        %v1310 = vmax.f32 %v907, 0.0
        %v1311 = vmax.f32 %v909, 0.0
        %v1312 = vmax.f32 %v1164, 0.0
        %v1313 = vmax.f32 %v1166, 0.0
        %v1314 = vmax.f32 %v913, 0.0
        %v1315 = vmax.f32 %v915, 0.0
        %v1316 = vmax.f32 %v1170, 0.0
        %v1317 = vmax.f32 %v1172, 0.0
        %v1318 = vmax.f32 %v919, 0.0
        %v1319 = vmax.f32 %v921, 0.0
        %v1320 = vmax.f32 %v1176, 0.0
        %v1321 = vmax.f32 %v1178, 0.0
        %v1322 = vmax.f32 %v925, 0.0
        %v1323 = vmax.f32 %v927, 0.0
        %v1324 = vmax.f32 %v1182, 0.0
        %v1325 = vmax.f32 %v1184, 0.0
        %v1326 = vmax.f32 %v931, 0.0
        %v1327 = vmax.f32 %v933, 0.0
        %v1328 = vmax.f32 %v1188, 0.0
        %v1329 = vmax.f32 %v1190, 0.0
        %v1330 = vmax.f32 %v937, 0.0
        %v1331 = vmax.f32 %v939, 0.0
        %v1332 = vmax.f32 %v1194, 0.0
        %v1333 = vmax.f32 %v1196, 0.0
        %v1334 = vmax.f32 %v943, 0.0
        %v1335 = vmax.f32 %v945, 0.0
        %v1336 = vmax.f32 %v1200, 0.0
        %v1337 = vmax.f32 %v1202, 0.0
        %v1338 = vmax.f32 %v949, 0.0
        %v1339 = vmax.f32 %v951, 0.0
        %v1340 = vmax.f32 %v1206, 0.0
        %v1341 = vmax.f32 %v1208, 0.0
        %v1342 = vmax.f32 %v955, 0.0
        %v1343 = vmax.f32 %v957, 0.0
        %v1344 = vmax.f32 %v1212, 0.0
        %v1345 = vmax.f32 %v1214, 0.0
        %v1346 = vmax.f32 %v961, 0.0
        %v1347 = vmax.f32 %v963, 0.0
        %v1348 = vmax.f32 %v1218, 0.0
        %v1349 = vmax.f32 %v1220, 0.0
        %1350 = vst [vmem:[%s374] sm:$0xff] %v1222
        %1351 = vst [vmem:[%s374 + $0x8] sm:$0xff] %v1223
        %1352 = vst [vmem:[%s374 + $0x10] sm:$0xff] %v1224
        %1353 = vst [vmem:[%s374 + $0x18] sm:$0xff] %v1225
        %1354 = vst [vmem:[%s374 + $0x20] sm:$0xff] %v1226
        %1355 = vst [vmem:[%s374 + $0x28] sm:$0xff] %v1227
        %1356 = vst [vmem:[%s374 + $0x30] sm:$0xff] %v1228
        %1357 = vst [vmem:[%s374 + $0x38] sm:$0xff] %v1229
        %1358 = vst [vmem:[%s374 + $0x40] sm:$0xff] %v1230
        %1359 = vst [vmem:[%s374 + $0x48] sm:$0xff] %v1231
        %1360 = vst [vmem:[%s374 + $0x50] sm:$0xff] %v1232
        %1361 = vst [vmem:[%s374 + $0x58] sm:$0xff] %v1233
        %1362 = vst [vmem:[%s374 + $0x60] sm:$0xff] %v1234
        %1363 = vst [vmem:[%s374 + $0x68] sm:$0xff] %v1235
        %1364 = vst [vmem:[%s374 + $0x70] sm:$0xff] %v1236
        %1365 = vst [vmem:[%s374 + $0x78] sm:$0xff] %v1237
        %1366 = vst [vmem:[%s374 + $0x80] sm:$0xff] %v1238
        %1367 = vst [vmem:[%s374 + $0x88] sm:$0xff] %v1239
        %1368 = vst [vmem:[%s374 + $0x90] sm:$0xff] %v1240
        %1369 = vst [vmem:[%s374 + $0x98] sm:$0xff] %v1241
        %1370 = vst [vmem:[%s374 + $0xa0] sm:$0xff] %v1242
        %1371 = vst [vmem:[%s374 + $0xa8] sm:$0xff] %v1243
        %1372 = vst [vmem:[%s374 + $0xb0] sm:$0xff] %v1244
        %1373 = vst [vmem:[%s374 + $0xb8] sm:$0xff] %v1245
        %1374 = vst [vmem:[%s374 + $0xc0] sm:$0xff] %v1246
        %1375 = vst [vmem:[%s374 + $0xc8] sm:$0xff] %v1247
        %1376 = vst [vmem:[%s374 + $0xd0] sm:$0xff] %v1248
        %1377 = vst [vmem:[%s374 + $0xd8] sm:$0xff] %v1249
        %1378 = vst [vmem:[%s374 + $0xe0] sm:$0xff] %v1250
        %1379 = vst [vmem:[%s374 + $0xe8] sm:$0xff] %v1251
        %1380 = vst [vmem:[%s374 + $0xf0] sm:$0xff] %v1252
        %1381 = vst [vmem:[%s374 + $0xf8] sm:$0xff] %v1253
        %1382 = vst [vmem:[%s374 + $0x100] sm:$0xff] %v1254
        %1383 = vst [vmem:[%s374 + $0x108] sm:$0xff] %v1255
        %1384 = vst [vmem:[%s374 + $0x110] sm:$0xff] %v1256
        %1385 = vst [vmem:[%s374 + $0x118] sm:$0xff] %v1257
        %1386 = vst [vmem:[%s374 + $0x120] sm:$0xff] %v1258
        %1387 = vst [vmem:[%s374 + $0x128] sm:$0xff] %v1259
        %1388 = vst [vmem:[%s374 + $0x130] sm:$0xff] %v1260
        %1389 = vst [vmem:[%s374 + $0x138] sm:$0xff] %v1261
        %1390 = vst [vmem:[%s374 + $0x140] sm:$0xff] %v1262
        %1391 = vst [vmem:[%s374 + $0x148] sm:$0xff] %v1263
        %1392 = vst [vmem:[%s374 + $0x150] sm:$0xff] %v1264
        %1393 = vst [vmem:[%s374 + $0x158] sm:$0xff] %v1265
        %1394 = vst [vmem:[%s374 + $0x160] sm:$0xff] %v1266
        %1395 = vst [vmem:[%s374 + $0x168] sm:$0xff] %v1267
        %1396 = vst [vmem:[%s374 + $0x170] sm:$0xff] %v1268
        %1397 = vst [vmem:[%s374 + $0x178] sm:$0xff] %v1269
        %1398 = vst [vmem:[%s374 + $0x180] sm:$0xff] %v1270
        %1399 = vst [vmem:[%s374 + $0x188] sm:$0xff] %v1271
        %1400 = vst [vmem:[%s374 + $0x190] sm:$0xff] %v1272
        %1401 = vst [vmem:[%s374 + $0x198] sm:$0xff] %v1273
        %1402 = vst [vmem:[%s374 + $0x1a0] sm:$0xff] %v1274
        %1403 = vst [vmem:[%s374 + $0x1a8] sm:$0xff] %v1275
        %1404 = vst [vmem:[%s374 + $0x1b0] sm:$0xff] %v1276
        %1405 = vst [vmem:[%s374 + $0x1b8] sm:$0xff] %v1277
        %1406 = vst [vmem:[%s374 + $0x1c0] sm:$0xff] %v1278
        %1407 = vst [vmem:[%s374 + $0x1c8] sm:$0xff] %v1279
        %1408 = vst [vmem:[%s374 + $0x1d0] sm:$0xff] %v1280
        %1409 = vst [vmem:[%s374 + $0x1d8] sm:$0xff] %v1281
        %1410 = vst [vmem:[%s374 + $0x1e0] sm:$0xff] %v1282
        %1411 = vst [vmem:[%s374 + $0x1e8] sm:$0xff] %v1283
        %1412 = vst [vmem:[%s374 + $0x1f0] sm:$0xff] %v1284
        %1413 = vst [vmem:[%s374 + $0x1f8] sm:$0xff] %v1285
        %1414 = vst [vmem:[%s374 + $0x200] sm:$0xff] %v1286
        %1415 = vst [vmem:[%s374 + $0x208] sm:$0xff] %v1287
        %1416 = vst [vmem:[%s374 + $0x210] sm:$0xff] %v1288
        %1417 = vst [vmem:[%s374 + $0x218] sm:$0xff] %v1289
        %1418 = vst [vmem:[%s374 + $0x220] sm:$0xff] %v1290
        %1419 = vst [vmem:[%s374 + $0x228] sm:$0xff] %v1291
        %1420 = vst [vmem:[%s374 + $0x230] sm:$0xff] %v1292
        %1421 = vst [vmem:[%s374 + $0x238] sm:$0xff] %v1293
        %1422 = vst [vmem:[%s374 + $0x240] sm:$0xff] %v1294
        %1423 = vst [vmem:[%s374 + $0x248] sm:$0xff] %v1295
        %1424 = vst [vmem:[%s374 + $0x250] sm:$0xff] %v1296
        %1425 = vst [vmem:[%s374 + $0x258] sm:$0xff] %v1297
        %1426 = vst [vmem:[%s374 + $0x260] sm:$0xff] %v1298
        %1427 = vst [vmem:[%s374 + $0x268] sm:$0xff] %v1299
        %1428 = vst [vmem:[%s374 + $0x270] sm:$0xff] %v1300
        %1429 = vst [vmem:[%s374 + $0x278] sm:$0xff] %v1301
        %1430 = vst [vmem:[%s374 + $0x280] sm:$0xff] %v1302
        %1431 = vst [vmem:[%s374 + $0x288] sm:$0xff] %v1303
        %1432 = vst [vmem:[%s374 + $0x290] sm:$0xff] %v1304
        %1433 = vst [vmem:[%s374 + $0x298] sm:$0xff] %v1305
        %1434 = vst [vmem:[%s374 + $0x2a0] sm:$0xff] %v1306
        %1435 = vst [vmem:[%s374 + $0x2a8] sm:$0xff] %v1307
        %1436 = vst [vmem:[%s374 + $0x2b0] sm:$0xff] %v1308
        %1437 = vst [vmem:[%s374 + $0x2b8] sm:$0xff] %v1309
        %1438 = vst [vmem:[%s374 + $0x2c0] sm:$0xff] %v1310
        %1439 = vst [vmem:[%s374 + $0x2c8] sm:$0xff] %v1311
        %1440 = vst [vmem:[%s374 + $0x2d0] sm:$0xff] %v1312
        %1441 = vst [vmem:[%s374 + $0x2d8] sm:$0xff] %v1313
        %1442 = vst [vmem:[%s374 + $0x2e0] sm:$0xff] %v1314
        %1443 = vst [vmem:[%s374 + $0x2e8] sm:$0xff] %v1315
        %1444 = vst [vmem:[%s374 + $0x2f0] sm:$0xff] %v1316
        %1445 = vst [vmem:[%s374 + $0x2f8] sm:$0xff] %v1317
        %1446 = vst [vmem:[%s374 + $0x300] sm:$0xff] %v1318
        %1447 = vst [vmem:[%s374 + $0x308] sm:$0xff] %v1319
        %1448 = vst [vmem:[%s374 + $0x310] sm:$0xff] %v1320
        %1449 = vst [vmem:[%s374 + $0x318] sm:$0xff] %v1321
        %1450 = vst [vmem:[%s374 + $0x320] sm:$0xff] %v1322
        %1451 = vst [vmem:[%s374 + $0x328] sm:$0xff] %v1323
        %1452 = vst [vmem:[%s374 + $0x330] sm:$0xff] %v1324
        %1453 = vst [vmem:[%s374 + $0x338] sm:$0xff] %v1325
        %1454 = vst [vmem:[%s374 + $0x340] sm:$0xff] %v1326
        %1455 = vst [vmem:[%s374 + $0x348] sm:$0xff] %v1327
        %1456 = vst [vmem:[%s374 + $0x350] sm:$0xff] %v1328
        %1457 = vst [vmem:[%s374 + $0x358] sm:$0xff] %v1329
        %1458 = vst [vmem:[%s374 + $0x360] sm:$0xff] %v1330
        %1459 = vst [vmem:[%s374 + $0x368] sm:$0xff] %v1331
        %1460 = vst [vmem:[%s374 + $0x370] sm:$0xff] %v1332
        %1461 = vst [vmem:[%s374 + $0x378] sm:$0xff] %v1333
        %1462 = vst [vmem:[%s374 + $0x380] sm:$0xff] %v1334
        %1463 = vst [vmem:[%s374 + $0x388] sm:$0xff] %v1335
        %1464 = vst [vmem:[%s374 + $0x390] sm:$0xff] %v1336
        %1465 = vst [vmem:[%s374 + $0x398] sm:$0xff] %v1337
        %1466 = vst [vmem:[%s374 + $0x3a0] sm:$0xff] %v1338
        %1467 = vst [vmem:[%s374 + $0x3a8] sm:$0xff] %v1339
        %1468 = vst [vmem:[%s374 + $0x3b0] sm:$0xff] %v1340
        %1469 = vst [vmem:[%s374 + $0x3b8] sm:$0xff] %v1341
        %1470 = vst [vmem:[%s374 + $0x3c0] sm:$0xff] %v1342
        %1471 = vst [vmem:[%s374 + $0x3c8] sm:$0xff] %v1343
        %1472 = vst [vmem:[%s374 + $0x3d0] sm:$0xff] %v1344
        %1473 = vst [vmem:[%s374 + $0x3d8] sm:$0xff] %v1345
        %1474 = vst [vmem:[%s374 + $0x3e0] sm:$0xff] %v1346
        %1475 = vst [vmem:[%s374 + $0x3e8] sm:$0xff] %v1347
        %1476 = vst [vmem:[%s374 + $0x3f0] sm:$0xff] %v1348
        %1477 = vst [vmem:[%s374 + $0x3f8] sm:$0xff] %v1349
        %v1478 = vand.u32 2147483647, %v1222
        %v1479 = vand.u32 2147483647, %v1223
        %v1480 = vand.u32 2147483647, %v1224
        %v1481 = vand.u32 2147483647, %v1225
        %v1482 = vand.u32 2147483647, %v1226
        %v1483 = vand.u32 2147483647, %v1227
        %v1484 = vand.u32 2147483647, %v1228
        %v1485 = vand.u32 2147483647, %v1229
        %v1486 = vand.u32 2147483647, %v1230
        %v1487 = vand.u32 2147483647, %v1231
        %v1488 = vand.u32 2147483647, %v1232
        %v1489 = vand.u32 2147483647, %v1233
        %v1490 = vand.u32 2147483647, %v1234
        %v1491 = vand.u32 2147483647, %v1235
        %v1492 = vand.u32 2147483647, %v1236
        %v1493 = vand.u32 2147483647, %v1237
        %v1494 = vand.u32 2147483647, %v1238
        %v1495 = vand.u32 2147483647, %v1239
        %v1496 = vand.u32 2147483647, %v1240
        %v1497 = vand.u32 2147483647, %v1241
        %v1498 = vand.u32 2147483647, %v1242
        %v1499 = vand.u32 2147483647, %v1243
        %v1500 = vand.u32 2147483647, %v1244
        %v1501 = vand.u32 2147483647, %v1245
        %v1502 = vand.u32 2147483647, %v1246
        %v1503 = vand.u32 2147483647, %v1247
        %v1504 = vand.u32 2147483647, %v1248
        %v1505 = vand.u32 2147483647, %v1249
        %v1506 = vand.u32 2147483647, %v1250
        %v1507 = vand.u32 2147483647, %v1251
        %v1508 = vand.u32 2147483647, %v1252
        %v1509 = vand.u32 2147483647, %v1253
        %v1510 = vand.u32 2147483647, %v1254
        %v1511 = vand.u32 2147483647, %v1255
        %v1512 = vand.u32 2147483647, %v1256
        %v1513 = vand.u32 2147483647, %v1257
        %v1514 = vand.u32 2147483647, %v1258
        %v1515 = vand.u32 2147483647, %v1259
        %v1516 = vand.u32 2147483647, %v1260
        %v1517 = vand.u32 2147483647, %v1261
        %v1518 = vand.u32 2147483647, %v1262
        %v1519 = vand.u32 2147483647, %v1263
        %v1520 = vand.u32 2147483647, %v1264
        %v1521 = vand.u32 2147483647, %v1265
        %v1522 = vand.u32 2147483647, %v1266
        %v1523 = vand.u32 2147483647, %v1267
        %v1524 = vand.u32 2147483647, %v1268
        %v1525 = vand.u32 2147483647, %v1269
        %v1526 = vand.u32 2147483647, %v1270
        %v1527 = vand.u32 2147483647, %v1271
        %v1528 = vand.u32 2147483647, %v1272
        %v1529 = vand.u32 2147483647, %v1273
        %v1530 = vand.u32 2147483647, %v1274
        %v1531 = vand.u32 2147483647, %v1275
        %v1532 = vand.u32 2147483647, %v1276
        %v1533 = vand.u32 2147483647, %v1277
        %v1534 = vand.u32 2147483647, %v1278
        %v1535 = vand.u32 2147483647, %v1279
        %v1536 = vand.u32 2147483647, %v1280
        %v1537 = vand.u32 2147483647, %v1281
        %v1538 = vand.u32 2147483647, %v1282
        %v1539 = vand.u32 2147483647, %v1283
        %v1540 = vand.u32 2147483647, %v1284
        %v1541 = vand.u32 2147483647, %v1285
        %v1542 = vand.u32 2147483647, %v1286
        %v1543 = vand.u32 2147483647, %v1287
        %v1544 = vand.u32 2147483647, %v1288
        %v1545 = vand.u32 2147483647, %v1289
        %v1546 = vand.u32 2147483647, %v1290
        %v1547 = vand.u32 2147483647, %v1291
        %v1548 = vand.u32 2147483647, %v1292
        %v1549 = vand.u32 2147483647, %v1293
        %v1550 = vand.u32 2147483647, %v1294
        %v1551 = vand.u32 2147483647, %v1295
        %v1552 = vand.u32 2147483647, %v1296
        %v1553 = vand.u32 2147483647, %v1297
        %v1554 = vand.u32 2147483647, %v1298
        %v1555 = vand.u32 2147483647, %v1299
        %v1556 = vand.u32 2147483647, %v1300
        %v1557 = vand.u32 2147483647, %v1301
        %v1558 = vand.u32 2147483647, %v1302
        %v1559 = vand.u32 2147483647, %v1303
        %v1560 = vand.u32 2147483647, %v1304
        %v1561 = vand.u32 2147483647, %v1305
        %v1562 = vand.u32 2147483647, %v1306
        %v1563 = vand.u32 2147483647, %v1307
        %v1564 = vand.u32 2147483647, %v1308
        %v1565 = vand.u32 2147483647, %v1309
        %v1566 = vand.u32 2147483647, %v1310
        %v1567 = vand.u32 2147483647, %v1311
        %v1568 = vand.u32 2147483647, %v1312
        %v1569 = vand.u32 2147483647, %v1313
        %v1570 = vand.u32 2147483647, %v1314
        %v1571 = vand.u32 2147483647, %v1315
        %v1572 = vand.u32 2147483647, %v1316
        %v1573 = vand.u32 2147483647, %v1317
        %v1574 = vand.u32 2147483647, %v1318
        %v1575 = vand.u32 2147483647, %v1319
        %v1576 = vand.u32 2147483647, %v1320
        %v1577 = vand.u32 2147483647, %v1321
        %v1578 = vand.u32 2147483647, %v1322
        %v1579 = vand.u32 2147483647, %v1323
        %v1580 = vand.u32 2147483647, %v1324
        %v1581 = vand.u32 2147483647, %v1325
        %v1582 = vand.u32 2147483647, %v1326
        %v1583 = vand.u32 2147483647, %v1327
        %v1584 = vand.u32 2147483647, %v1328
        %v1585 = vand.u32 2147483647, %v1329
        %v1586 = vand.u32 2147483647, %v1330
        %v1587 = vand.u32 2147483647, %v1331
        %v1588 = vand.u32 2147483647, %v1332
        %v1589 = vand.u32 2147483647, %v1333
        %v1590 = vand.u32 2147483647, %v1334
        %v1591 = vand.u32 2147483647, %v1335
        %v1592 = vand.u32 2147483647, %v1336
        %v1593 = vand.u32 2147483647, %v1337
        %v1594 = vand.u32 2147483647, %v1338
        %v1595 = vand.u32 2147483647, %v1339
        %v1596 = vand.u32 2147483647, %v1340
        %v1597 = vand.u32 2147483647, %v1341
        %v1598 = vand.u32 2147483647, %v1342
        %v1599 = vand.u32 2147483647, %v1343
        %v1600 = vand.u32 2147483647, %v1344
        %v1601 = vand.u32 2147483647, %v1345
        %v1602 = vand.u32 2147483647, %v1346
        %v1603 = vand.u32 2147483647, %v1347
        %v1604 = vand.u32 2147483647, %v1348
        %v1605 = vand.u32 2147483647, %v1349
        %v1606 = vadd.f32 %v1478, %v1482
        %v1607 = vadd.f32 %v1606, %v1486
        %v1608 = vadd.f32 %v1607, %v1490
        %v1609 = vadd.f32 %v1608, %v1494
        %v1610 = vadd.f32 %v1609, %v1498
        %v1611 = vadd.f32 %v1610, %v1502
        %v1612 = vadd.f32 %v1611, %v1506
        %v1613 = vadd.f32 %v1612, %v1510
        %v1614 = vadd.f32 %v1613, %v1514
        %v1615 = vadd.f32 %v1614, %v1518
        %v1616 = vadd.f32 %v1615, %v1522
        %v1617 = vadd.f32 %v1616, %v1526
        %v1618 = vadd.f32 %v1617, %v1530
        %v1619 = vadd.f32 %v1618, %v1534
        %v1620 = vadd.f32 %v1619, %v1538
        %v1621 = vadd.f32 %v1620, %v1542
        %v1622 = vadd.f32 %v1621, %v1546
        %v1623 = vadd.f32 %v1622, %v1550
        %v1624 = vadd.f32 %v1623, %v1554
        %v1625 = vadd.f32 %v1624, %v1558
        %v1626 = vadd.f32 %v1625, %v1562
        %v1627 = vadd.f32 %v1626, %v1566
        %v1628 = vadd.f32 %v1627, %v1570
        %v1629 = vadd.f32 %v1628, %v1574
        %v1630 = vadd.f32 %v1629, %v1578
        %v1631 = vadd.f32 %v1630, %v1582
        %v1632 = vadd.f32 %v1631, %v1586
        %v1633 = vadd.f32 %v1632, %v1590
        %v1634 = vadd.f32 %v1633, %v1594
        %v1635 = vadd.f32 %v1634, %v1598
        %v1636 = vadd.f32 %v1635, %v1602
        %v1637 = vadd.f32 %v1479, %v1483
        %v1638 = vadd.f32 %v1637, %v1487
        %v1639 = vadd.f32 %v1638, %v1491
        %v1640 = vadd.f32 %v1639, %v1495
        %v1641 = vadd.f32 %v1640, %v1499
        %v1642 = vadd.f32 %v1641, %v1503
        %v1643 = vadd.f32 %v1642, %v1507
        %v1644 = vadd.f32 %v1643, %v1511
        %v1645 = vadd.f32 %v1644, %v1515
        %v1646 = vadd.f32 %v1645, %v1519
        %v1647 = vadd.f32 %v1646, %v1523
        %v1648 = vadd.f32 %v1647, %v1527
        %v1649 = vadd.f32 %v1648, %v1531
        %v1650 = vadd.f32 %v1649, %v1535
        %v1651 = vadd.f32 %v1650, %v1539
        %v1652 = vadd.f32 %v1651, %v1543
        %v1653 = vadd.f32 %v1652, %v1547
        %v1654 = vadd.f32 %v1653, %v1551
        %v1655 = vadd.f32 %v1654, %v1555
        %v1656 = vadd.f32 %v1655, %v1559
        %v1657 = vadd.f32 %v1656, %v1563
        %v1658 = vadd.f32 %v1657, %v1567
        %v1659 = vadd.f32 %v1658, %v1571
        %v1660 = vadd.f32 %v1659, %v1575
        %v1661 = vadd.f32 %v1660, %v1579
        %v1662 = vadd.f32 %v1661, %v1583
        %v1663 = vadd.f32 %v1662, %v1587
        %v1664 = vadd.f32 %v1663, %v1591
        %v1665 = vadd.f32 %v1664, %v1595
        %v1666 = vadd.f32 %v1665, %v1599
        %v1667 = vadd.f32 %v1666, %v1603
        %v1668 = vadd.f32 %v1480, %v1484
        %v1669 = vadd.f32 %v1668, %v1488
        %v1670 = vadd.f32 %v1669, %v1492
        %v1671 = vadd.f32 %v1670, %v1496
        %v1672 = vadd.f32 %v1671, %v1500
        %v1673 = vadd.f32 %v1672, %v1504
        %v1674 = vadd.f32 %v1673, %v1508
        %v1675 = vadd.f32 %v1674, %v1512
        %v1676 = vadd.f32 %v1675, %v1516
        %v1677 = vadd.f32 %v1676, %v1520
        %v1678 = vadd.f32 %v1677, %v1524
        %v1679 = vadd.f32 %v1678, %v1528
        %v1680 = vadd.f32 %v1679, %v1532
        %v1681 = vadd.f32 %v1680, %v1536
        %v1682 = vadd.f32 %v1681, %v1540
        %v1683 = vadd.f32 %v1682, %v1544
        %v1684 = vadd.f32 %v1683, %v1548
        %v1685 = vadd.f32 %v1684, %v1552
        %v1686 = vadd.f32 %v1685, %v1556
        %v1687 = vadd.f32 %v1686, %v1560
        %v1688 = vadd.f32 %v1687, %v1564
        %v1689 = vadd.f32 %v1688, %v1568
        %v1690 = vadd.f32 %v1689, %v1572
        %v1691 = vadd.f32 %v1690, %v1576
        %v1692 = vadd.f32 %v1691, %v1580
        %v1693 = vadd.f32 %v1692, %v1584
        %v1694 = vadd.f32 %v1693, %v1588
        %v1695 = vadd.f32 %v1694, %v1592
        %v1696 = vadd.f32 %v1695, %v1596
        %v1697 = vadd.f32 %v1696, %v1600
        %v1698 = vadd.f32 %v1697, %v1604
        %v1699 = vadd.f32 %v1481, %v1485
        %v1700 = vadd.f32 %v1699, %v1489
        %v1701 = vadd.f32 %v1700, %v1493
        %v1702 = vadd.f32 %v1701, %v1497
        %v1703 = vadd.f32 %v1702, %v1501
        %v1704 = vadd.f32 %v1703, %v1505
        %v1705 = vadd.f32 %v1704, %v1509
        %v1706 = vadd.f32 %v1705, %v1513
        %v1707 = vadd.f32 %v1706, %v1517
        %v1708 = vadd.f32 %v1707, %v1521
        %v1709 = vadd.f32 %v1708, %v1525
        %v1710 = vadd.f32 %v1709, %v1529
        %v1711 = vadd.f32 %v1710, %v1533
        %v1712 = vadd.f32 %v1711, %v1537
        %v1713 = vadd.f32 %v1712, %v1541
        %v1714 = vadd.f32 %v1713, %v1545
        %v1715 = vadd.f32 %v1714, %v1549
        %v1716 = vadd.f32 %v1715, %v1553
        %v1717 = vadd.f32 %v1716, %v1557
        %v1718 = vadd.f32 %v1717, %v1561
        %v1719 = vadd.f32 %v1718, %v1565
        %v1720 = vadd.f32 %v1719, %v1569
        %v1721 = vadd.f32 %v1720, %v1573
        %v1722 = vadd.f32 %v1721, %v1577
        %v1723 = vadd.f32 %v1722, %v1581
        %v1724 = vadd.f32 %v1723, %v1585
        %v1725 = vadd.f32 %v1724, %v1589
        %v1726 = vadd.f32 %v1725, %v1593
        %v1727 = vadd.f32 %v1726, %v1597
        %v1728 = vadd.f32 %v1727, %v1601
        %v1729 = vadd.f32 %v1728, %v1605
        %1730 = vst [vmem:[%s411] sm:$0xff] %v1636
        %1731 = vst [vmem:[%s411 + $0x8] sm:$0xff] %v1667
        %1732 = vst [vmem:[%s411 + $0x10] sm:$0xff] %v1698
        %1733 = vst [vmem:[%s411 + $0x18] sm:$0xff] %v1729
        %p1734 = scmp.eq.s32.totalorder %s31, 0
        // Predicated region
        $region53: #{autoencoder_forward.1} parent=39 // pred_check
          %p1735 = pneg %p1734
        $region54: #{autoencoder_forward.1} parent=39 // pred_check_branch
          %1737 = sbr.rel (%p1735) target = $region56
        $region55: #{autoencoder_forward.1} parent=39 // pred_region
          %1738 = vst [vmem:[#allocation2] sm:$0xff] 0.0
          %1739 = vst [vmem:[#allocation2 + $0x8] sm:$0xff] 0.0
          %1740 = vst [vmem:[#allocation2 + $0x10] sm:$0xff] 0.0
          %1741 = vst [vmem:[#allocation2 + $0x18] sm:$0xff] 0.0
          %1742 = vst [vmem:[#allocation2 + $0x20] sm:$0xff] 0.0
          %1743 = vst [vmem:[#allocation2 + $0x28] sm:$0xff] 0.0
          %1744 = vst [vmem:[#allocation2 + $0x30] sm:$0xff] 0.0
          %1745 = vst [vmem:[#allocation2 + $0x38] sm:$0xff] 0.0
          %1746 = vst [vmem:[#allocation2 + $0x40] sm:$0xff] 0.0
          %1747 = vst [vmem:[#allocation2 + $0x48] sm:$0xff] 0.0
          %1748 = vst [vmem:[#allocation2 + $0x50] sm:$0xff] 0.0
          %1749 = vst [vmem:[#allocation2 + $0x58] sm:$0xff] 0.0
          %1750 = vst [vmem:[#allocation2 + $0x60] sm:$0xff] 0.0
          %1751 = vst [vmem:[#allocation2 + $0x68] sm:$0xff] 0.0
          %1752 = vst [vmem:[#allocation2 + $0x70] sm:$0xff] 0.0
          %1753 = vst [vmem:[#allocation2 + $0x78] sm:$0xff] 0.0
          %1754 = vst [vmem:[#allocation2 + $0x80] sm:$0xff] 0.0
          %1755 = vst [vmem:[#allocation2 + $0x88] sm:$0xff] 0.0
          %1756 = vst [vmem:[#allocation2 + $0x90] sm:$0xff] 0.0
          %1757 = vst [vmem:[#allocation2 + $0x98] sm:$0xff] 0.0
          %1758 = vst [vmem:[#allocation2 + $0xa0] sm:$0xff] 0.0
          %1759 = vst [vmem:[#allocation2 + $0xa8] sm:$0xff] 0.0
          %1760 = vst [vmem:[#allocation2 + $0xb0] sm:$0xff] 0.0
          %1761 = vst [vmem:[#allocation2 + $0xb8] sm:$0xff] 0.0
          %1762 = vst [vmem:[#allocation2 + $0xc0] sm:$0xff] 0.0
          %1763 = vst [vmem:[#allocation2 + $0xc8] sm:$0xff] 0.0
          %1764 = vst [vmem:[#allocation2 + $0xd0] sm:$0xff] 0.0
          %1765 = vst [vmem:[#allocation2 + $0xd8] sm:$0xff] 0.0
          %1766 = vst [vmem:[#allocation2 + $0xe0] sm:$0xff] 0.0
          %1767 = vst [vmem:[#allocation2 + $0xe8] sm:$0xff] 0.0
          %1768 = vst [vmem:[#allocation2 + $0xf0] sm:$0xff] 0.0
          %1769 = vst [vmem:[#allocation2 + $0xf8] sm:$0xff] 0.0
          %1770 = vst [vmem:[#allocation2 + $0x100] sm:$0xff] 0.0
          %1771 = vst [vmem:[#allocation2 + $0x108] sm:$0xff] 0.0
          %1772 = vst [vmem:[#allocation2 + $0x110] sm:$0xff] 0.0
          %1773 = vst [vmem:[#allocation2 + $0x118] sm:$0xff] 0.0
          %1774 = vst [vmem:[#allocation2 + $0x120] sm:$0xff] 0.0
          %1775 = vst [vmem:[#allocation2 + $0x128] sm:$0xff] 0.0
          %1776 = vst [vmem:[#allocation2 + $0x130] sm:$0xff] 0.0
          %1777 = vst [vmem:[#allocation2 + $0x138] sm:$0xff] 0.0
          %1778 = vst [vmem:[#allocation2 + $0x140] sm:$0xff] 0.0
          %1779 = vst [vmem:[#allocation2 + $0x148] sm:$0xff] 0.0
          %1780 = vst [vmem:[#allocation2 + $0x150] sm:$0xff] 0.0
          %1781 = vst [vmem:[#allocation2 + $0x158] sm:$0xff] 0.0
          %1782 = vst [vmem:[#allocation2 + $0x160] sm:$0xff] 0.0
          %1783 = vst [vmem:[#allocation2 + $0x168] sm:$0xff] 0.0
          %1784 = vst [vmem:[#allocation2 + $0x170] sm:$0xff] 0.0
          %1785 = vst [vmem:[#allocation2 + $0x178] sm:$0xff] 0.0
          %1786 = vst [vmem:[#allocation2 + $0x180] sm:$0xff] 0.0
          %1787 = vst [vmem:[#allocation2 + $0x188] sm:$0xff] 0.0
          %1788 = vst [vmem:[#allocation2 + $0x190] sm:$0xff] 0.0
          %1789 = vst [vmem:[#allocation2 + $0x198] sm:$0xff] 0.0
          %1790 = vst [vmem:[#allocation2 + $0x1a0] sm:$0xff] 0.0
          %1791 = vst [vmem:[#allocation2 + $0x1a8] sm:$0xff] 0.0
          %1792 = vst [vmem:[#allocation2 + $0x1b0] sm:$0xff] 0.0
          %1793 = vst [vmem:[#allocation2 + $0x1b8] sm:$0xff] 0.0
          %1794 = vst [vmem:[#allocation2 + $0x1c0] sm:$0xff] 0.0
          %1795 = vst [vmem:[#allocation2 + $0x1c8] sm:$0xff] 0.0
          %1796 = vst [vmem:[#allocation2 + $0x1d0] sm:$0xff] 0.0
          %1797 = vst [vmem:[#allocation2 + $0x1d8] sm:$0xff] 0.0
          %1798 = vst [vmem:[#allocation2 + $0x1e0] sm:$0xff] 0.0
          %1799 = vst [vmem:[#allocation2 + $0x1e8] sm:$0xff] 0.0
          %1800 = vst [vmem:[#allocation2 + $0x1f0] sm:$0xff] 0.0
          %1801 = vst [vmem:[#allocation2 + $0x1f8] sm:$0xff] 0.0
        $region56: #{autoencoder_forward.1} parent=39 // pred_fallthru
          _
        %v1802 = vld [vmem:[#allocation2] sm:$0xff]
        %v1803 = vld [vmem:[#allocation2 + $0x8] sm:$0xff]
        %v1804 = vld [vmem:[#allocation2 + $0x10] sm:$0xff]
        %v1805 = vld [vmem:[#allocation2 + $0x18] sm:$0xff]
        %v1806 = vld [vmem:[#allocation2 + $0x20] sm:$0xff]
        %v1807 = vld [vmem:[#allocation2 + $0x28] sm:$0xff]
        %v1808 = vld [vmem:[#allocation2 + $0x30] sm:$0xff]
        %v1809 = vld [vmem:[#allocation2 + $0x38] sm:$0xff]
        %v1810 = vld [vmem:[#allocation2 + $0x40] sm:$0xff]
        %v1811 = vld [vmem:[#allocation2 + $0x48] sm:$0xff]
        %v1812 = vld [vmem:[#allocation2 + $0x50] sm:$0xff]
        %v1813 = vld [vmem:[#allocation2 + $0x58] sm:$0xff]
        %v1814 = vld [vmem:[#allocation2 + $0x60] sm:$0xff]
        %v1815 = vld [vmem:[#allocation2 + $0x68] sm:$0xff]
        %v1816 = vld [vmem:[#allocation2 + $0x70] sm:$0xff]
        %v1817 = vld [vmem:[#allocation2 + $0x78] sm:$0xff]
        %v1818 = vld [vmem:[#allocation2 + $0x80] sm:$0xff]
        %v1819 = vld [vmem:[#allocation2 + $0x88] sm:$0xff]
        %v1820 = vld [vmem:[#allocation2 + $0x90] sm:$0xff]
        %v1821 = vld [vmem:[#allocation2 + $0x98] sm:$0xff]
        %v1822 = vld [vmem:[#allocation2 + $0xa0] sm:$0xff]
        %v1823 = vld [vmem:[#allocation2 + $0xa8] sm:$0xff]
        %v1824 = vld [vmem:[#allocation2 + $0xb0] sm:$0xff]
        %v1825 = vld [vmem:[#allocation2 + $0xb8] sm:$0xff]
        %v1826 = vld [vmem:[#allocation2 + $0xc0] sm:$0xff]
        %v1827 = vld [vmem:[#allocation2 + $0xc8] sm:$0xff]
        %v1828 = vld [vmem:[#allocation2 + $0xd0] sm:$0xff]
        %v1829 = vld [vmem:[#allocation2 + $0xd8] sm:$0xff]
        %v1830 = vld [vmem:[#allocation2 + $0xe0] sm:$0xff]
        %v1831 = vld [vmem:[#allocation2 + $0xe8] sm:$0xff]
        %v1832 = vld [vmem:[#allocation2 + $0xf0] sm:$0xff]
        %v1833 = vld [vmem:[#allocation2 + $0xf8] sm:$0xff]
        %v1834 = vld [vmem:[#allocation2 + $0x100] sm:$0xff]
        %v1835 = vld [vmem:[#allocation2 + $0x108] sm:$0xff]
        %v1836 = vld [vmem:[#allocation2 + $0x110] sm:$0xff]
        %v1837 = vld [vmem:[#allocation2 + $0x118] sm:$0xff]
        %v1838 = vld [vmem:[#allocation2 + $0x120] sm:$0xff]
        %v1839 = vld [vmem:[#allocation2 + $0x128] sm:$0xff]
        %v1840 = vld [vmem:[#allocation2 + $0x130] sm:$0xff]
        %v1841 = vld [vmem:[#allocation2 + $0x138] sm:$0xff]
        %v1842 = vld [vmem:[#allocation2 + $0x140] sm:$0xff]
        %v1843 = vld [vmem:[#allocation2 + $0x148] sm:$0xff]
        %v1844 = vld [vmem:[#allocation2 + $0x150] sm:$0xff]
        %v1845 = vld [vmem:[#allocation2 + $0x158] sm:$0xff]
        %v1846 = vld [vmem:[#allocation2 + $0x160] sm:$0xff]
        %v1847 = vld [vmem:[#allocation2 + $0x168] sm:$0xff]
        %v1848 = vld [vmem:[#allocation2 + $0x170] sm:$0xff]
        %v1849 = vld [vmem:[#allocation2 + $0x178] sm:$0xff]
        %v1850 = vld [vmem:[#allocation2 + $0x180] sm:$0xff]
        %v1851 = vld [vmem:[#allocation2 + $0x188] sm:$0xff]
        %v1852 = vld [vmem:[#allocation2 + $0x190] sm:$0xff]
        %v1853 = vld [vmem:[#allocation2 + $0x198] sm:$0xff]
        %v1854 = vld [vmem:[#allocation2 + $0x1a0] sm:$0xff]
        %v1855 = vld [vmem:[#allocation2 + $0x1a8] sm:$0xff]
        %v1856 = vld [vmem:[#allocation2 + $0x1b0] sm:$0xff]
        %v1857 = vld [vmem:[#allocation2 + $0x1b8] sm:$0xff]
        %v1858 = vld [vmem:[#allocation2 + $0x1c0] sm:$0xff]
        %v1859 = vld [vmem:[#allocation2 + $0x1c8] sm:$0xff]
        %v1860 = vld [vmem:[#allocation2 + $0x1d0] sm:$0xff]
        %v1861 = vld [vmem:[#allocation2 + $0x1d8] sm:$0xff]
        %v1862 = vld [vmem:[#allocation2 + $0x1e0] sm:$0xff]
        %v1863 = vld [vmem:[#allocation2 + $0x1e8] sm:$0xff]
        %v1864 = vld [vmem:[#allocation2 + $0x1f0] sm:$0xff]
        %v1865 = vld [vmem:[#allocation2 + $0x1f8] sm:$0xff]
        %v1866 = vld [vmem:[#allocation8] sm:$0xff]
        %v1867 = vld [vmem:[#allocation8 + $0x8] sm:$0xff]
        %v1868 = vld [vmem:[#allocation8 + $0x10] sm:$0xff]
        %v1869 = vld [vmem:[#allocation8 + $0x18] sm:$0xff]
        %v1870 = vld [vmem:[#allocation8 + $0x20] sm:$0xff]
        %v1871 = vld [vmem:[#allocation8 + $0x28] sm:$0xff]
        %v1872 = vld [vmem:[#allocation8 + $0x30] sm:$0xff]
        %v1873 = vld [vmem:[#allocation8 + $0x38] sm:$0xff]
        %v1874 = vld [vmem:[#allocation8 + $0x40] sm:$0xff]
        %v1875 = vld [vmem:[#allocation8 + $0x48] sm:$0xff]
        %v1876 = vld [vmem:[#allocation8 + $0x50] sm:$0xff]
        %v1877 = vld [vmem:[#allocation8 + $0x58] sm:$0xff]
        %v1878 = vld [vmem:[#allocation8 + $0x60] sm:$0xff]
        %v1879 = vld [vmem:[#allocation8 + $0x68] sm:$0xff]
        %v1880 = vld [vmem:[#allocation8 + $0x70] sm:$0xff]
        %v1881 = vld [vmem:[#allocation8 + $0x78] sm:$0xff]
        %v1882 = vld [vmem:[#allocation8 + $0x80] sm:$0xff]
        %v1883 = vld [vmem:[#allocation8 + $0x88] sm:$0xff]
        %v1884 = vld [vmem:[#allocation8 + $0x90] sm:$0xff]
        %v1885 = vld [vmem:[#allocation8 + $0x98] sm:$0xff]
        %v1886 = vld [vmem:[#allocation8 + $0xa0] sm:$0xff]
        %v1887 = vld [vmem:[#allocation8 + $0xa8] sm:$0xff]
        %v1888 = vld [vmem:[#allocation8 + $0xb0] sm:$0xff]
        %v1889 = vld [vmem:[#allocation8 + $0xb8] sm:$0xff]
        %v1890 = vld [vmem:[#allocation8 + $0xc0] sm:$0xff]
        %v1891 = vld [vmem:[#allocation8 + $0xc8] sm:$0xff]
        %v1892 = vld [vmem:[#allocation8 + $0xd0] sm:$0xff]
        %v1893 = vld [vmem:[#allocation8 + $0xd8] sm:$0xff]
        %v1894 = vld [vmem:[#allocation8 + $0xe0] sm:$0xff]
        %v1895 = vld [vmem:[#allocation8 + $0xe8] sm:$0xff]
        %v1896 = vld [vmem:[#allocation8 + $0xf0] sm:$0xff]
        %v1897 = vld [vmem:[#allocation8 + $0xf8] sm:$0xff]
        %v1898 = vld [vmem:[#allocation8 + $0x100] sm:$0xff]
        %v1899 = vld [vmem:[#allocation8 + $0x108] sm:$0xff]
        %v1900 = vld [vmem:[#allocation8 + $0x110] sm:$0xff]
        %v1901 = vld [vmem:[#allocation8 + $0x118] sm:$0xff]
        %v1902 = vld [vmem:[#allocation8 + $0x120] sm:$0xff]
        %v1903 = vld [vmem:[#allocation8 + $0x128] sm:$0xff]
        %v1904 = vld [vmem:[#allocation8 + $0x130] sm:$0xff]
        %v1905 = vld [vmem:[#allocation8 + $0x138] sm:$0xff]
        %v1906 = vld [vmem:[#allocation8 + $0x140] sm:$0xff]
        %v1907 = vld [vmem:[#allocation8 + $0x148] sm:$0xff]
        %v1908 = vld [vmem:[#allocation8 + $0x150] sm:$0xff]
        %v1909 = vld [vmem:[#allocation8 + $0x158] sm:$0xff]
        %v1910 = vld [vmem:[#allocation8 + $0x160] sm:$0xff]
        %v1911 = vld [vmem:[#allocation8 + $0x168] sm:$0xff]
        %v1912 = vld [vmem:[#allocation8 + $0x170] sm:$0xff]
        %v1913 = vld [vmem:[#allocation8 + $0x178] sm:$0xff]
        %v1914 = vld [vmem:[#allocation8 + $0x180] sm:$0xff]
        %v1915 = vld [vmem:[#allocation8 + $0x188] sm:$0xff]
        %v1916 = vld [vmem:[#allocation8 + $0x190] sm:$0xff]
        %v1917 = vld [vmem:[#allocation8 + $0x198] sm:$0xff]
        %v1918 = vld [vmem:[#allocation8 + $0x1a0] sm:$0xff]
        %v1919 = vld [vmem:[#allocation8 + $0x1a8] sm:$0xff]
        %v1920 = vld [vmem:[#allocation8 + $0x1b0] sm:$0xff]
        %v1921 = vld [vmem:[#allocation8 + $0x1b8] sm:$0xff]
        %v1922 = vld [vmem:[#allocation8 + $0x1c0] sm:$0xff]
        %v1923 = vld [vmem:[#allocation8 + $0x1c8] sm:$0xff]
        %v1924 = vld [vmem:[#allocation8 + $0x1d0] sm:$0xff]
        %v1925 = vld [vmem:[#allocation8 + $0x1d8] sm:$0xff]
        %v1926 = vld [vmem:[#allocation8 + $0x1e0] sm:$0xff]
        %v1927 = vld [vmem:[#allocation8 + $0x1e8] sm:$0xff]
        %v1928 = vld [vmem:[#allocation8 + $0x1f0] sm:$0xff]
        %v1929 = vld [vmem:[#allocation8 + $0x1f8] sm:$0xff]
        %v1930 = vld [vmem:[#allocation8 + $0x200] sm:$0xff]
        %v1931 = vld [vmem:[#allocation8 + $0x208] sm:$0xff]
        %v1932 = vld [vmem:[#allocation8 + $0x210] sm:$0xff]
        %v1933 = vld [vmem:[#allocation8 + $0x218] sm:$0xff]
        %v1934 = vld [vmem:[#allocation8 + $0x220] sm:$0xff]
        %v1935 = vld [vmem:[#allocation8 + $0x228] sm:$0xff]
        %v1936 = vld [vmem:[#allocation8 + $0x230] sm:$0xff]
        %v1937 = vld [vmem:[#allocation8 + $0x238] sm:$0xff]
        %v1938 = vld [vmem:[#allocation8 + $0x240] sm:$0xff]
        %v1939 = vld [vmem:[#allocation8 + $0x248] sm:$0xff]
        %v1940 = vld [vmem:[#allocation8 + $0x250] sm:$0xff]
        %v1941 = vld [vmem:[#allocation8 + $0x258] sm:$0xff]
        %v1942 = vld [vmem:[#allocation8 + $0x260] sm:$0xff]
        %v1943 = vld [vmem:[#allocation8 + $0x268] sm:$0xff]
        %v1944 = vld [vmem:[#allocation8 + $0x270] sm:$0xff]
        %v1945 = vld [vmem:[#allocation8 + $0x278] sm:$0xff]
        %v1946 = vld [vmem:[#allocation8 + $0x280] sm:$0xff]
        %v1947 = vld [vmem:[#allocation8 + $0x288] sm:$0xff]
        %v1948 = vld [vmem:[#allocation8 + $0x290] sm:$0xff]
        %v1949 = vld [vmem:[#allocation8 + $0x298] sm:$0xff]
        %v1950 = vld [vmem:[#allocation8 + $0x2a0] sm:$0xff]
        %v1951 = vld [vmem:[#allocation8 + $0x2a8] sm:$0xff]
        %v1952 = vld [vmem:[#allocation8 + $0x2b0] sm:$0xff]
        %v1953 = vld [vmem:[#allocation8 + $0x2b8] sm:$0xff]
        %v1954 = vld [vmem:[#allocation8 + $0x2c0] sm:$0xff]
        %v1955 = vld [vmem:[#allocation8 + $0x2c8] sm:$0xff]
        %v1956 = vld [vmem:[#allocation8 + $0x2d0] sm:$0xff]
        %v1957 = vld [vmem:[#allocation8 + $0x2d8] sm:$0xff]
        %v1958 = vld [vmem:[#allocation8 + $0x2e0] sm:$0xff]
        %v1959 = vld [vmem:[#allocation8 + $0x2e8] sm:$0xff]
        %v1960 = vld [vmem:[#allocation8 + $0x2f0] sm:$0xff]
        %v1961 = vld [vmem:[#allocation8 + $0x2f8] sm:$0xff]
        %v1962 = vld [vmem:[#allocation8 + $0x300] sm:$0xff]
        %v1963 = vld [vmem:[#allocation8 + $0x308] sm:$0xff]
        %v1964 = vld [vmem:[#allocation8 + $0x310] sm:$0xff]
        %v1965 = vld [vmem:[#allocation8 + $0x318] sm:$0xff]
        %v1966 = vld [vmem:[#allocation8 + $0x320] sm:$0xff]
        %v1967 = vld [vmem:[#allocation8 + $0x328] sm:$0xff]
        %v1968 = vld [vmem:[#allocation8 + $0x330] sm:$0xff]
        %v1969 = vld [vmem:[#allocation8 + $0x338] sm:$0xff]
        %v1970 = vld [vmem:[#allocation8 + $0x340] sm:$0xff]
        %v1971 = vld [vmem:[#allocation8 + $0x348] sm:$0xff]
        %v1972 = vld [vmem:[#allocation8 + $0x350] sm:$0xff]
        %v1973 = vld [vmem:[#allocation8 + $0x358] sm:$0xff]
        %v1974 = vld [vmem:[#allocation8 + $0x360] sm:$0xff]
        %v1975 = vld [vmem:[#allocation8 + $0x368] sm:$0xff]
        %v1976 = vld [vmem:[#allocation8 + $0x370] sm:$0xff]
        %v1977 = vld [vmem:[#allocation8 + $0x378] sm:$0xff]
        %v1978 = vld [vmem:[#allocation8 + $0x380] sm:$0xff]
        %v1979 = vld [vmem:[#allocation8 + $0x388] sm:$0xff]
        %v1980 = vld [vmem:[#allocation8 + $0x390] sm:$0xff]
        %v1981 = vld [vmem:[#allocation8 + $0x398] sm:$0xff]
        %v1982 = vld [vmem:[#allocation8 + $0x3a0] sm:$0xff]
        %v1983 = vld [vmem:[#allocation8 + $0x3a8] sm:$0xff]
        %v1984 = vld [vmem:[#allocation8 + $0x3b0] sm:$0xff]
        %v1985 = vld [vmem:[#allocation8 + $0x3b8] sm:$0xff]
        %v1986 = vld [vmem:[#allocation8 + $0x3c0] sm:$0xff]
        %v1987 = vld [vmem:[#allocation8 + $0x3c8] sm:$0xff]
        %v1988 = vld [vmem:[#allocation8 + $0x3d0] sm:$0xff]
        %v1989 = vld [vmem:[#allocation8 + $0x3d8] sm:$0xff]
        %v1990 = vld [vmem:[#allocation8 + $0x3e0] sm:$0xff]
        %v1991 = vld [vmem:[#allocation8 + $0x3e8] sm:$0xff]
        %v1992 = vld [vmem:[#allocation8 + $0x3f0] sm:$0xff]
        %v1993 = vld [vmem:[#allocation8 + $0x3f8] sm:$0xff]
        %1994 = vmatprep.subr.mxu0 %v1867
        %1995 = vmatpush1.msra.mxu0 %v1866
        %1996 = vmatprep.subr.mxu0 %v1869
        %1997 = vmatpush1.msra.mxu0 %v1868
        %1998 = vmatprep.subr.mxu0 %v1871
        %1999 = vmatpush1.msra.mxu0 %v1870
        %2000 = vmatprep.subr.mxu0 %v1873
        %2001 = vmatpush1.msra.mxu0 %v1872
        %2002 = vmatprep.subr.mxu0 %v1875
        %2003 = vmatpush1.msra.mxu0 %v1874
        %2004 = vmatprep.subr.mxu0 %v1877
        %2005 = vmatpush1.msra.mxu0 %v1876
        %2006 = vmatprep.subr.mxu0 %v1879
        %2007 = vmatpush1.msra.mxu0 %v1878
        %2008 = vmatprep.subr.mxu0 %v1881
        %2009 = vmatpush1.msra.mxu0 %v1880
        %2010 = vmatprep.subr.mxu0 %v1883
        %2011 = vmatpush1.msra.mxu0 %v1882
        %2012 = vmatprep.subr.mxu0 %v1885
        %2013 = vmatpush1.msra.mxu0 %v1884
        %2014 = vmatprep.subr.mxu0 %v1887
        %2015 = vmatpush1.msra.mxu0 %v1886
        %2016 = vmatprep.subr.mxu0 %v1889
        %2017 = vmatpush1.msra.mxu0 %v1888
        %2018 = vmatprep.subr.mxu0 %v1891
        %2019 = vmatpush1.msra.mxu0 %v1890
        %2020 = vmatprep.subr.mxu0 %v1893
        %2021 = vmatpush1.msra.mxu0 %v1892
        %2022 = vmatprep.subr.mxu0 %v1895
        %2023 = vmatpush1.msra.mxu0 %v1894
        %2024 = vmatprep.subr.mxu0 %v1897
        %2025 = vmatpush1.msra.mxu0 %v1896
        %2026 = vmatprep.subr.mxu0 %v1899
        %2027 = vmatpush1.msra.mxu0 %v1898
        %2028 = vmatprep.subr.mxu0 %v1901
        %2029 = vmatpush1.msra.mxu0 %v1900
        %2030 = vmatprep.subr.mxu0 %v1903
        %2031 = vmatpush1.msra.mxu0 %v1902
        %2032 = vmatprep.subr.mxu0 %v1905
        %2033 = vmatpush1.msra.mxu0 %v1904
        %2034 = vmatprep.subr.mxu0 %v1907
        %2035 = vmatpush1.msra.mxu0 %v1906
        %2036 = vmatprep.subr.mxu0 %v1909
        %2037 = vmatpush1.msra.mxu0 %v1908
        %2038 = vmatprep.subr.mxu0 %v1911
        %2039 = vmatpush1.msra.mxu0 %v1910
        %2040 = vmatprep.subr.mxu0 %v1913
        %2041 = vmatpush1.msra.mxu0 %v1912
        %2042 = vmatprep.subr.mxu0 %v1915
        %2043 = vmatpush1.msra.mxu0 %v1914
        %2044 = vmatprep.subr.mxu0 %v1917
        %2045 = vmatpush1.msra.mxu0 %v1916
        %2046 = vmatprep.subr.mxu0 %v1919
        %2047 = vmatpush1.msra.mxu0 %v1918
        %2048 = vmatprep.subr.mxu0 %v1921
        %2049 = vmatpush1.msra.mxu0 %v1920
        %2050 = vmatprep.subr.mxu0 %v1923
        %2051 = vmatpush1.msra.mxu0 %v1922
        %2052 = vmatprep.subr.mxu0 %v1925
        %2053 = vmatpush1.msra.mxu0 %v1924
        %2054 = vmatprep.subr.mxu0 %v1927
        %2055 = vmatpush1.msra.mxu0 %v1926
        %2056 = vmatprep.subr.mxu0 %v1929
        %2057 = vmatpush1.msra.mxu0 %v1928
        %2058 = vmatprep.mubr.f32.mxu0 %v1223
        %2059 = vmatmul.mubr.f32.gmra.mrb[0].mxu0 %v1222
        %v2060 = vpop.f32.mrb[0].mxu0
        %v2061 = vadd.f32 0.0, %v2060
        %v2062 = vpop.f32.mrb[0].mxu0
        %v2063 = vadd.f32 0.0, %v2062
        %2064 = vmatprep.mubr.f32.mxu0 %v1227
        %2065 = vmatmul.mubr.f32.gmra.mrb[0].mxu0 %v1226
        %v2066 = vpop.f32.mrb[0].mxu0
        %v2067 = vadd.f32 0.0, %v2066
        %v2068 = vpop.f32.mrb[0].mxu0
        %v2069 = vadd.f32 0.0, %v2068
        %2070 = vmatprep.mubr.f32.mxu0 %v1231
        %2071 = vmatmul.mubr.f32.gmra.mrb[0].mxu0 %v1230
        %v2072 = vpop.f32.mrb[0].mxu0
        %v2073 = vadd.f32 0.0, %v2072
        %v2074 = vpop.f32.mrb[0].mxu0
        %v2075 = vadd.f32 0.0, %v2074
        %2076 = vmatprep.mubr.f32.mxu0 %v1235
        %2077 = vmatmul.mubr.f32.gmra.mrb[0].mxu0 %v1234
        %v2078 = vpop.f32.mrb[0].mxu0
        %v2079 = vadd.f32 0.0, %v2078
        %v2080 = vpop.f32.mrb[0].mxu0
        %v2081 = vadd.f32 0.0, %v2080
        %2082 = vmatprep.mubr.f32.mxu0 %v1239
        %2083 = vmatmul.mubr.f32.gmra.mrb[0].mxu0 %v1238
        %v2084 = vpop.f32.mrb[0].mxu0
        %v2085 = vadd.f32 0.0, %v2084
        %v2086 = vpop.f32.mrb[0].mxu0
        %v2087 = vadd.f32 0.0, %v2086
        %2088 = vmatprep.mubr.f32.mxu0 %v1243
        %2089 = vmatmul.mubr.f32.gmra.mrb[0].mxu0 %v1242
        %v2090 = vpop.f32.mrb[0].mxu0
        %v2091 = vadd.f32 0.0, %v2090
        %v2092 = vpop.f32.mrb[0].mxu0
        %v2093 = vadd.f32 0.0, %v2092
        %2094 = vmatprep.mubr.f32.mxu0 %v1247
        %2095 = vmatmul.mubr.f32.gmra.mrb[0].mxu0 %v1246
        %v2096 = vpop.f32.mrb[0].mxu0
        %v2097 = vadd.f32 0.0, %v2096
        %v2098 = vpop.f32.mrb[0].mxu0
        %v2099 = vadd.f32 0.0, %v2098
        %2100 = vmatprep.mubr.f32.mxu0 %v1251
        %2101 = vmatmul.mubr.f32.gmra.mrb[0].mxu0 %v1250
        %v2102 = vpop.f32.mrb[0].mxu0
        %v2103 = vadd.f32 0.0, %v2102
        %v2104 = vpop.f32.mrb[0].mxu0
        %v2105 = vadd.f32 0.0, %v2104
        %2106 = vmatprep.mubr.f32.mxu0 %v1255
        %2107 = vmatmul.mubr.f32.gmra.mrb[0].mxu0 %v1254
        %v2108 = vpop.f32.mrb[0].mxu0
        %v2109 = vadd.f32 0.0, %v2108
        %v2110 = vpop.f32.mrb[0].mxu0
        %v2111 = vadd.f32 0.0, %v2110
        %2112 = vmatprep.mubr.f32.mxu0 %v1259
        %2113 = vmatmul.mubr.f32.gmra.mrb[0].mxu0 %v1258
        %v2114 = vpop.f32.mrb[0].mxu0
        %v2115 = vadd.f32 0.0, %v2114
        %v2116 = vpop.f32.mrb[0].mxu0
        %v2117 = vadd.f32 0.0, %v2116
        %2118 = vmatprep.mubr.f32.mxu0 %v1263
        %2119 = vmatmul.mubr.f32.gmra.mrb[0].mxu0 %v1262
        %v2120 = vpop.f32.mrb[0].mxu0
        %v2121 = vadd.f32 0.0, %v2120
        %v2122 = vpop.f32.mrb[0].mxu0
        %v2123 = vadd.f32 0.0, %v2122
        %2124 = vmatprep.mubr.f32.mxu0 %v1267
        %2125 = vmatmul.mubr.f32.gmra.mrb[0].mxu0 %v1266
        %v2126 = vpop.f32.mrb[0].mxu0
        %v2127 = vadd.f32 0.0, %v2126
        %v2128 = vpop.f32.mrb[0].mxu0
        %v2129 = vadd.f32 0.0, %v2128
        %2130 = vmatprep.mubr.f32.mxu0 %v1271
        %2131 = vmatmul.mubr.f32.gmra.mrb[0].mxu0 %v1270
        %v2132 = vpop.f32.mrb[0].mxu0
        %v2133 = vadd.f32 0.0, %v2132
        %v2134 = vpop.f32.mrb[0].mxu0
        %v2135 = vadd.f32 0.0, %v2134
        %2136 = vmatprep.mubr.f32.mxu0 %v1275
        %2137 = vmatmul.mubr.f32.gmra.mrb[0].mxu0 %v1274
        %v2138 = vpop.f32.mrb[0].mxu0
        %v2139 = vadd.f32 0.0, %v2138
        %v2140 = vpop.f32.mrb[0].mxu0
        %v2141 = vadd.f32 0.0, %v2140
        %2142 = vmatprep.mubr.f32.mxu0 %v1279
        %2143 = vmatmul.mubr.f32.gmra.mrb[0].mxu0 %v1278
        %v2144 = vpop.f32.mrb[0].mxu0
        %v2145 = vadd.f32 0.0, %v2144
        %v2146 = vpop.f32.mrb[0].mxu0
        %v2147 = vadd.f32 0.0, %v2146
        %2148 = vmatprep.mubr.f32.mxu0 %v1283
        %2149 = vmatmul.mubr.f32.gmra.mrb[0].mxu0 %v1282
        %v2150 = vpop.f32.mrb[0].mxu0
        %v2151 = vadd.f32 0.0, %v2150
        %v2152 = vpop.f32.mrb[0].mxu0
        %v2153 = vadd.f32 0.0, %v2152
        %2154 = vmatprep.mubr.f32.mxu0 %v1287
        %2155 = vmatmul.mubr.f32.gmra.mrb[0].mxu0 %v1286
        %v2156 = vpop.f32.mrb[0].mxu0
        %v2157 = vadd.f32 0.0, %v2156
        %v2158 = vpop.f32.mrb[0].mxu0
        %v2159 = vadd.f32 0.0, %v2158
        %2160 = vmatprep.mubr.f32.mxu0 %v1291
        %2161 = vmatmul.mubr.f32.gmra.mrb[0].mxu0 %v1290
        %v2162 = vpop.f32.mrb[0].mxu0
        %v2163 = vadd.f32 0.0, %v2162
        %v2164 = vpop.f32.mrb[0].mxu0
        %v2165 = vadd.f32 0.0, %v2164
        %2166 = vmatprep.mubr.f32.mxu0 %v1295
        %2167 = vmatmul.mubr.f32.gmra.mrb[0].mxu0 %v1294
        %v2168 = vpop.f32.mrb[0].mxu0
        %v2169 = vadd.f32 0.0, %v2168
        %v2170 = vpop.f32.mrb[0].mxu0
        %v2171 = vadd.f32 0.0, %v2170
        %2172 = vmatprep.mubr.f32.mxu0 %v1299
        %2173 = vmatmul.mubr.f32.gmra.mrb[0].mxu0 %v1298
        %v2174 = vpop.f32.mrb[0].mxu0
        %v2175 = vadd.f32 0.0, %v2174
        %v2176 = vpop.f32.mrb[0].mxu0
        %v2177 = vadd.f32 0.0, %v2176
        %2178 = vmatprep.mubr.f32.mxu0 %v1303
        %2179 = vmatmul.mubr.f32.gmra.mrb[0].mxu0 %v1302
        %v2180 = vpop.f32.mrb[0].mxu0
        %v2181 = vadd.f32 0.0, %v2180
        %v2182 = vpop.f32.mrb[0].mxu0
        %v2183 = vadd.f32 0.0, %v2182
        %2184 = vmatprep.mubr.f32.mxu0 %v1307
        %2185 = vmatmul.mubr.f32.gmra.mrb[0].mxu0 %v1306
        %v2186 = vpop.f32.mrb[0].mxu0
        %v2187 = vadd.f32 0.0, %v2186
        %v2188 = vpop.f32.mrb[0].mxu0
        %v2189 = vadd.f32 0.0, %v2188
        %2190 = vmatprep.mubr.f32.mxu0 %v1311
        %2191 = vmatmul.mubr.f32.gmra.mrb[0].mxu0 %v1310
        %v2192 = vpop.f32.mrb[0].mxu0
        %v2193 = vadd.f32 0.0, %v2192
        %v2194 = vpop.f32.mrb[0].mxu0
        %v2195 = vadd.f32 0.0, %v2194
        %2196 = vmatprep.mubr.f32.mxu0 %v1315
        %2197 = vmatmul.mubr.f32.gmra.mrb[0].mxu0 %v1314
        %v2198 = vpop.f32.mrb[0].mxu0
        %v2199 = vadd.f32 0.0, %v2198
        %v2200 = vpop.f32.mrb[0].mxu0
        %v2201 = vadd.f32 0.0, %v2200
        %2202 = vmatprep.mubr.f32.mxu0 %v1319
        %2203 = vmatmul.mubr.f32.gmra.mrb[0].mxu0 %v1318
        %v2204 = vpop.f32.mrb[0].mxu0
        %v2205 = vadd.f32 0.0, %v2204
        %v2206 = vpop.f32.mrb[0].mxu0
        %v2207 = vadd.f32 0.0, %v2206
        %2208 = vmatprep.mubr.f32.mxu0 %v1323
        %2209 = vmatmul.mubr.f32.gmra.mrb[0].mxu0 %v1322
        %v2210 = vpop.f32.mrb[0].mxu0
        %v2211 = vadd.f32 0.0, %v2210
        %v2212 = vpop.f32.mrb[0].mxu0
        %v2213 = vadd.f32 0.0, %v2212
        %2214 = vmatprep.mubr.f32.mxu0 %v1327
        %2215 = vmatmul.mubr.f32.gmra.mrb[0].mxu0 %v1326
        %v2216 = vpop.f32.mrb[0].mxu0
        %v2217 = vadd.f32 0.0, %v2216
        %v2218 = vpop.f32.mrb[0].mxu0
        %v2219 = vadd.f32 0.0, %v2218
        %2220 = vmatprep.mubr.f32.mxu0 %v1331
        %2221 = vmatmul.mubr.f32.gmra.mrb[0].mxu0 %v1330
        %v2222 = vpop.f32.mrb[0].mxu0
        %v2223 = vadd.f32 0.0, %v2222
        %v2224 = vpop.f32.mrb[0].mxu0
        %v2225 = vadd.f32 0.0, %v2224
        %2226 = vmatprep.mubr.f32.mxu0 %v1335
        %2227 = vmatmul.mubr.f32.gmra.mrb[0].mxu0 %v1334
        %v2228 = vpop.f32.mrb[0].mxu0
        %v2229 = vadd.f32 0.0, %v2228
        %v2230 = vpop.f32.mrb[0].mxu0
        %v2231 = vadd.f32 0.0, %v2230
        %2232 = vmatprep.mubr.f32.mxu0 %v1339
        %2233 = vmatmul.mubr.f32.gmra.mrb[0].mxu0 %v1338
        %v2234 = vpop.f32.mrb[0].mxu0
        %v2235 = vadd.f32 0.0, %v2234
        %v2236 = vpop.f32.mrb[0].mxu0
        %v2237 = vadd.f32 0.0, %v2236
        %2238 = vmatprep.mubr.f32.mxu0 %v1343
        %2239 = vmatmul.mubr.f32.gmra.mrb[0].mxu0 %v1342
        %v2240 = vpop.f32.mrb[0].mxu0
        %v2241 = vadd.f32 0.0, %v2240
        %v2242 = vpop.f32.mrb[0].mxu0
        %v2243 = vadd.f32 0.0, %v2242
        %2244 = vmatprep.mubr.f32.mxu0 %v1347
        %2245 = vmatmul.mubr.f32.gmra.mrb[0].mxu0 %v1346
        %v2246 = vpop.f32.mrb[0].mxu0
        %v2247 = vadd.f32 0.0, %v2246
        %v2248 = vpop.f32.mrb[0].mxu0
        %v2249 = vadd.f32 0.0, %v2248
        %2250 = vdwg.mxu0
        %2251 = vmatprep.subr.mxu0 %v1931
        %2252 = vmatpush1.msra.mxu0 %v1930
        %2253 = vmatprep.subr.mxu0 %v1933
        %2254 = vmatpush1.msra.mxu0 %v1932
        %2255 = vmatprep.subr.mxu0 %v1935
        %2256 = vmatpush1.msra.mxu0 %v1934
        %2257 = vmatprep.subr.mxu0 %v1937
        %2258 = vmatpush1.msra.mxu0 %v1936
        %2259 = vmatprep.subr.mxu0 %v1939
        %2260 = vmatpush1.msra.mxu0 %v1938
        %2261 = vmatprep.subr.mxu0 %v1941
        %2262 = vmatpush1.msra.mxu0 %v1940
        %2263 = vmatprep.subr.mxu0 %v1943
        %2264 = vmatpush1.msra.mxu0 %v1942
        %2265 = vmatprep.subr.mxu0 %v1945
        %2266 = vmatpush1.msra.mxu0 %v1944
        %2267 = vmatprep.subr.mxu0 %v1947
        %2268 = vmatpush1.msra.mxu0 %v1946
        %2269 = vmatprep.subr.mxu0 %v1949
        %2270 = vmatpush1.msra.mxu0 %v1948
        %2271 = vmatprep.subr.mxu0 %v1951
        %2272 = vmatpush1.msra.mxu0 %v1950
        %2273 = vmatprep.subr.mxu0 %v1953
        %2274 = vmatpush1.msra.mxu0 %v1952
        %2275 = vmatprep.subr.mxu0 %v1955
        %2276 = vmatpush1.msra.mxu0 %v1954
        %2277 = vmatprep.subr.mxu0 %v1957
        %2278 = vmatpush1.msra.mxu0 %v1956
        %2279 = vmatprep.subr.mxu0 %v1959
        %2280 = vmatpush1.msra.mxu0 %v1958
        %2281 = vmatprep.subr.mxu0 %v1961
        %2282 = vmatpush1.msra.mxu0 %v1960
        %2283 = vmatprep.subr.mxu0 %v1963
        %2284 = vmatpush1.msra.mxu0 %v1962
        %2285 = vmatprep.subr.mxu0 %v1965
        %2286 = vmatpush1.msra.mxu0 %v1964
        %2287 = vmatprep.subr.mxu0 %v1967
        %2288 = vmatpush1.msra.mxu0 %v1966
        %2289 = vmatprep.subr.mxu0 %v1969
        %2290 = vmatpush1.msra.mxu0 %v1968
        %2291 = vmatprep.subr.mxu0 %v1971
        %2292 = vmatpush1.msra.mxu0 %v1970
        %2293 = vmatprep.subr.mxu0 %v1973
        %2294 = vmatpush1.msra.mxu0 %v1972
        %2295 = vmatprep.subr.mxu0 %v1975
        %2296 = vmatpush1.msra.mxu0 %v1974
        %2297 = vmatprep.subr.mxu0 %v1977
        %2298 = vmatpush1.msra.mxu0 %v1976
        %2299 = vmatprep.subr.mxu0 %v1979
        %2300 = vmatpush1.msra.mxu0 %v1978
        %2301 = vmatprep.subr.mxu0 %v1981
        %2302 = vmatpush1.msra.mxu0 %v1980
        %2303 = vmatprep.subr.mxu0 %v1983
        %2304 = vmatpush1.msra.mxu0 %v1982
        %2305 = vmatprep.subr.mxu0 %v1985
        %2306 = vmatpush1.msra.mxu0 %v1984
        %2307 = vmatprep.subr.mxu0 %v1987
        %2308 = vmatpush1.msra.mxu0 %v1986
        %2309 = vmatprep.subr.mxu0 %v1989
        %2310 = vmatpush1.msra.mxu0 %v1988
        %2311 = vmatprep.subr.mxu0 %v1991
        %2312 = vmatpush1.msra.mxu0 %v1990
        %2313 = vmatprep.subr.mxu0 %v1993
        %2314 = vmatpush1.msra.mxu0 %v1992
        %2315 = vmatprep.mubr.f32.mxu0 %v1225
        %2316 = vmatmul.mubr.f32.gmra.mrb[0].mxu0 %v1224
        %v2317 = vpop.f32.mrb[0].mxu0
        %v2318 = vadd.f32 %v2061, %v2317
        %v2319 = vpop.f32.mrb[0].mxu0
        %v2320 = vadd.f32 %v2063, %v2319
        %2321 = vmatprep.mubr.f32.mxu0 %v1229
        %2322 = vmatmul.mubr.f32.gmra.mrb[0].mxu0 %v1228
        %v2323 = vpop.f32.mrb[0].mxu0
        %v2324 = vadd.f32 %v2067, %v2323
        %v2325 = vpop.f32.mrb[0].mxu0
        %v2326 = vadd.f32 %v2069, %v2325
        %2327 = vmatprep.mubr.f32.mxu0 %v1233
        %2328 = vmatmul.mubr.f32.gmra.mrb[0].mxu0 %v1232
        %v2329 = vpop.f32.mrb[0].mxu0
        %v2330 = vadd.f32 %v2073, %v2329
        %v2331 = vpop.f32.mrb[0].mxu0
        %v2332 = vadd.f32 %v2075, %v2331
        %2333 = vmatprep.mubr.f32.mxu0 %v1237
        %2334 = vmatmul.mubr.f32.gmra.mrb[0].mxu0 %v1236
        %v2335 = vpop.f32.mrb[0].mxu0
        %v2336 = vadd.f32 %v2079, %v2335
        %v2337 = vpop.f32.mrb[0].mxu0
        %v2338 = vadd.f32 %v2081, %v2337
        %2339 = vmatprep.mubr.f32.mxu0 %v1241
        %2340 = vmatmul.mubr.f32.gmra.mrb[0].mxu0 %v1240
        %v2341 = vpop.f32.mrb[0].mxu0
        %v2342 = vadd.f32 %v2085, %v2341
        %v2343 = vpop.f32.mrb[0].mxu0
        %v2344 = vadd.f32 %v2087, %v2343
        %2345 = vmatprep.mubr.f32.mxu0 %v1245
        %2346 = vmatmul.mubr.f32.gmra.mrb[0].mxu0 %v1244
        %v2347 = vpop.f32.mrb[0].mxu0
        %v2348 = vadd.f32 %v2091, %v2347
        %v2349 = vpop.f32.mrb[0].mxu0
        %v2350 = vadd.f32 %v2093, %v2349
        %2351 = vmatprep.mubr.f32.mxu0 %v1249
        %2352 = vmatmul.mubr.f32.gmra.mrb[0].mxu0 %v1248
        %v2353 = vpop.f32.mrb[0].mxu0
        %v2354 = vadd.f32 %v2097, %v2353
        %v2355 = vpop.f32.mrb[0].mxu0
        %v2356 = vadd.f32 %v2099, %v2355
        %2357 = vmatprep.mubr.f32.mxu0 %v1253
        %2358 = vmatmul.mubr.f32.gmra.mrb[0].mxu0 %v1252
        %v2359 = vpop.f32.mrb[0].mxu0
        %v2360 = vadd.f32 %v2103, %v2359
        %v2361 = vpop.f32.mrb[0].mxu0
        %v2362 = vadd.f32 %v2105, %v2361
        %2363 = vmatprep.mubr.f32.mxu0 %v1257
        %2364 = vmatmul.mubr.f32.gmra.mrb[0].mxu0 %v1256
        %v2365 = vpop.f32.mrb[0].mxu0
        %v2366 = vadd.f32 %v2109, %v2365
        %v2367 = vpop.f32.mrb[0].mxu0
        %v2368 = vadd.f32 %v2111, %v2367
        %2369 = vmatprep.mubr.f32.mxu0 %v1261
        %2370 = vmatmul.mubr.f32.gmra.mrb[0].mxu0 %v1260
        %v2371 = vpop.f32.mrb[0].mxu0
        %v2372 = vadd.f32 %v2115, %v2371
        %v2373 = vpop.f32.mrb[0].mxu0
        %v2374 = vadd.f32 %v2117, %v2373
        %2375 = vmatprep.mubr.f32.mxu0 %v1265
        %2376 = vmatmul.mubr.f32.gmra.mrb[0].mxu0 %v1264
        %v2377 = vpop.f32.mrb[0].mxu0
        %v2378 = vadd.f32 %v2121, %v2377
        %v2379 = vpop.f32.mrb[0].mxu0
        %v2380 = vadd.f32 %v2123, %v2379
        %2381 = vmatprep.mubr.f32.mxu0 %v1269
        %2382 = vmatmul.mubr.f32.gmra.mrb[0].mxu0 %v1268
        %v2383 = vpop.f32.mrb[0].mxu0
        %v2384 = vadd.f32 %v2127, %v2383
        %v2385 = vpop.f32.mrb[0].mxu0
        %v2386 = vadd.f32 %v2129, %v2385
        %2387 = vmatprep.mubr.f32.mxu0 %v1273
        %2388 = vmatmul.mubr.f32.gmra.mrb[0].mxu0 %v1272
        %v2389 = vpop.f32.mrb[0].mxu0
        %v2390 = vadd.f32 %v2133, %v2389
        %v2391 = vpop.f32.mrb[0].mxu0
        %v2392 = vadd.f32 %v2135, %v2391
        %2393 = vmatprep.mubr.f32.mxu0 %v1277
        %2394 = vmatmul.mubr.f32.gmra.mrb[0].mxu0 %v1276
        %v2395 = vpop.f32.mrb[0].mxu0
        %v2396 = vadd.f32 %v2139, %v2395
        %v2397 = vpop.f32.mrb[0].mxu0
        %v2398 = vadd.f32 %v2141, %v2397
        %2399 = vmatprep.mubr.f32.mxu0 %v1281
        %2400 = vmatmul.mubr.f32.gmra.mrb[0].mxu0 %v1280
        %v2401 = vpop.f32.mrb[0].mxu0
        %v2402 = vadd.f32 %v2145, %v2401
        %v2403 = vpop.f32.mrb[0].mxu0
        %v2404 = vadd.f32 %v2147, %v2403
        %2405 = vmatprep.mubr.f32.mxu0 %v1285
        %2406 = vmatmul.mubr.f32.gmra.mrb[0].mxu0 %v1284
        %v2407 = vpop.f32.mrb[0].mxu0
        %v2408 = vadd.f32 %v2151, %v2407
        %v2409 = vpop.f32.mrb[0].mxu0
        %v2410 = vadd.f32 %v2153, %v2409
        %2411 = vmatprep.mubr.f32.mxu0 %v1289
        %2412 = vmatmul.mubr.f32.gmra.mrb[0].mxu0 %v1288
        %v2413 = vpop.f32.mrb[0].mxu0
        %v2414 = vadd.f32 %v2157, %v2413
        %v2415 = vpop.f32.mrb[0].mxu0
        %v2416 = vadd.f32 %v2159, %v2415
        %2417 = vmatprep.mubr.f32.mxu0 %v1293
        %2418 = vmatmul.mubr.f32.gmra.mrb[0].mxu0 %v1292
        %v2419 = vpop.f32.mrb[0].mxu0
        %v2420 = vadd.f32 %v2163, %v2419
        %v2421 = vpop.f32.mrb[0].mxu0
        %v2422 = vadd.f32 %v2165, %v2421
        %2423 = vmatprep.mubr.f32.mxu0 %v1297
        %2424 = vmatmul.mubr.f32.gmra.mrb[0].mxu0 %v1296
        %v2425 = vpop.f32.mrb[0].mxu0
        %v2426 = vadd.f32 %v2169, %v2425
        %v2427 = vpop.f32.mrb[0].mxu0
        %v2428 = vadd.f32 %v2171, %v2427
        %2429 = vmatprep.mubr.f32.mxu0 %v1301
        %2430 = vmatmul.mubr.f32.gmra.mrb[0].mxu0 %v1300
        %v2431 = vpop.f32.mrb[0].mxu0
        %v2432 = vadd.f32 %v2175, %v2431
        %v2433 = vpop.f32.mrb[0].mxu0
        %v2434 = vadd.f32 %v2177, %v2433
        %2435 = vmatprep.mubr.f32.mxu0 %v1305
        %2436 = vmatmul.mubr.f32.gmra.mrb[0].mxu0 %v1304
        %v2437 = vpop.f32.mrb[0].mxu0
        %v2438 = vadd.f32 %v2181, %v2437
        %v2439 = vpop.f32.mrb[0].mxu0
        %v2440 = vadd.f32 %v2183, %v2439
        %2441 = vmatprep.mubr.f32.mxu0 %v1309
        %2442 = vmatmul.mubr.f32.gmra.mrb[0].mxu0 %v1308
        %v2443 = vpop.f32.mrb[0].mxu0
        %v2444 = vadd.f32 %v2187, %v2443
        %v2445 = vpop.f32.mrb[0].mxu0
        %v2446 = vadd.f32 %v2189, %v2445
        %2447 = vmatprep.mubr.f32.mxu0 %v1313
        %2448 = vmatmul.mubr.f32.gmra.mrb[0].mxu0 %v1312
        %v2449 = vpop.f32.mrb[0].mxu0
        %v2450 = vadd.f32 %v2193, %v2449
        %v2451 = vpop.f32.mrb[0].mxu0
        %v2452 = vadd.f32 %v2195, %v2451
        %2453 = vmatprep.mubr.f32.mxu0 %v1317
        %2454 = vmatmul.mubr.f32.gmra.mrb[0].mxu0 %v1316
        %v2455 = vpop.f32.mrb[0].mxu0
        %v2456 = vadd.f32 %v2199, %v2455
        %v2457 = vpop.f32.mrb[0].mxu0
        %v2458 = vadd.f32 %v2201, %v2457
        %2459 = vmatprep.mubr.f32.mxu0 %v1321
        %2460 = vmatmul.mubr.f32.gmra.mrb[0].mxu0 %v1320
        %v2461 = vpop.f32.mrb[0].mxu0
        %v2462 = vadd.f32 %v2205, %v2461
        %v2463 = vpop.f32.mrb[0].mxu0
        %v2464 = vadd.f32 %v2207, %v2463
        %2465 = vmatprep.mubr.f32.mxu0 %v1325
        %2466 = vmatmul.mubr.f32.gmra.mrb[0].mxu0 %v1324
        %v2467 = vpop.f32.mrb[0].mxu0
        %v2468 = vadd.f32 %v2211, %v2467
        %v2469 = vpop.f32.mrb[0].mxu0
        %v2470 = vadd.f32 %v2213, %v2469
        %2471 = vmatprep.mubr.f32.mxu0 %v1329
        %2472 = vmatmul.mubr.f32.gmra.mrb[0].mxu0 %v1328
        %v2473 = vpop.f32.mrb[0].mxu0
        %v2474 = vadd.f32 %v2217, %v2473
        %v2475 = vpop.f32.mrb[0].mxu0
        %v2476 = vadd.f32 %v2219, %v2475
        %2477 = vmatprep.mubr.f32.mxu0 %v1333
        %2478 = vmatmul.mubr.f32.gmra.mrb[0].mxu0 %v1332
        %v2479 = vpop.f32.mrb[0].mxu0
        %v2480 = vadd.f32 %v2223, %v2479
        %v2481 = vpop.f32.mrb[0].mxu0
        %v2482 = vadd.f32 %v2225, %v2481
        %2483 = vmatprep.mubr.f32.mxu0 %v1337
        %2484 = vmatmul.mubr.f32.gmra.mrb[0].mxu0 %v1336
        %v2485 = vpop.f32.mrb[0].mxu0
        %v2486 = vadd.f32 %v2229, %v2485
        %v2487 = vpop.f32.mrb[0].mxu0
        %v2488 = vadd.f32 %v2231, %v2487
        %2489 = vmatprep.mubr.f32.mxu0 %v1341
        %2490 = vmatmul.mubr.f32.gmra.mrb[0].mxu0 %v1340
        %v2491 = vpop.f32.mrb[0].mxu0
        %v2492 = vadd.f32 %v2235, %v2491
        %v2493 = vpop.f32.mrb[0].mxu0
        %v2494 = vadd.f32 %v2237, %v2493
        %2495 = vmatprep.mubr.f32.mxu0 %v1345
        %2496 = vmatmul.mubr.f32.gmra.mrb[0].mxu0 %v1344
        %v2497 = vpop.f32.mrb[0].mxu0
        %v2498 = vadd.f32 %v2241, %v2497
        %v2499 = vpop.f32.mrb[0].mxu0
        %v2500 = vadd.f32 %v2243, %v2499
        %2501 = vmatprep.mubr.f32.mxu0 %v1349
        %2502 = vmatmul.mubr.f32.gmra.mrb[0].mxu0 %v1348
        %v2503 = vpop.f32.mrb[0].mxu0
        %v2504 = vadd.f32 %v2247, %v2503
        %v2505 = vpop.f32.mrb[0].mxu0
        %v2506 = vadd.f32 %v2249, %v2505
        %2507 = vdwg.mxu0
        %v2508 = vadd.f32 %v1802, %v2318
        %v2509 = vadd.f32 %v1803, %v2320
        %v2510 = vadd.f32 %v1804, %v2324
        %v2511 = vadd.f32 %v1805, %v2326
        %v2512 = vadd.f32 %v1806, %v2330
        %v2513 = vadd.f32 %v1807, %v2332
        %v2514 = vadd.f32 %v1808, %v2336
        %v2515 = vadd.f32 %v1809, %v2338
        %v2516 = vadd.f32 %v1810, %v2342
        %v2517 = vadd.f32 %v1811, %v2344
        %v2518 = vadd.f32 %v1812, %v2348
        %v2519 = vadd.f32 %v1813, %v2350
        %v2520 = vadd.f32 %v1814, %v2354
        %v2521 = vadd.f32 %v1815, %v2356
        %v2522 = vadd.f32 %v1816, %v2360
        %v2523 = vadd.f32 %v1817, %v2362
        %v2524 = vadd.f32 %v1818, %v2366
        %v2525 = vadd.f32 %v1819, %v2368
        %v2526 = vadd.f32 %v1820, %v2372
        %v2527 = vadd.f32 %v1821, %v2374
        %v2528 = vadd.f32 %v1822, %v2378
        %v2529 = vadd.f32 %v1823, %v2380
        %v2530 = vadd.f32 %v1824, %v2384
        %v2531 = vadd.f32 %v1825, %v2386
        %v2532 = vadd.f32 %v1826, %v2390
        %v2533 = vadd.f32 %v1827, %v2392
        %v2534 = vadd.f32 %v1828, %v2396
        %v2535 = vadd.f32 %v1829, %v2398
        %v2536 = vadd.f32 %v1830, %v2402
        %v2537 = vadd.f32 %v1831, %v2404
        %v2538 = vadd.f32 %v1832, %v2408
        %v2539 = vadd.f32 %v1833, %v2410
        %v2540 = vadd.f32 %v1834, %v2414
        %v2541 = vadd.f32 %v1835, %v2416
        %v2542 = vadd.f32 %v1836, %v2420
        %v2543 = vadd.f32 %v1837, %v2422
        %v2544 = vadd.f32 %v1838, %v2426
        %v2545 = vadd.f32 %v1839, %v2428
        %v2546 = vadd.f32 %v1840, %v2432
        %v2547 = vadd.f32 %v1841, %v2434
        %v2548 = vadd.f32 %v1842, %v2438
        %v2549 = vadd.f32 %v1843, %v2440
        %v2550 = vadd.f32 %v1844, %v2444
        %v2551 = vadd.f32 %v1845, %v2446
        %v2552 = vadd.f32 %v1846, %v2450
        %v2553 = vadd.f32 %v1847, %v2452
        %v2554 = vadd.f32 %v1848, %v2456
        %v2555 = vadd.f32 %v1849, %v2458
        %v2556 = vadd.f32 %v1850, %v2462
        %v2557 = vadd.f32 %v1851, %v2464
        %v2558 = vadd.f32 %v1852, %v2468
        %v2559 = vadd.f32 %v1853, %v2470
        %v2560 = vadd.f32 %v1854, %v2474
        %v2561 = vadd.f32 %v1855, %v2476
        %v2562 = vadd.f32 %v1856, %v2480
        %v2563 = vadd.f32 %v1857, %v2482
        %v2564 = vadd.f32 %v1858, %v2486
        %v2565 = vadd.f32 %v1859, %v2488
        %v2566 = vadd.f32 %v1860, %v2492
        %v2567 = vadd.f32 %v1861, %v2494
        %v2568 = vadd.f32 %v1862, %v2498
        %v2569 = vadd.f32 %v1863, %v2500
        %v2570 = vadd.f32 %v1864, %v2504
        %v2571 = vadd.f32 %v1865, %v2506
        %2572 = vst [vmem:[#allocation2] sm:$0xff] %v2508
        %2573 = vst [vmem:[#allocation2 + $0x8] sm:$0xff] %v2509
        %2574 = vst [vmem:[#allocation2 + $0x10] sm:$0xff] %v2510
        %2575 = vst [vmem:[#allocation2 + $0x18] sm:$0xff] %v2511
        %2576 = vst [vmem:[#allocation2 + $0x20] sm:$0xff] %v2512
        %2577 = vst [vmem:[#allocation2 + $0x28] sm:$0xff] %v2513
        %2578 = vst [vmem:[#allocation2 + $0x30] sm:$0xff] %v2514
        %2579 = vst [vmem:[#allocation2 + $0x38] sm:$0xff] %v2515
        %2580 = vst [vmem:[#allocation2 + $0x40] sm:$0xff] %v2516
        %2581 = vst [vmem:[#allocation2 + $0x48] sm:$0xff] %v2517
        %2582 = vst [vmem:[#allocation2 + $0x50] sm:$0xff] %v2518
        %2583 = vst [vmem:[#allocation2 + $0x58] sm:$0xff] %v2519
        %2584 = vst [vmem:[#allocation2 + $0x60] sm:$0xff] %v2520
        %2585 = vst [vmem:[#allocation2 + $0x68] sm:$0xff] %v2521
        %2586 = vst [vmem:[#allocation2 + $0x70] sm:$0xff] %v2522
        %2587 = vst [vmem:[#allocation2 + $0x78] sm:$0xff] %v2523
        %2588 = vst [vmem:[#allocation2 + $0x80] sm:$0xff] %v2524
        %2589 = vst [vmem:[#allocation2 + $0x88] sm:$0xff] %v2525
        %2590 = vst [vmem:[#allocation2 + $0x90] sm:$0xff] %v2526
        %2591 = vst [vmem:[#allocation2 + $0x98] sm:$0xff] %v2527
        %2592 = vst [vmem:[#allocation2 + $0xa0] sm:$0xff] %v2528
        %2593 = vst [vmem:[#allocation2 + $0xa8] sm:$0xff] %v2529
        %2594 = vst [vmem:[#allocation2 + $0xb0] sm:$0xff] %v2530
        %2595 = vst [vmem:[#allocation2 + $0xb8] sm:$0xff] %v2531
        %2596 = vst [vmem:[#allocation2 + $0xc0] sm:$0xff] %v2532
        %2597 = vst [vmem:[#allocation2 + $0xc8] sm:$0xff] %v2533
        %2598 = vst [vmem:[#allocation2 + $0xd0] sm:$0xff] %v2534
        %2599 = vst [vmem:[#allocation2 + $0xd8] sm:$0xff] %v2535
        %2600 = vst [vmem:[#allocation2 + $0xe0] sm:$0xff] %v2536
        %2601 = vst [vmem:[#allocation2 + $0xe8] sm:$0xff] %v2537
        %2602 = vst [vmem:[#allocation2 + $0xf0] sm:$0xff] %v2538
        %2603 = vst [vmem:[#allocation2 + $0xf8] sm:$0xff] %v2539
        %2604 = vst [vmem:[#allocation2 + $0x100] sm:$0xff] %v2540
        %2605 = vst [vmem:[#allocation2 + $0x108] sm:$0xff] %v2541
        %2606 = vst [vmem:[#allocation2 + $0x110] sm:$0xff] %v2542
        %2607 = vst [vmem:[#allocation2 + $0x118] sm:$0xff] %v2543
        %2608 = vst [vmem:[#allocation2 + $0x120] sm:$0xff] %v2544
        %2609 = vst [vmem:[#allocation2 + $0x128] sm:$0xff] %v2545
        %2610 = vst [vmem:[#allocation2 + $0x130] sm:$0xff] %v2546
        %2611 = vst [vmem:[#allocation2 + $0x138] sm:$0xff] %v2547
        %2612 = vst [vmem:[#allocation2 + $0x140] sm:$0xff] %v2548
        %2613 = vst [vmem:[#allocation2 + $0x148] sm:$0xff] %v2549
        %2614 = vst [vmem:[#allocation2 + $0x150] sm:$0xff] %v2550
        %2615 = vst [vmem:[#allocation2 + $0x158] sm:$0xff] %v2551
        %2616 = vst [vmem:[#allocation2 + $0x160] sm:$0xff] %v2552
        %2617 = vst [vmem:[#allocation2 + $0x168] sm:$0xff] %v2553
        %2618 = vst [vmem:[#allocation2 + $0x170] sm:$0xff] %v2554
        %2619 = vst [vmem:[#allocation2 + $0x178] sm:$0xff] %v2555
        %2620 = vst [vmem:[#allocation2 + $0x180] sm:$0xff] %v2556
        %2621 = vst [vmem:[#allocation2 + $0x188] sm:$0xff] %v2557
        %2622 = vst [vmem:[#allocation2 + $0x190] sm:$0xff] %v2558
        %2623 = vst [vmem:[#allocation2 + $0x198] sm:$0xff] %v2559
        %2624 = vst [vmem:[#allocation2 + $0x1a0] sm:$0xff] %v2560
        %2625 = vst [vmem:[#allocation2 + $0x1a8] sm:$0xff] %v2561
        %2626 = vst [vmem:[#allocation2 + $0x1b0] sm:$0xff] %v2562
        %2627 = vst [vmem:[#allocation2 + $0x1b8] sm:$0xff] %v2563
        %2628 = vst [vmem:[#allocation2 + $0x1c0] sm:$0xff] %v2564
        %2629 = vst [vmem:[#allocation2 + $0x1c8] sm:$0xff] %v2565
        %2630 = vst [vmem:[#allocation2 + $0x1d0] sm:$0xff] %v2566
        %2631 = vst [vmem:[#allocation2 + $0x1d8] sm:$0xff] %v2567
        %2632 = vst [vmem:[#allocation2 + $0x1e0] sm:$0xff] %v2568
        %2633 = vst [vmem:[#allocation2 + $0x1e8] sm:$0xff] %v2569
        %2634 = vst [vmem:[#allocation2 + $0x1f0] sm:$0xff] %v2570
        %2635 = vst [vmem:[#allocation2 + $0x1f8] sm:$0xff] %v2571
        // Predicated region
        $region57: #{autoencoder_forward.1} parent=39 // pred_check
          %p2636 = pneg %p1734
        $region58: #{autoencoder_forward.1} parent=39 // pred_check_branch
          %2638 = sbr.rel (%p2636) target = $region60
        $region59: #{autoencoder_forward.1} parent=39 // pred_region
          %v2639 = vld [vmem:[#allocation2] sm:$0xff]
          %v2640 = vld [vmem:[#allocation2 + $0x8] sm:$0xff]
          %v2641 = vld [vmem:[#allocation2 + $0x10] sm:$0xff]
          %v2642 = vld [vmem:[#allocation2 + $0x18] sm:$0xff]
          %v2643 = vld [vmem:[#allocation2 + $0x20] sm:$0xff]
          %v2644 = vld [vmem:[#allocation2 + $0x28] sm:$0xff]
          %v2645 = vld [vmem:[#allocation2 + $0x30] sm:$0xff]
          %v2646 = vld [vmem:[#allocation2 + $0x38] sm:$0xff]
          %v2647 = vld [vmem:[#allocation2 + $0x40] sm:$0xff]
          %v2648 = vld [vmem:[#allocation2 + $0x48] sm:$0xff]
          %v2649 = vld [vmem:[#allocation2 + $0x50] sm:$0xff]
          %v2650 = vld [vmem:[#allocation2 + $0x58] sm:$0xff]
          %v2651 = vld [vmem:[#allocation2 + $0x60] sm:$0xff]
          %v2652 = vld [vmem:[#allocation2 + $0x68] sm:$0xff]
          %v2653 = vld [vmem:[#allocation2 + $0x70] sm:$0xff]
          %v2654 = vld [vmem:[#allocation2 + $0x78] sm:$0xff]
          %v2655 = vld [vmem:[#allocation2 + $0x80] sm:$0xff]
          %v2656 = vld [vmem:[#allocation2 + $0x88] sm:$0xff]
          %v2657 = vld [vmem:[#allocation2 + $0x90] sm:$0xff]
          %v2658 = vld [vmem:[#allocation2 + $0x98] sm:$0xff]
          %v2659 = vld [vmem:[#allocation2 + $0xa0] sm:$0xff]
          %v2660 = vld [vmem:[#allocation2 + $0xa8] sm:$0xff]
          %v2661 = vld [vmem:[#allocation2 + $0xb0] sm:$0xff]
          %v2662 = vld [vmem:[#allocation2 + $0xb8] sm:$0xff]
          %v2663 = vld [vmem:[#allocation2 + $0xc0] sm:$0xff]
          %v2664 = vld [vmem:[#allocation2 + $0xc8] sm:$0xff]
          %v2665 = vld [vmem:[#allocation2 + $0xd0] sm:$0xff]
          %v2666 = vld [vmem:[#allocation2 + $0xd8] sm:$0xff]
          %v2667 = vld [vmem:[#allocation2 + $0xe0] sm:$0xff]
          %v2668 = vld [vmem:[#allocation2 + $0xe8] sm:$0xff]
          %v2669 = vld [vmem:[#allocation2 + $0xf0] sm:$0xff]
          %v2670 = vld [vmem:[#allocation2 + $0xf8] sm:$0xff]
          %v2671 = vld [vmem:[#allocation2 + $0x100] sm:$0xff]
          %v2672 = vld [vmem:[#allocation2 + $0x108] sm:$0xff]
          %v2673 = vld [vmem:[#allocation2 + $0x110] sm:$0xff]
          %v2674 = vld [vmem:[#allocation2 + $0x118] sm:$0xff]
          %v2675 = vld [vmem:[#allocation2 + $0x120] sm:$0xff]
          %v2676 = vld [vmem:[#allocation2 + $0x128] sm:$0xff]
          %v2677 = vld [vmem:[#allocation2 + $0x130] sm:$0xff]
          %v2678 = vld [vmem:[#allocation2 + $0x138] sm:$0xff]
          %v2679 = vld [vmem:[#allocation2 + $0x140] sm:$0xff]
          %v2680 = vld [vmem:[#allocation2 + $0x148] sm:$0xff]
          %v2681 = vld [vmem:[#allocation2 + $0x150] sm:$0xff]
          %v2682 = vld [vmem:[#allocation2 + $0x158] sm:$0xff]
          %v2683 = vld [vmem:[#allocation2 + $0x160] sm:$0xff]
          %v2684 = vld [vmem:[#allocation2 + $0x168] sm:$0xff]
          %v2685 = vld [vmem:[#allocation2 + $0x170] sm:$0xff]
          %v2686 = vld [vmem:[#allocation2 + $0x178] sm:$0xff]
          %v2687 = vld [vmem:[#allocation2 + $0x180] sm:$0xff]
          %v2688 = vld [vmem:[#allocation2 + $0x188] sm:$0xff]
          %v2689 = vld [vmem:[#allocation2 + $0x190] sm:$0xff]
          %v2690 = vld [vmem:[#allocation2 + $0x198] sm:$0xff]
          %v2691 = vld [vmem:[#allocation2 + $0x1a0] sm:$0xff]
          %v2692 = vld [vmem:[#allocation2 + $0x1a8] sm:$0xff]
          %v2693 = vld [vmem:[#allocation2 + $0x1b0] sm:$0xff]
          %v2694 = vld [vmem:[#allocation2 + $0x1b8] sm:$0xff]
          %v2695 = vld [vmem:[#allocation2 + $0x1c0] sm:$0xff]
          %v2696 = vld [vmem:[#allocation2 + $0x1c8] sm:$0xff]
          %v2697 = vld [vmem:[#allocation2 + $0x1d0] sm:$0xff]
          %v2698 = vld [vmem:[#allocation2 + $0x1d8] sm:$0xff]
          %v2699 = vld [vmem:[#allocation2 + $0x1e0] sm:$0xff]
          %v2700 = vld [vmem:[#allocation2 + $0x1e8] sm:$0xff]
          %v2701 = vld [vmem:[#allocation2 + $0x1f0] sm:$0xff]
          %v2702 = vld [vmem:[#allocation2 + $0x1f8] sm:$0xff]
          %v2703 = vadd.f32 %v2639, %v487
          %v2704 = vadd.f32 %v2640, %v491
          %v2705 = vadd.f32 %v2641, %v487
          %v2706 = vadd.f32 %v2642, %v491
          %v2707 = vadd.f32 %v2643, %v487
          %v2708 = vadd.f32 %v2644, %v491
          %v2709 = vadd.f32 %v2645, %v487
          %v2710 = vadd.f32 %v2646, %v491
          %v2711 = vadd.f32 %v2647, %v487
          %v2712 = vadd.f32 %v2648, %v491
          %v2713 = vadd.f32 %v2649, %v487
          %v2714 = vadd.f32 %v2650, %v491
          %v2715 = vadd.f32 %v2651, %v487
          %v2716 = vadd.f32 %v2652, %v491
          %v2717 = vadd.f32 %v2653, %v487
          %v2718 = vadd.f32 %v2654, %v491
          %v2719 = vadd.f32 %v2655, %v487
          %v2720 = vadd.f32 %v2656, %v491
          %v2721 = vadd.f32 %v2657, %v487
          %v2722 = vadd.f32 %v2658, %v491
          %v2723 = vadd.f32 %v2659, %v487
          %v2724 = vadd.f32 %v2660, %v491
          %v2725 = vadd.f32 %v2661, %v487
          %v2726 = vadd.f32 %v2662, %v491
          %v2727 = vadd.f32 %v2663, %v487
          %v2728 = vadd.f32 %v2664, %v491
          %v2729 = vadd.f32 %v2665, %v487
          %v2730 = vadd.f32 %v2666, %v491
          %v2731 = vadd.f32 %v2667, %v487
          %v2732 = vadd.f32 %v2668, %v491
          %v2733 = vadd.f32 %v2669, %v487
          %v2734 = vadd.f32 %v2670, %v491
          %v2735 = vadd.f32 %v2671, %v487
          %v2736 = vadd.f32 %v2672, %v491
          %v2737 = vadd.f32 %v2673, %v487
          %v2738 = vadd.f32 %v2674, %v491
          %v2739 = vadd.f32 %v2675, %v487
          %v2740 = vadd.f32 %v2676, %v491
          %v2741 = vadd.f32 %v2677, %v487
          %v2742 = vadd.f32 %v2678, %v491
          %v2743 = vadd.f32 %v2679, %v487
          %v2744 = vadd.f32 %v2680, %v491
          %v2745 = vadd.f32 %v2681, %v487
          %v2746 = vadd.f32 %v2682, %v491
          %v2747 = vadd.f32 %v2683, %v487
          %v2748 = vadd.f32 %v2684, %v491
          %v2749 = vadd.f32 %v2685, %v487
          %v2750 = vadd.f32 %v2686, %v491
          %v2751 = vadd.f32 %v2687, %v487
          %v2752 = vadd.f32 %v2688, %v491
          %v2753 = vadd.f32 %v2689, %v487
          %v2754 = vadd.f32 %v2690, %v491
          %v2755 = vadd.f32 %v2691, %v487
          %v2756 = vadd.f32 %v2692, %v491
          %v2757 = vadd.f32 %v2693, %v487
          %v2758 = vadd.f32 %v2694, %v491
          %v2759 = vadd.f32 %v2695, %v487
          %v2760 = vadd.f32 %v2696, %v491
          %v2761 = vadd.f32 %v2697, %v487
          %v2762 = vadd.f32 %v2698, %v491
          %v2763 = vadd.f32 %v2699, %v487
          %v2764 = vadd.f32 %v2700, %v491
          %v2765 = vadd.f32 %v2701, %v487
          %v2766 = vadd.f32 %v2702, %v491
          %v2767 = vsub.f32 %v2703, %v418
          %v2768 = vsub.f32 %v2704, %v419
          %v2769 = vsub.f32 %v2705, %v420
          %v2770 = vsub.f32 %v2706, %v421
          %v2771 = vsub.f32 %v2707, %v422
          %v2772 = vsub.f32 %v2708, %v423
          %v2773 = vsub.f32 %v2709, %v424
          %v2774 = vsub.f32 %v2710, %v425
          %v2775 = vsub.f32 %v2711, %v426
          %v2776 = vsub.f32 %v2712, %v427
          %v2777 = vsub.f32 %v2713, %v428
          %v2778 = vsub.f32 %v2714, %v429
          %v2779 = vsub.f32 %v2715, %v430
          %v2780 = vsub.f32 %v2716, %v431
          %v2781 = vsub.f32 %v2717, %v432
          %v2782 = vsub.f32 %v2718, %v433
          %v2783 = vsub.f32 %v2719, %v434
          %v2784 = vsub.f32 %v2720, %v435
          %v2785 = vsub.f32 %v2721, %v436
          %v2786 = vsub.f32 %v2722, %v437
          %v2787 = vsub.f32 %v2723, %v438
          %v2788 = vsub.f32 %v2724, %v439
          %v2789 = vsub.f32 %v2725, %v440
          %v2790 = vsub.f32 %v2726, %v441
          %v2791 = vsub.f32 %v2727, %v442
          %v2792 = vsub.f32 %v2728, %v443
          %v2793 = vsub.f32 %v2729, %v444
          %v2794 = vsub.f32 %v2730, %v445
          %v2795 = vsub.f32 %v2731, %v446
          %v2796 = vsub.f32 %v2732, %v447
          %v2797 = vsub.f32 %v2733, %v448
          %v2798 = vsub.f32 %v2734, %v449
          %v2799 = vsub.f32 %v2735, %v450
          %v2800 = vsub.f32 %v2736, %v451
          %v2801 = vsub.f32 %v2737, %v452
          %v2802 = vsub.f32 %v2738, %v453
          %v2803 = vsub.f32 %v2739, %v454
          %v2804 = vsub.f32 %v2740, %v455
          %v2805 = vsub.f32 %v2741, %v456
          %v2806 = vsub.f32 %v2742, %v457
          %v2807 = vsub.f32 %v2743, %v458
          %v2808 = vsub.f32 %v2744, %v459
          %v2809 = vsub.f32 %v2745, %v460
          %v2810 = vsub.f32 %v2746, %v461
          %v2811 = vsub.f32 %v2747, %v462
          %v2812 = vsub.f32 %v2748, %v463
          %v2813 = vsub.f32 %v2749, %v464
          %v2814 = vsub.f32 %v2750, %v465
          %v2815 = vsub.f32 %v2751, %v466
          %v2816 = vsub.f32 %v2752, %v467
          %v2817 = vsub.f32 %v2753, %v468
          %v2818 = vsub.f32 %v2754, %v469
          %v2819 = vsub.f32 %v2755, %v470
          %v2820 = vsub.f32 %v2756, %v471
          %v2821 = vsub.f32 %v2757, %v472
          %v2822 = vsub.f32 %v2758, %v473
          %v2823 = vsub.f32 %v2759, %v474
          %v2824 = vsub.f32 %v2760, %v475
          %v2825 = vsub.f32 %v2761, %v476
          %v2826 = vsub.f32 %v2762, %v477
          %v2827 = vsub.f32 %v2763, %v478
          %v2828 = vsub.f32 %v2764, %v479
          %v2829 = vsub.f32 %v2765, %v480
          %v2830 = vsub.f32 %v2766, %v481
          %v2831 = vmul.f32 %v2767, %v2767
          %v2832 = vmul.f32 %v2768, %v2768
          %v2833 = vmul.f32 %v2769, %v2769
          %v2834 = vmul.f32 %v2770, %v2770
          %v2835 = vmul.f32 %v2771, %v2771
          %v2836 = vmul.f32 %v2772, %v2772
          %v2837 = vmul.f32 %v2773, %v2773
          %v2838 = vmul.f32 %v2774, %v2774
          %v2839 = vmul.f32 %v2775, %v2775
          %v2840 = vmul.f32 %v2776, %v2776
          %v2841 = vmul.f32 %v2777, %v2777
          %v2842 = vmul.f32 %v2778, %v2778
          %v2843 = vmul.f32 %v2779, %v2779
          %v2844 = vmul.f32 %v2780, %v2780
          %v2845 = vmul.f32 %v2781, %v2781
          %v2846 = vmul.f32 %v2782, %v2782
          %v2847 = vmul.f32 %v2783, %v2783
          %v2848 = vmul.f32 %v2784, %v2784
          %v2849 = vmul.f32 %v2785, %v2785
          %v2850 = vmul.f32 %v2786, %v2786
          %v2851 = vmul.f32 %v2787, %v2787
          %v2852 = vmul.f32 %v2788, %v2788
          %v2853 = vmul.f32 %v2789, %v2789
          %v2854 = vmul.f32 %v2790, %v2790
          %v2855 = vmul.f32 %v2791, %v2791
          %v2856 = vmul.f32 %v2792, %v2792
          %v2857 = vmul.f32 %v2793, %v2793
          %v2858 = vmul.f32 %v2794, %v2794
          %v2859 = vmul.f32 %v2795, %v2795
          %v2860 = vmul.f32 %v2796, %v2796
          %v2861 = vmul.f32 %v2797, %v2797
          %v2862 = vmul.f32 %v2798, %v2798
          %v2863 = vmul.f32 %v2799, %v2799
          %v2864 = vmul.f32 %v2800, %v2800
          %v2865 = vmul.f32 %v2801, %v2801
          %v2866 = vmul.f32 %v2802, %v2802
          %v2867 = vmul.f32 %v2803, %v2803
          %v2868 = vmul.f32 %v2804, %v2804
          %v2869 = vmul.f32 %v2805, %v2805
          %v2870 = vmul.f32 %v2806, %v2806
          %v2871 = vmul.f32 %v2807, %v2807
          %v2872 = vmul.f32 %v2808, %v2808
          %v2873 = vmul.f32 %v2809, %v2809
          %v2874 = vmul.f32 %v2810, %v2810
          %v2875 = vmul.f32 %v2811, %v2811
          %v2876 = vmul.f32 %v2812, %v2812
          %v2877 = vmul.f32 %v2813, %v2813
          %v2878 = vmul.f32 %v2814, %v2814
          %v2879 = vmul.f32 %v2815, %v2815
          %v2880 = vmul.f32 %v2816, %v2816
          %v2881 = vmul.f32 %v2817, %v2817
          %v2882 = vmul.f32 %v2818, %v2818
          %v2883 = vmul.f32 %v2819, %v2819
          %v2884 = vmul.f32 %v2820, %v2820
          %v2885 = vmul.f32 %v2821, %v2821
          %v2886 = vmul.f32 %v2822, %v2822
          %v2887 = vmul.f32 %v2823, %v2823
          %v2888 = vmul.f32 %v2824, %v2824
          %v2889 = vmul.f32 %v2825, %v2825
          %v2890 = vmul.f32 %v2826, %v2826
          %v2891 = vmul.f32 %v2827, %v2827
          %v2892 = vmul.f32 %v2828, %v2828
          %v2893 = vmul.f32 %v2829, %v2829
          %v2894 = vmul.f32 %v2830, %v2830
          %v2895 = vadd.f32 %v2831, %v2833
          %v2896 = vadd.f32 %v2895, %v2835
          %v2897 = vadd.f32 %v2896, %v2837
          %v2898 = vadd.f32 %v2897, %v2839
          %v2899 = vadd.f32 %v2898, %v2841
          %v2900 = vadd.f32 %v2899, %v2843
          %v2901 = vadd.f32 %v2900, %v2845
          %v2902 = vadd.f32 %v2901, %v2847
          %v2903 = vadd.f32 %v2902, %v2849
          %v2904 = vadd.f32 %v2903, %v2851
          %v2905 = vadd.f32 %v2904, %v2853
          %v2906 = vadd.f32 %v2905, %v2855
          %v2907 = vadd.f32 %v2906, %v2857
          %v2908 = vadd.f32 %v2907, %v2859
          %v2909 = vadd.f32 %v2908, %v2861
          %v2910 = vadd.f32 %v2909, %v2863
          %v2911 = vadd.f32 %v2910, %v2865
          %v2912 = vadd.f32 %v2911, %v2867
          %v2913 = vadd.f32 %v2912, %v2869
          %v2914 = vadd.f32 %v2913, %v2871
          %v2915 = vadd.f32 %v2914, %v2873
          %v2916 = vadd.f32 %v2915, %v2875
          %v2917 = vadd.f32 %v2916, %v2877
          %v2918 = vadd.f32 %v2917, %v2879
          %v2919 = vadd.f32 %v2918, %v2881
          %v2920 = vadd.f32 %v2919, %v2883
          %v2921 = vadd.f32 %v2920, %v2885
          %v2922 = vadd.f32 %v2921, %v2887
          %v2923 = vadd.f32 %v2922, %v2889
          %v2924 = vadd.f32 %v2923, %v2891
          %v2925 = vadd.f32 %v2924, %v2893
          %v2926 = vadd.f32 %v2832, %v2834
          %v2927 = vadd.f32 %v2926, %v2836
          %v2928 = vadd.f32 %v2927, %v2838
          %v2929 = vadd.f32 %v2928, %v2840
          %v2930 = vadd.f32 %v2929, %v2842
          %v2931 = vadd.f32 %v2930, %v2844
          %v2932 = vadd.f32 %v2931, %v2846
          %v2933 = vadd.f32 %v2932, %v2848
          %v2934 = vadd.f32 %v2933, %v2850
          %v2935 = vadd.f32 %v2934, %v2852
          %v2936 = vadd.f32 %v2935, %v2854
          %v2937 = vadd.f32 %v2936, %v2856
          %v2938 = vadd.f32 %v2937, %v2858
          %v2939 = vadd.f32 %v2938, %v2860
          %v2940 = vadd.f32 %v2939, %v2862
          %v2941 = vadd.f32 %v2940, %v2864
          %v2942 = vadd.f32 %v2941, %v2866
          %v2943 = vadd.f32 %v2942, %v2868
          %v2944 = vadd.f32 %v2943, %v2870
          %v2945 = vadd.f32 %v2944, %v2872
          %v2946 = vadd.f32 %v2945, %v2874
          %v2947 = vadd.f32 %v2946, %v2876
          %v2948 = vadd.f32 %v2947, %v2878
          %v2949 = vadd.f32 %v2948, %v2880
          %v2950 = vadd.f32 %v2949, %v2882
          %v2951 = vadd.f32 %v2950, %v2884
          %v2952 = vadd.f32 %v2951, %v2886
          %v2953 = vadd.f32 %v2952, %v2888
          %v2954 = vadd.f32 %v2953, %v2890
          %v2955 = vadd.f32 %v2954, %v2892
          %v2956 = vadd.f32 %v2955, %v2894
          %2957 = vst [vmem:[%s417] sm:$0xff] %v2925
          %2958 = vst [vmem:[%s417 + $0x8] sm:$0xff] %v2956
        $region60: #{autoencoder_forward.1} parent=39 // pred_fallthru
          _
        %s2959 = sand.u32 %s173, 1
        %s2960 = scalar_lea.sflag [#allocation5], %s2959
        %s2961 = sand.u32 %s173, 1
        %s2962 = smul.addr %s2961, 1024
        %s2963 = scalar_lea.vmem [#allocation9], %s2962
        %s2964 = smul.u32 4, %s31
        %p2965 = scmp.lt.s32.totalorder %s30, 1
        %s2966 = scalar_select %p2965, %s30, 1
        %p2967 = scmp.lt.s32.totalorder %s2964, 3
        %s2968 = scalar_select %p2967, %s2964, 3
        %s2969 = smul.addr %s2966, 4
        %s2970 = sadd.s32 %s2968, %s2969
        %s2971 = smul.addr %s2970, 8
        %s2972 = scalar_lea.vmem %s6, %s2971
        %p2973 = scmp.lt.s32.totalorder %s30, 1
        %s2974 = scalar_select %p2973, %s30, 1
        %s2975 = smul.addr %s2974, 2
        %s2976 = smul.addr %s2975, 8
        %s2977 = scalar_lea.vmem %s7, %s2976
        // Predicated region
        $region61: #{autoencoder_forward.1} parent=39 // pred_check
          %p2978 = pneg %p183
        $region62: #{autoencoder_forward.1} parent=39 // pred_check_branch
          %2980 = sbr.rel (%p2978) target = $region64
        $region63: #{autoencoder_forward.1} parent=39 // pred_region
          %s2981 = smul.u32 32, %s30
          %s2982 = smul.u32 4, %s31
          %s2984 = ssub.s32 16384, 16384
          %2985 = vsyncadd %s2960, %s2984
          %s2986 = smul.addr %s2981, 4
          %s2987 = sadd.s32 %s2982, %s2986
          %s2988 = smul.addr %s2987, 128
          %s2989 = scalar_lea.hbm %s5, %s2988
          %s2990 = sshll.u32 %s2963, 4
          %s2991 = int_to_ptr.vmem [resolvable:$true] %s2990
          %2996 = dma.vmem_to_hbm [thread:$0]  %s2991, 16384, %s2989, %s2960, 512, 512, 32
        $region64: #{autoencoder_forward.1} parent=39 // pred_fallthru
          _
        // Predicated region
        $region65: #{autoencoder_forward.1} parent=39 // pred_check
          %p2997 = pneg %p211
        $region66: #{autoencoder_forward.1} parent=39 // pred_check_branch
          %2999 = sbr.rel (%p2997) target = $region68
        $region67: #{autoencoder_forward.1} parent=39 // pred_region
          %s3000 = smul.u32 4, %s31
        $region68: #{autoencoder_forward.1} parent=39 // pred_fallthru
          _
        // Predicated region
        $region69: #{autoencoder_forward.1} parent=39 // pred_check
          %p3001 = pneg %p237
        $region70: #{autoencoder_forward.1} parent=39 // pred_check_branch
          %3003 = sbr.rel (%p3001) target = $region72
        $region71: #{autoencoder_forward.1} parent=39 // pred_region
          _
        $region72: #{autoencoder_forward.1} parent=39 // pred_fallthru
          _
      $region40: #{autoencoder_forward.1} parent=5 // pred_fallthru
        _
      %p3004 = scmp.le.s32.totalorder 2, %s21
      // Predicated region
      $region73: #{autoencoder_forward.1} parent=5 // pred_check
        %p3005 = pneg %p3004
      $region74: #{autoencoder_forward.1} parent=5 // pred_check_branch
        %3007 = sbr.rel (%p3005) target = $region76
      $region75: #{autoencoder_forward.1} parent=5 // pred_region
        %s3008 = ssub.s32 %s21, 2
        // Predicated region
        $region77: #{autoencoder_forward.1} parent=75 // pred_check
          %p3009 = pneg %p189
        $region78: #{autoencoder_forward.1} parent=75 // pred_check_branch
          %3011 = sbr.rel (%p3009) target = $region80
        $region79: #{autoencoder_forward.1} parent=75 // pred_region
          %s3012 = sand.u32 %s174, 1
          %s3013 = scalar_lea.sflag [#allocation5], %s3012
          %s3014 = sand.u32 %s174, 1
          %s3015 = smul.addr %s3014, 1024
          %s3016 = scalar_lea.vmem [#allocation9], %s3015
          %3017 = dma.done %s3013, 16384
        $region80: #{autoencoder_forward.1} parent=75 // pred_fallthru
          _
        // Predicated region
        $region81: #{autoencoder_forward.1} parent=75 // pred_check
          %p3018 = pneg %p217
        $region82: #{autoencoder_forward.1} parent=75 // pred_check_branch
          %3020 = sbr.rel (%p3018) target = $region84
        $region83: #{autoencoder_forward.1} parent=75 // pred_region
          %s3021 = smul.u32 4, %s33
          %p3022 = scmp.lt.s32.totalorder %s32, 1
          %s3023 = scalar_select %p3022, %s32, 1
          %p3024 = scmp.lt.s32.totalorder %s3021, 3
          %s3025 = scalar_select %p3024, %s3021, 3
          %s3026 = smul.addr %s3023, 4
          %s3027 = sadd.s32 %s3025, %s3026
          %s3028 = smul.addr %s3027, 8
          %s3029 = scalar_lea.vmem %s6, %s3028
        $region84: #{autoencoder_forward.1} parent=75 // pred_fallthru
          _
        // Predicated region
        $region85: #{autoencoder_forward.1} parent=75 // pred_check
          %p3030 = pneg %p243
        $region86: #{autoencoder_forward.1} parent=75 // pred_check_branch
          %3032 = sbr.rel (%p3030) target = $region88
        $region87: #{autoencoder_forward.1} parent=75 // pred_region
          %p3033 = scmp.lt.s32.totalorder %s32, 1
          %s3034 = scalar_select %p3033, %s32, 1
          %s3035 = smul.addr %s3034, 2
          %s3036 = smul.addr %s3035, 8
          %s3037 = scalar_lea.vmem %s7, %s3036
        $region88: #{autoencoder_forward.1} parent=75 // pred_fallthru
          _
      $region76: #{autoencoder_forward.1} parent=5 // pred_fallthru
        _
    $region6: #{autoencoder_forward.1} parent=1 // loop_footer
      %s25 = sadd.s32 1, %s21
    $region7: #{autoencoder_forward.1} parent=1 // loop_footer_branch
      %20 = sbr.rel target = $region3
    $region8: #{autoencoder_forward.1} parent=1 // loop_exit
      _
    %3038 = vsyncpa [#allocation4], 1
    %s3039 = scalar_lea.sflag [#allocation4], 1
    %3040 = vsyncpa %s3039, 1
    %3041 = vsyncpa [#allocation7], 1
    %3042 = vsyncpa [#allocation5], 1
    %s3043 = scalar_lea.sflag [#allocation5], 1
    %3044 = vsyncpa %s3043, 1

</llo_original>
